<compile_context>
chip_gen: v5e
topology: v5e:2x2
jax: 0.10.0
libtpu: 0.0.40
codegen_flags: <defaults>
</compile_context>

<pallas_src>
import jax
import jax.numpy as jnp
from jax import lax
from jax.experimental import pallas as pl
from jax.experimental.pallas import tpu as pltpu

LANE = 128


def _round_up(x, m):
    return (x + m - 1) // m * m


# ---------------- Pallas kernel ----------------


def _resblock_kernel(x_ref, w1_ref, w2_ref, b1_ref, b2_ref, o_ref):
    # x_ref  : (1, H, W, Cp)  one batch element, channels zero-padded to lane width
    # w1_ref : (9*Cp, Cp)     conv1 weights, im2col layout, BN1 scale folded in
    # w2_ref : (9*Cp, Cp)     conv2 weights, im2col layout, BN2 scale folded in
    # b1_ref : (1, Cp)        conv1 bias + BN1 folded shift
    # b2_ref : (1, Cp)        conv2 bias + BN2 folded shift
    # o_ref  : (1, H, W, Cp)
    H, W, Cp = o_ref.shape[1], o_ref.shape[2], o_ref.shape[3]

    x = x_ref[0]                                                   # (H, W, Cp)

    def pad_hw(t):
        # value-level 'same' padding (no scratch ref, no per-step zero-fill of a buffer)
        zrow = jnp.zeros((1, W, Cp), jnp.float32)
        t = jnp.concatenate([zrow, t, zrow], axis=0)               # (H+2, W,   Cp)
        zcol = jnp.zeros((H + 2, 1, Cp), jnp.float32)
        return jnp.concatenate([zcol, t, zcol], axis=1)            # (H+2, W+2, Cp)

    def im2col(tp):
        return jnp.concatenate(
            [tp[dy:dy + H, dx:dx + W, :].reshape(H * W, Cp)
             for dy in range(3) for dx in range(3)],
            axis=-1)                                               # (H*W, 9*Cp)

    # ---- conv1 (3x3, stride 1, pad 1): im2col -> one MXU matmul, + BN1 bias, ReLU ----
    cols1 = im2col(pad_hw(x))
    h = jnp.dot(cols1, w1_ref[...], preferred_element_type=jnp.float32)
    h = jnp.maximum(h + b1_ref[...], 0.0)

    # ---- conv2: im2col -> one MXU matmul, + BN2 bias ----
    cols2 = im2col(pad_hw(h.reshape(H, W, Cp)))
    y = jnp.dot(cols2, w2_ref[...], preferred_element_type=jnp.float32)
    y = y + b2_ref[...]

    # ---- residual add + ReLU, lane-dense unmasked store ----
    resid = x.reshape(H * W, Cp)
    o_ref[...] = jnp.maximum(y + resid, 0.0).reshape(1, H, W, Cp)


# ---------------- wrapper ----------------


def fold_bn_into_conv(w, b_conv, gamma, beta, mean, var, eps=1e-5):
    """Fold eval-mode BatchNorm2d into the preceding Conv2d. Returns (w', b')."""
    scale = gamma / jnp.sqrt(var + eps)               # (O,)
    w_f = w * scale[:, None, None, None]              # OIHW, scale per out-channel
    b_f = (b_conv - mean) * scale + beta
    return w_f, b_f


def residual_block_pallas(x_nchw, w1, b1, w2, b2):
    """Fused residual block.

    x_nchw : (N, C, H, W) float32, PyTorch layout.
    w1, w2 : (C, C, 3, 3) conv weights with eval-mode BN scale already folded in.
    b1, b2 : (C,) effective per-channel biases (conv bias + BN shift).
    Returns (N, C, H, W).
    """
    N, C, H, W = x_nchw.shape
    Cp = _round_up(C, LANE)

    # NCHW -> NHWC, pad channels to lane width. (Spatial padding happens in-kernel.)
    x_nhwc = jnp.transpose(x_nchw, (0, 2, 3, 1)).astype(jnp.float32)
    x_nhwc = jnp.pad(x_nhwc, ((0, 0), (0, 0), (0, 0), (0, Cp - C)))

    def prep_w(w):
        # (O, I, kh, kw) -> (kh, kw, I, O), pad channels, -> (9*Cp, Cp) im2col layout.
        wk = jnp.transpose(w, (2, 3, 1, 0)).astype(jnp.float32)
        wk = jnp.pad(wk, ((0, 0), (0, 0), (0, Cp - C), (0, Cp - C)))
        return wk.reshape(9 * Cp, Cp)

    def prep_b(b):
        return jnp.pad(b.astype(jnp.float32), (0, Cp - C)).reshape(1, Cp)

    w1_k, w2_k = prep_w(w1), prep_w(w2)
    b1_k, b2_k = prep_b(b1), prep_b(b2)

    # Explicit VMEM budget: double-buffered I/O blocks + weights + in-kernel temporaries.
    f = 4
    tile = H * W * Cp * f
    pad_tile = (H + 2) * (W + 2) * Cp * f
    cols = 9 * tile
    wbytes = 9 * Cp * Cp * f
    est = (2 * 2 * tile            # x and out blocks (double buffered)
           + 2 * 2 * wbytes        # two weight tensors
           + 2 * cols              # cols1 + cols2
           + 2 * pad_tile          # padded input + padded intermediate
           + 4 * tile)             # misc temporaries
    vmem_limit = int(min(max(2 * est, 16 * 2**20), 64 * 2**20))

    out_nhwc = pl.pallas_call(
        _resblock_kernel,
        out_shape=jax.ShapeDtypeStruct((N, H, W, Cp), jnp.float32),
        grid_spec=pltpu.PrefetchScalarGridSpec(
            num_scalar_prefetch=0,
            grid=(N,),
            in_specs=[
                pl.BlockSpec((1, H, W, Cp), lambda n: (n, 0, 0, 0)),
                pl.BlockSpec((9 * Cp, Cp), lambda n: (0, 0)),
                pl.BlockSpec((9 * Cp, Cp), lambda n: (0, 0)),
                pl.BlockSpec((1, Cp), lambda n: (0, 0)),
                pl.BlockSpec((1, Cp), lambda n: (0, 0)),
            ],
            out_specs=pl.BlockSpec((1, H, W, Cp), lambda n: (n, 0, 0, 0)),
        ),
        compiler_params=pltpu.CompilerParams(
            dimension_semantics=("parallel",),
            vmem_limit_bytes=vmem_limit),
    )(x_nhwc, w1_k, w2_k, b1_k, b2_k)

    # Drop channel padding, back to NCHW to match the PyTorch module.
    return jnp.transpose(out_nhwc[..., :C], (0, 3, 1, 2))


# ---------------- pure-JAX reference (for correctness check) ----------------


def residual_block_ref(x, w1, b1, gamma1, beta1, mean1, var1,
                       w2, b2, gamma2, beta2, mean2, var2, eps=1e-5):
    dn = lax.conv_dimension_numbers(x.shape, w1.shape, ("NCHW", "OIHW", "NCHW"))

    def bn(t, g, bta, m, v):
        s = g / jnp.sqrt(v + eps)
        return t * s[None, :, None, None] + (bta - m * s)[None, :, None, None]

    h = lax.conv_general_dilated(x, w1, (1, 1), "SAME", dimension_numbers=dn)
    h = h + b1[None, :, None, None]
    h = jnp.maximum(bn(h, gamma1, beta1, mean1, var1), 0.0)
    y = lax.conv_general_dilated(h, w2, (1, 1), "SAME", dimension_numbers=dn)
    y = y + b2[None, :, None, None]
    y = bn(y, gamma2, beta2, mean2, var2)
    return jnp.maximum(x + y, 0.0)


# ---------------- driver ----------------

if __name__ == "__main__":
    N, C, H, W = 2, 4, 16, 16
    key = jax.random.PRNGKey(0)
    ks = jax.random.split(key, 14)

    x = jax.random.normal(ks[0], (N, C, H, W), jnp.float32)

    # Conv2d(n_f, n_f, 3, 1, 1) weights + biases (bias defaults to True in nn.Conv2d).
    w1 = jax.random.normal(ks[1], (C, C, 3, 3), jnp.float32) * 0.1
    bc1 = jax.random.normal(ks[2], (C,), jnp.float32) * 0.1
    w2 = jax.random.normal(ks[3], (C, C, 3, 3), jnp.float32) * 0.1
    bc2 = jax.random.normal(ks[4], (C,), jnp.float32) * 0.1

    # BatchNorm2d parameters (eval mode).
    eps = 1e-5
    gamma1 = jax.random.normal(ks[5], (C,), jnp.float32) * 0.1 + 1.0
    beta1 = jax.random.normal(ks[6], (C,), jnp.float32) * 0.1
    mean1 = jax.random.normal(ks[7], (C,), jnp.float32) * 0.1
    var1 = jax.random.uniform(ks[8], (C,), jnp.float32, minval=0.5, maxval=1.5)
    gamma2 = jax.random.normal(ks[9], (C,), jnp.float32) * 0.1 + 1.0
    beta2 = jax.random.normal(ks[10], (C,), jnp.float32) * 0.1
    mean2 = jax.random.normal(ks[11], (C,), jnp.float32) * 0.1
    var2 = jax.random.uniform(ks[12], (C,), jnp.float32, minval=0.5, maxval=1.5)

    # Fold BN (and conv bias) into per-conv weight/bias for the kernel.
    w1f, b1f = fold_bn_into_conv(w1, bc1, gamma1, beta1, mean1, var1, eps)
    w2f, b2f = fold_bn_into_conv(w2, bc2, gamma2, beta2, mean2, var2, eps)

    out = residual_block_pallas(x, w1f, b1f, w2f, b2f)
    out = jax.block_until_ready(out)

    ref = residual_block_ref(x, w1, bc1, gamma1, beta1, mean1, var1,
                             w2, bc2, gamma2, beta2, mean2, var2, eps)
    assert out.shape == (N, C, H, W)
    assert jnp.allclose(out, ref, atol=1e-4, rtol=1e-4), "mismatch vs reference"

    print("KERNEL_OK")
</pallas_src>

<mosaic_0001>
module attributes {stable_mosaic.version = 11 : i64} {
  func.func @_resblock_kernel(%arg0: i32, %arg1: memref<1x16x16x128xf32, #tpu.memory_space<vmem>>, %arg2: memref<1152x128xf32, #tpu.memory_space<vmem>>, %arg3: memref<1152x128xf32, #tpu.memory_space<vmem>>, %arg4: memref<1x128xf32, #tpu.memory_space<vmem>>, %arg5: memref<1x128xf32, #tpu.memory_space<vmem>>, %arg6: memref<1x16x16x128xf32, #tpu.memory_space<vmem>>) attributes {dimension_semantics = [#tpu.dimension_semantics<parallel>], iteration_bounds = array<i64: 2>, scalar_prefetch = 0 : i64, scratch_operands = 0 : i64, tpu.core_type = #tpu.core_type<tc>, window_params = [{transform_indices = @transform_0, window_bounds = array<i64: 1, 16, 16, 128>}, {pipeline_mode = #tpu.pipeline_mode<synchronous>, transform_indices = @transform_1, window_bounds = array<i64: 1152, 128>}, {pipeline_mode = #tpu.pipeline_mode<synchronous>, transform_indices = @transform_2, window_bounds = array<i64: 1152, 128>}, {pipeline_mode = #tpu.pipeline_mode<synchronous>, transform_indices = @transform_3, window_bounds = array<i64: 1, 128>}, {pipeline_mode = #tpu.pipeline_mode<synchronous>, transform_indices = @transform_4, window_bounds = array<i64: 1, 128>}, {transform_indices = @transform_5, window_bounds = array<i64: 1, 16, 16, 128>}]} {
    %c0 = arith.constant 0 : index
    %c0_0 = arith.constant 0 : index
    %c0_1 = arith.constant 0 : index
    %c0_2 = arith.constant 0 : index
    %0 = vector.load %arg1[%c0, %c0_0, %c0_1, %c0_2] : memref<1x16x16x128xf32, #tpu.memory_space<vmem>>, vector<1x16x16x128xf32>
    %1 = vector.shape_cast %0 : vector<1x16x16x128xf32> to vector<16x16x128xf32>
    %cst = arith.constant 0.000000e+00 : f32
    %2 = vector.broadcast %cst : f32 to vector<1x16x128xf32>
    %3 = tpu.concatenate %2, %1, %2 in 0 : vector<1x16x128xf32>, vector<16x16x128xf32>, vector<1x16x128xf32> -> vector<18x16x128xf32>
    %cst_3 = arith.constant 0.000000e+00 : f32
    %4 = vector.broadcast %cst_3 : f32 to vector<18x1x128xf32>
    %5 = tpu.concatenate %4, %3, %4 in 1 : vector<18x1x128xf32>, vector<18x16x128xf32>, vector<18x1x128xf32> -> vector<18x18x128xf32>
    %6 = vector.extract_strided_slice %5 {offsets = [0, 0, 0], sizes = [16, 16, 128], strides = [1, 1, 1]} : vector<18x18x128xf32> to vector<16x16x128xf32>
    %7 = vector.shape_cast %6 : vector<16x16x128xf32> to vector<256x128xf32>
    %8 = vector.extract_strided_slice %5 {offsets = [0, 1, 0], sizes = [16, 16, 128], strides = [1, 1, 1]} : vector<18x18x128xf32> to vector<16x16x128xf32>
    %9 = vector.shape_cast %8 : vector<16x16x128xf32> to vector<256x128xf32>
    %10 = vector.extract_strided_slice %5 {offsets = [0, 2, 0], sizes = [16, 16, 128], strides = [1, 1, 1]} : vector<18x18x128xf32> to vector<16x16x128xf32>
    %11 = vector.shape_cast %10 : vector<16x16x128xf32> to vector<256x128xf32>
    %12 = vector.extract_strided_slice %5 {offsets = [1, 0, 0], sizes = [16, 16, 128], strides = [1, 1, 1]} : vector<18x18x128xf32> to vector<16x16x128xf32>
    %13 = vector.shape_cast %12 : vector<16x16x128xf32> to vector<256x128xf32>
    %14 = vector.extract_strided_slice %5 {offsets = [1, 1, 0], sizes = [16, 16, 128], strides = [1, 1, 1]} : vector<18x18x128xf32> to vector<16x16x128xf32>
    %15 = vector.shape_cast %14 : vector<16x16x128xf32> to vector<256x128xf32>
    %16 = vector.extract_strided_slice %5 {offsets = [1, 2, 0], sizes = [16, 16, 128], strides = [1, 1, 1]} : vector<18x18x128xf32> to vector<16x16x128xf32>
    %17 = vector.shape_cast %16 : vector<16x16x128xf32> to vector<256x128xf32>
    %18 = vector.extract_strided_slice %5 {offsets = [2, 0, 0], sizes = [16, 16, 128], strides = [1, 1, 1]} : vector<18x18x128xf32> to vector<16x16x128xf32>
    %19 = vector.shape_cast %18 : vector<16x16x128xf32> to vector<256x128xf32>
    %20 = vector.extract_strided_slice %5 {offsets = [2, 1, 0], sizes = [16, 16, 128], strides = [1, 1, 1]} : vector<18x18x128xf32> to vector<16x16x128xf32>
    %21 = vector.shape_cast %20 : vector<16x16x128xf32> to vector<256x128xf32>
    %22 = vector.extract_strided_slice %5 {offsets = [2, 2, 0], sizes = [16, 16, 128], strides = [1, 1, 1]} : vector<18x18x128xf32> to vector<16x16x128xf32>
    %23 = vector.shape_cast %22 : vector<16x16x128xf32> to vector<256x128xf32>
    %24 = tpu.concatenate %7, %9, %11, %13, %15, %17, %19, %21, %23 in 1 : vector<256x128xf32>, vector<256x128xf32>, vector<256x128xf32>, vector<256x128xf32>, vector<256x128xf32>, vector<256x128xf32>, vector<256x128xf32>, vector<256x128xf32>, vector<256x128xf32> -> vector<256x1152xf32>
    %c0_4 = arith.constant 0 : index
    %c0_5 = arith.constant 0 : index
    %25 = vector.load %arg2[%c0_4, %c0_5] : memref<1152x128xf32, #tpu.memory_space<vmem>>, vector<1152x128xf32>
    %cst_6 = arith.constant dense<0.000000e+00> : vector<256x128xf32>
    %26 = tpu.matmul %24, %25, %cst_6 {dimension_numbers = #tpu.dot_dimension_numbers<[1], [0], [0], [1], [0, 0, 1, 1], [], []>} : vector<256x1152xf32>, vector<1152x128xf32>, vector<256x128xf32> -> vector<256x128xf32>
    %c0_7 = arith.constant 0 : index
    %c0_8 = arith.constant 0 : index
    %27 = vector.load %arg4[%c0_7, %c0_8] : memref<1x128xf32, #tpu.memory_space<vmem>>, vector<1x128xf32>
    %28 = vector.broadcast %27 : vector<1x128xf32> to vector<256x128xf32>
    %29 = arith.addf %26, %28 : vector<256x128xf32>
    %cst_9 = arith.constant 0.000000e+00 : f32
    %30 = vector.broadcast %cst_9 : f32 to vector<256x128xf32>
    %31 = arith.maximumf %29, %30 : vector<256x128xf32>
    %32 = vector.shape_cast %31 : vector<256x128xf32> to vector<16x16x128xf32>
    %cst_10 = arith.constant 0.000000e+00 : f32
    %33 = vector.broadcast %cst_10 : f32 to vector<1x16x128xf32>
    %34 = tpu.concatenate %33, %32, %33 in 0 : vector<1x16x128xf32>, vector<16x16x128xf32>, vector<1x16x128xf32> -> vector<18x16x128xf32>
    %cst_11 = arith.constant 0.000000e+00 : f32
    %35 = vector.broadcast %cst_11 : f32 to vector<18x1x128xf32>
    %36 = tpu.concatenate %35, %34, %35 in 1 : vector<18x1x128xf32>, vector<18x16x128xf32>, vector<18x1x128xf32> -> vector<18x18x128xf32>
    %37 = vector.extract_strided_slice %36 {offsets = [0, 0, 0], sizes = [16, 16, 128], strides = [1, 1, 1]} : vector<18x18x128xf32> to vector<16x16x128xf32>
    %38 = vector.shape_cast %37 : vector<16x16x128xf32> to vector<256x128xf32>
    %39 = vector.extract_strided_slice %36 {offsets = [0, 1, 0], sizes = [16, 16, 128], strides = [1, 1, 1]} : vector<18x18x128xf32> to vector<16x16x128xf32>
    %40 = vector.shape_cast %39 : vector<16x16x128xf32> to vector<256x128xf32>
    %41 = vector.extract_strided_slice %36 {offsets = [0, 2, 0], sizes = [16, 16, 128], strides = [1, 1, 1]} : vector<18x18x128xf32> to vector<16x16x128xf32>
    %42 = vector.shape_cast %41 : vector<16x16x128xf32> to vector<256x128xf32>
    %43 = vector.extract_strided_slice %36 {offsets = [1, 0, 0], sizes = [16, 16, 128], strides = [1, 1, 1]} : vector<18x18x128xf32> to vector<16x16x128xf32>
    %44 = vector.shape_cast %43 : vector<16x16x128xf32> to vector<256x128xf32>
    %45 = vector.extract_strided_slice %36 {offsets = [1, 1, 0], sizes = [16, 16, 128], strides = [1, 1, 1]} : vector<18x18x128xf32> to vector<16x16x128xf32>
    %46 = vector.shape_cast %45 : vector<16x16x128xf32> to vector<256x128xf32>
    %47 = vector.extract_strided_slice %36 {offsets = [1, 2, 0], sizes = [16, 16, 128], strides = [1, 1, 1]} : vector<18x18x128xf32> to vector<16x16x128xf32>
    %48 = vector.shape_cast %47 : vector<16x16x128xf32> to vector<256x128xf32>
    %49 = vector.extract_strided_slice %36 {offsets = [2, 0, 0], sizes = [16, 16, 128], strides = [1, 1, 1]} : vector<18x18x128xf32> to vector<16x16x128xf32>
    %50 = vector.shape_cast %49 : vector<16x16x128xf32> to vector<256x128xf32>
    %51 = vector.extract_strided_slice %36 {offsets = [2, 1, 0], sizes = [16, 16, 128], strides = [1, 1, 1]} : vector<18x18x128xf32> to vector<16x16x128xf32>
    %52 = vector.shape_cast %51 : vector<16x16x128xf32> to vector<256x128xf32>
    %53 = vector.extract_strided_slice %36 {offsets = [2, 2, 0], sizes = [16, 16, 128], strides = [1, 1, 1]} : vector<18x18x128xf32> to vector<16x16x128xf32>
    %54 = vector.shape_cast %53 : vector<16x16x128xf32> to vector<256x128xf32>
    %55 = tpu.concatenate %38, %40, %42, %44, %46, %48, %50, %52, %54 in 1 : vector<256x128xf32>, vector<256x128xf32>, vector<256x128xf32>, vector<256x128xf32>, vector<256x128xf32>, vector<256x128xf32>, vector<256x128xf32>, vector<256x128xf32>, vector<256x128xf32> -> vector<256x1152xf32>
    %c0_12 = arith.constant 0 : index
    %c0_13 = arith.constant 0 : index
    %56 = vector.load %arg3[%c0_12, %c0_13] : memref<1152x128xf32, #tpu.memory_space<vmem>>, vector<1152x128xf32>
    %cst_14 = arith.constant dense<0.000000e+00> : vector<256x128xf32>
    %57 = tpu.matmul %55, %56, %cst_14 {dimension_numbers = #tpu.dot_dimension_numbers<[1], [0], [0], [1], [0, 0, 1, 1], [], []>} : vector<256x1152xf32>, vector<1152x128xf32>, vector<256x128xf32> -> vector<256x128xf32>
    %c0_15 = arith.constant 0 : index
    %c0_16 = arith.constant 0 : index
    %58 = vector.load %arg5[%c0_15, %c0_16] : memref<1x128xf32, #tpu.memory_space<vmem>>, vector<1x128xf32>
    %59 = vector.broadcast %58 : vector<1x128xf32> to vector<256x128xf32>
    %60 = arith.addf %57, %59 : vector<256x128xf32>
    %61 = vector.shape_cast %1 : vector<16x16x128xf32> to vector<256x128xf32>
    %62 = arith.addf %60, %61 : vector<256x128xf32>
    %cst_17 = arith.constant 0.000000e+00 : f32
    %63 = vector.broadcast %cst_17 : f32 to vector<256x128xf32>
    %64 = arith.maximumf %62, %63 : vector<256x128xf32>
    %65 = vector.shape_cast %64 : vector<256x128xf32> to vector<1x16x16x128xf32>
    %c0_18 = arith.constant 0 : index
    %c0_19 = arith.constant 0 : index
    %c0_20 = arith.constant 0 : index
    %c0_21 = arith.constant 0 : index
    %66 = vector.load %arg6[%c0_18, %c0_19, %c0_20, %c0_21] : memref<1x16x16x128xf32, #tpu.memory_space<vmem>>, vector<1x16x16x128xf32>
    tpu.vector_store %arg6[%c0_18, %c0_19, %c0_20, %c0_21], %65 {strides = array<i32>} : memref<1x16x16x128xf32, #tpu.memory_space<vmem>>, vector<1x16x16x128xf32>,
    return
  }
  func.func @transform_0(%arg0: i32) -> (i32, i32, i32, i32) {
    %c0_i32 = arith.constant 0 : i32
    %c0_i32_0 = arith.constant 0 : i32
    %c0_i32_1 = arith.constant 0 : i32
    %c0_i32_2 = arith.constant 0 : i32
    return %arg0, %c0_i32, %c0_i32_0, %c0_i32_1 : i32, i32, i32, i32
  }
  func.func @transform_1(%arg0: i32) -> (i32, i32) {
    %c0_i32 = arith.constant 0 : i32
    %c0_i32_0 = arith.constant 0 : i32
    %c0_i32_1 = arith.constant 0 : i32
    return %c0_i32, %c0_i32_0 : i32, i32
  }
  func.func @transform_2(%arg0: i32) -> (i32, i32) {
    %c0_i32 = arith.constant 0 : i32
    %c0_i32_0 = arith.constant 0 : i32
    %c0_i32_1 = arith.constant 0 : i32
    return %c0_i32, %c0_i32_0 : i32, i32
  }
  func.func @transform_3(%arg0: i32) -> (i32, i32) {
    %c0_i32 = arith.constant 0 : i32
    %c0_i32_0 = arith.constant 0 : i32
    %c0_i32_1 = arith.constant 0 : i32
    return %c0_i32, %c0_i32_0 : i32, i32
  }
  func.func @transform_4(%arg0: i32) -> (i32, i32) {
    %c0_i32 = arith.constant 0 : i32
    %c0_i32_0 = arith.constant 0 : i32
    %c0_i32_1 = arith.constant 0 : i32
    return %c0_i32, %c0_i32_0 : i32, i32
  }
  func.func @transform_5(%arg0: i32) -> (i32, i32, i32, i32) {
    %c0_i32 = arith.constant 0 : i32
    %c0_i32_0 = arith.constant 0 : i32
    %c0_i32_1 = arith.constant 0 : i32
    %c0_i32_2 = arith.constant 0 : i32
    return %arg0, %c0_i32, %c0_i32_0, %c0_i32_1 : i32, i32, i32, i32
  }
}

</mosaic_0001>

<llo_original>
// kernel: tpu_custom_call.1
$region0: #{tpu_custom_call.1}
  #allocation0 [shape = 'u32[]', space=smem, size = 0x4, offset = 0x4, fixed_abs, tag = 'smem constant byte address 0x4 - core index']
  #allocation1 [shape = 'u32[72,128]{1,0:T(1,128)}', space=vmem, size = 0x9000, scoped, tag = 'internal scratch']
  %s0 = inlined_call_operand.hbm [shape: f32[2,16,16,128], index: 0, kind: input, shape index: {}]
  %s1 = inlined_call_operand.hbm [shape: f32[1152,128], index: 1, kind: input, shape index: {}]
  %s2 = inlined_call_operand.hbm [shape: f32[1152,128], index: 2, kind: input, shape index: {}]
  %s3 = inlined_call_operand.vmem [shape: f32[1,128], index: 3, kind: input, shape index: {}]
  %s4 = inlined_call_operand.vmem [shape: f32[1,128], index: 4, kind: input, shape index: {}]
  %s5 = inlined_call_operand.hbm [shape: f32[2,16,16,128], index: 5, kind: output, shape index: {}]
  %s6 = sld [smem:[#allocation0]]
  $region65: #{tpu_custom_call.1} parent=0
    _
  %s8 = ssub.s32 1, %s6
  %s9 = scalar_select 0, %s8, %s6
  $region1: #{tpu_custom_call.1} parent=0
    #allocation2 [shape = 'u8[262144]{0}', space=vmem, size = 0x40000, scoped, tag = 'input window, operand 0']
    #allocation3 [shape = 's32[2]{0}', space=sflag, size = 0x8, scoped, tag = 'scoped memory for tpu_custom_call.1']
    #allocation4 [shape = 's32[2]{0}', space=sflag, size = 0x8, scoped, tag = 'scoped memory for tpu_custom_call.1']
    #allocation5 [shape = 'u8[589824]{0}', space=vmem, size = 0x90000, scoped, tag = 'input window, operand 1, single buffered']
    #allocation6 [shape = 's32[1]{0}', space=sflag, size = 0x4, scoped, tag = 'scoped memory for tpu_custom_call.1']
    #allocation7 [shape = 'u8[589824]{0}', space=vmem, size = 0x90000, scoped, tag = 'input window, operand 2, single buffered']
    #allocation8 [shape = 'u8[262144]{0}', space=vmem, size = 0x40000, scoped, tag = 'output window, operand 0']
    %10 = vsyncpa [#allocation3], 0
    %s11 = scalar_lea.sflag [#allocation3], 1
    %12 = vsyncpa %s11, 0
    %13 = vsyncpa [#allocation6], 0
    %14 = vsyncpa [#allocation4], 0
    %s15 = scalar_lea.sflag [#allocation4], 1
    %16 = vsyncpa %s15, 0
    loop: start=0, step=1, limit=4
    $region2: #{tpu_custom_call.1} parent=1 // loop_pre_header
      _
    $region3: #{tpu_custom_call.1} parent=1 // loop_header
      %s18 = sphi 0, %s22
      %p19 = scmp.ge.s32.totalorder %s18, 4
      %s28 = sphi 0, %s30
      %s31 = sphi 0, %s28
      %s32 = sphi 0, %s31
      %s48 = sphi 0, %s32
      %s52 = sphi 0, %s52
      %s54 = sphi 0, %s52
      %s55 = sphi 0, %s54
      %s69 = sphi 0, %s55
      %s73 = sphi 0, %s73
      %s75 = sphi 0, %s73
      %s76 = sphi 0, %s75
      %s90 = sphi 0, %s76
      %s94 = sphi 0, %s94
      %s96 = sphi 0, %s94
      %s97 = sphi 0, %s96
      %s111 = sphi 0, %s97
      %s115 = sphi 0, %s115
      %s117 = sphi 0, %s115
      %s118 = sphi 0, %s117
      %s132 = sphi 0, %s118
      %s138 = sphi 0, %s140
      %s141 = sphi 0, %s138
      %s142 = sphi 0, %s141
      %s158 = sphi 0, %s142
    $region4: #{tpu_custom_call.1} parent=1 // loop_header_branch
      %21 = sbr.rel (%p19) target = $region8
    $region5: #{tpu_custom_call.1} parent=1 // loop_body
      %s23 = ssub.s32 %s18, 1
      %s24 = ssub.s32 %s18, 2
      %s25 = sadd.s32 %s18, 1
      %s26 = ssub.s32 %s18, %s25
      %p27 = scmp.eq.s32.totalorder %s26, 0
      %s29 = sadd.s32 %s28, 1
      %s30 = scalar_select %p27, %s28, %s29
      %p33 = pneg %p27
      %p34 = scmp.eq.s32.totalorder %s18, 1
      %p35 = por %p33, %p34
      %p36 = scmp.ne.s32.totalorder %s28, %s31
      %p37 = scmp.eq.s32.totalorder %s18, 0
      %p38 = por %p36, %p37
      %p39 = scmp.ne.s32.totalorder %s28, %s31
      %p40 = scmp.eq.s32.totalorder %s23, 1
      %p41 = por %p39, %p40
      %p42 = scmp.ne.s32.totalorder %s31, %s32
      %p43 = scmp.eq.s32.totalorder %s23, 0
      %p44 = por %p42, %p43
      %p45 = scmp.ne.s32.totalorder %s31, %s32
      %p46 = scmp.eq.s32.totalorder %s24, 1
      %p47 = por %p45, %p46
      %p49 = scmp.ne.s32.totalorder %s32, %s48
      %p50 = scmp.eq.s32.totalorder %s24, 0
      %p51 = por %p49, %p50
      %s53 = sadd.s32 %s52, 1
      %p56 = scmp.eq.s32.totalorder %s18, 1
      %p57 = scmp.ne.s32.totalorder %s52, %s54
      %p58 = scmp.eq.s32.totalorder %s18, 0
      %p59 = por %p57, %p58
      %p60 = scmp.ne.s32.totalorder %s52, %s54
      %p61 = scmp.eq.s32.totalorder %s23, 1
      %p62 = por %p60, %p61
      %p63 = scmp.ne.s32.totalorder %s54, %s55
      %p64 = scmp.eq.s32.totalorder %s23, 0
      %p65 = por %p63, %p64
      %p66 = scmp.ne.s32.totalorder %s54, %s55
      %p67 = scmp.eq.s32.totalorder %s24, 1
      %p68 = por %p66, %p67
      %p70 = scmp.ne.s32.totalorder %s55, %s69
      %p71 = scmp.eq.s32.totalorder %s24, 0
      %p72 = por %p70, %p71
      %s74 = sadd.s32 %s73, 1
      %p77 = scmp.eq.s32.totalorder %s18, 1
      %p78 = scmp.ne.s32.totalorder %s73, %s75
      %p79 = scmp.eq.s32.totalorder %s18, 0
      %p80 = por %p78, %p79
      %p81 = scmp.ne.s32.totalorder %s73, %s75
      %p82 = scmp.eq.s32.totalorder %s23, 1
      %p83 = por %p81, %p82
      %p84 = scmp.ne.s32.totalorder %s75, %s76
      %p85 = scmp.eq.s32.totalorder %s23, 0
      %p86 = por %p84, %p85
      %p87 = scmp.ne.s32.totalorder %s75, %s76
      %p88 = scmp.eq.s32.totalorder %s24, 1
      %p89 = por %p87, %p88
      %p91 = scmp.ne.s32.totalorder %s76, %s90
      %p92 = scmp.eq.s32.totalorder %s24, 0
      %p93 = por %p91, %p92
      %s95 = sadd.s32 %s94, 1
      %p98 = scmp.eq.s32.totalorder %s18, 1
      %p99 = scmp.ne.s32.totalorder %s94, %s96
      %p100 = scmp.eq.s32.totalorder %s18, 0
      %p101 = por %p99, %p100
      %p102 = scmp.ne.s32.totalorder %s94, %s96
      %p103 = scmp.eq.s32.totalorder %s23, 1
      %p104 = por %p102, %p103
      %p105 = scmp.ne.s32.totalorder %s96, %s97
      %p106 = scmp.eq.s32.totalorder %s23, 0
      %p107 = por %p105, %p106
      %p108 = scmp.ne.s32.totalorder %s96, %s97
      %p109 = scmp.eq.s32.totalorder %s24, 1
      %p110 = por %p108, %p109
      %p112 = scmp.ne.s32.totalorder %s97, %s111
      %p113 = scmp.eq.s32.totalorder %s24, 0
      %p114 = por %p112, %p113
      %s116 = sadd.s32 %s115, 1
      %p119 = scmp.eq.s32.totalorder %s18, 1
      %p120 = scmp.ne.s32.totalorder %s115, %s117
      %p121 = scmp.eq.s32.totalorder %s18, 0
      %p122 = por %p120, %p121
      %p123 = scmp.ne.s32.totalorder %s115, %s117
      %p124 = scmp.eq.s32.totalorder %s23, 1
      %p125 = por %p123, %p124
      %p126 = scmp.ne.s32.totalorder %s117, %s118
      %p127 = scmp.eq.s32.totalorder %s23, 0
      %p128 = por %p126, %p127
      %p129 = scmp.ne.s32.totalorder %s117, %s118
      %p130 = scmp.eq.s32.totalorder %s24, 1
      %p131 = por %p129, %p130
      %p133 = scmp.ne.s32.totalorder %s118, %s132
      %p134 = scmp.eq.s32.totalorder %s24, 0
      %p135 = por %p133, %p134
      %s136 = ssub.s32 %s18, %s25
      %p137 = scmp.eq.s32.totalorder %s136, 0
      %s139 = sadd.s32 %s138, 1
      %s140 = scalar_select %p137, %s138, %s139
      %p143 = pneg %p137
      %p144 = scmp.eq.s32.totalorder %s18, 1
      %p145 = por %p143, %p144
      %p146 = scmp.ne.s32.totalorder %s138, %s141
      %p147 = scmp.eq.s32.totalorder %s18, 0
      %p148 = por %p146, %p147
      %p149 = scmp.ne.s32.totalorder %s138, %s141
      %p150 = scmp.eq.s32.totalorder %s23, 1
      %p151 = por %p149, %p150
      %p152 = scmp.ne.s32.totalorder %s141, %s142
      %p153 = scmp.eq.s32.totalorder %s23, 0
      %p154 = por %p152, %p153
      %p155 = scmp.ne.s32.totalorder %s141, %s142
      %p156 = scmp.eq.s32.totalorder %s24, 1
      %p157 = por %p155, %p156
      %p159 = scmp.ne.s32.totalorder %s142, %s158
      %p160 = scmp.eq.s32.totalorder %s24, 0
      %p161 = por %p159, %p160
      %p162 = scmp.le.s32.totalorder 1, %s18
      %p163 = scmp.lt.s32.totalorder %s18, 3
      %p164 = pnand %p162, %p163
      %p165 = pneg %p164
      // Predicated region
      $region9: #{tpu_custom_call.1} parent=5 // pred_check
        _
      $region10: #{tpu_custom_call.1} parent=5 // pred_check_branch
        %167 = sbr.rel (%p164) target = $region12
      $region11: #{tpu_custom_call.1} parent=5 // pred_region
        %s168 = ssub.s32 %s18, 1
        // Predicated region
        $region13: #{tpu_custom_call.1} parent=11 // pred_check
          %p169 = pneg %p65
        $region14: #{tpu_custom_call.1} parent=11 // pred_check_branch
          %171 = sbr.rel (%p169) target = $region16
        $region15: #{tpu_custom_call.1} parent=11 // pred_region
          %173 = vsyncadd [#allocation6], 0
          %s174 = sshll.u32 %s1, 4
          %s175 = int_to_ptr.hbm [resolvable:$true] %s174
          %s176 = sshll.u32 [#allocation5], 4
          %s177 = int_to_ptr.vmem [resolvable:$true] %s176
          %182 = dma.hbm_to_vmem [thread:$0]  %s175, 18432, %s177, [#allocation6], 128, 128, 8
        $region16: #{tpu_custom_call.1} parent=11 // pred_fallthru
          _
        // Predicated region
        $region17: #{tpu_custom_call.1} parent=11 // pred_check
          %p183 = pneg %p86
        $region18: #{tpu_custom_call.1} parent=11 // pred_check_branch
          %185 = sbr.rel (%p183) target = $region20
        $region19: #{tpu_custom_call.1} parent=11 // pred_region
          %187 = vsyncadd [#allocation6], 0
          %s188 = sshll.u32 %s2, 4
          %s189 = int_to_ptr.hbm [resolvable:$true] %s188
          %s190 = sshll.u32 [#allocation7], 4
          %s191 = int_to_ptr.vmem [resolvable:$true] %s190
          %196 = dma.hbm_to_vmem [thread:$0]  %s189, 18432, %s191, [#allocation6], 128, 128, 8
        $region20: #{tpu_custom_call.1} parent=11 // pred_fallthru
          _
        // Predicated region
        $region21: #{tpu_custom_call.1} parent=11 // pred_check
          %p197 = pneg %p107
        $region22: #{tpu_custom_call.1} parent=11 // pred_check_branch
          %199 = sbr.rel (%p197) target = $region24
        $region23: #{tpu_custom_call.1} parent=11 // pred_region
          _
        $region24: #{tpu_custom_call.1} parent=11 // pred_fallthru
          _
        // Predicated region
        $region25: #{tpu_custom_call.1} parent=11 // pred_check
          %p200 = pneg %p128
        $region26: #{tpu_custom_call.1} parent=11 // pred_check_branch
          %202 = sbr.rel (%p200) target = $region28
        $region27: #{tpu_custom_call.1} parent=11 // pred_region
          _
        $region28: #{tpu_custom_call.1} parent=11 // pred_fallthru
          _
      $region12: #{tpu_custom_call.1} parent=5 // pred_fallthru
        _
      %p203 = scmp.lt.s32.totalorder %s18, 2
      // Predicated region
      $region29: #{tpu_custom_call.1} parent=5 // pred_check
        %p204 = pneg %p203
      $region30: #{tpu_custom_call.1} parent=5 // pred_check_branch
        %206 = sbr.rel (%p204) target = $region32
      $region31: #{tpu_custom_call.1} parent=5 // pred_region
        // Predicated region
        $region33: #{tpu_custom_call.1} parent=31 // pred_check
          %p207 = pneg %p38
        $region34: #{tpu_custom_call.1} parent=31 // pred_check_branch
          %209 = sbr.rel (%p207) target = $region36
        $region35: #{tpu_custom_call.1} parent=31 // pred_region
          %s210 = sand.u32 %s28, 1
          %s211 = scalar_lea.sflag [#allocation3], %s210
          %s212 = sand.u32 %s28, 1
          %s213 = smul.addr %s212, 256
          %s214 = scalar_lea.vmem [#allocation2], %s213
          %216 = vsyncadd %s211, 0
          %s217 = smul.addr %s18, 32
          %s218 = smul.addr %s217, 8
          %s219 = scalar_lea.hbm %s0, %s218
          %s220 = sshll.u32 %s219, 4
          %s221 = int_to_ptr.hbm [resolvable:$true] %s220
          %s222 = sshll.u32 %s214, 4
          %s223 = int_to_ptr.vmem [resolvable:$true] %s222
          %228 = dma.hbm_to_vmem [thread:$0]  %s221, 4096, %s223, %s211, 128, 128, 8
        $region36: #{tpu_custom_call.1} parent=31 // pred_fallthru
          _
      $region32: #{tpu_custom_call.1} parent=5 // pred_fallthru
        _
      %p229 = scmp.le.s32.totalorder 1, %s18
      %p230 = scmp.lt.s32.totalorder %s18, 3
      %p231 = pnand %p229, %p230
      %p232 = pneg %p231
      // Predicated region
      $region37: #{tpu_custom_call.1} parent=5 // pred_check
        _
      $region38: #{tpu_custom_call.1} parent=5 // pred_check_branch
        %234 = sbr.rel (%p231) target = $region40
      $region39: #{tpu_custom_call.1} parent=5 // pred_region
        %s235 = ssub.s32 %s18, 1
        %s236 = sand.u32 %s31, 1
        %s237 = scalar_lea.sflag [#allocation3], %s236
        %s238 = sand.u32 %s31, 1
        %s239 = smul.addr %s238, 256
        %s240 = scalar_lea.vmem [#allocation2], %s239
        // Predicated region
        $region41: #{tpu_custom_call.1} parent=39 // pred_check
          %p241 = pneg %p44
        $region42: #{tpu_custom_call.1} parent=39 // pred_check_branch
          %243 = sbr.rel (%p241) target = $region44
        $region43: #{tpu_custom_call.1} parent=39 // pred_region
          %245 = dma.done %s237, 4096
        $region44: #{tpu_custom_call.1} parent=39 // pred_fallthru
          _
        // Predicated region
        $region45: #{tpu_custom_call.1} parent=39 // pred_check
          %p246 = pneg %p65
        $region46: #{tpu_custom_call.1} parent=39 // pred_check_branch
          %248 = sbr.rel (%p246) target = $region48
        $region47: #{tpu_custom_call.1} parent=39 // pred_region
          %250 = dma.done [#allocation6], 18432
        $region48: #{tpu_custom_call.1} parent=39 // pred_fallthru
          _
        // Predicated region
        $region49: #{tpu_custom_call.1} parent=39 // pred_check
          %p251 = pneg %p86
        $region50: #{tpu_custom_call.1} parent=39 // pred_check_branch
          %253 = sbr.rel (%p251) target = $region52
        $region51: #{tpu_custom_call.1} parent=39 // pred_region
          %255 = dma.done [#allocation6], 18432
        $region52: #{tpu_custom_call.1} parent=39 // pred_fallthru
          _
        %s256 = sand.u32 %s31, 1
        %s257 = scalar_lea.sflag [#allocation3], %s256
        %s258 = sand.u32 %s31, 1
        %s259 = smul.addr %s258, 256
        %s260 = scalar_lea.vmem [#allocation2], %s259
        %p261 = pneg %p44
        %p262 = pneg %p41
        %p263 = pneg %p65
        %p264 = pneg %p62
        %p265 = pneg %p86
        %p266 = pneg %p83
        %p267 = pneg %p107
        %p268 = pneg %p104
        %p269 = pneg %p128
        %p270 = pneg %p125
        %p271 = pneg %p154
        %p272 = pneg %p151
        %s273 = sand.u32 %s141, 1
        %s274 = scalar_lea.sflag [#allocation4], %s273
        %s275 = sand.u32 %s141, 1
        %s276 = smul.addr %s275, 256
        %s277 = scalar_lea.vmem [#allocation8], %s276
        %v278 = vld [vmem:[%s240] sm:$0xff]
        %v279 = vld [vmem:[%s240 + $0x8] sm:$0xff]
        %v280 = vld [vmem:[%s240 + $0x10] sm:$0xff]
        %v281 = vld [vmem:[%s240 + $0x18] sm:$0xff]
        %v282 = vld [vmem:[%s240 + $0x20] sm:$0xff]
        %v283 = vld [vmem:[%s240 + $0x28] sm:$0xff]
        %v284 = vld [vmem:[%s240 + $0x30] sm:$0xff]
        %v285 = vld [vmem:[%s240 + $0x38] sm:$0xff]
        %v286 = vld [vmem:[%s240 + $0x40] sm:$0xff]
        %v287 = vld [vmem:[%s240 + $0x48] sm:$0xff]
        %v288 = vld [vmem:[%s240 + $0x50] sm:$0xff]
        %v289 = vld [vmem:[%s240 + $0x58] sm:$0xff]
        %v290 = vld [vmem:[%s240 + $0x60] sm:$0xff]
        %v291 = vld [vmem:[%s240 + $0x68] sm:$0xff]
        %v292 = vld [vmem:[%s240 + $0x70] sm:$0xff]
        %v293 = vld [vmem:[%s240 + $0x78] sm:$0xff]
        %v294 = vld [vmem:[%s240 + $0x80] sm:$0xff]
        %v295 = vld [vmem:[%s240 + $0x88] sm:$0xff]
        %v296 = vld [vmem:[%s240 + $0x90] sm:$0xff]
        %v297 = vld [vmem:[%s240 + $0x98] sm:$0xff]
        %v298 = vld [vmem:[%s240 + $0xa0] sm:$0xff]
        %v299 = vld [vmem:[%s240 + $0xa8] sm:$0xff]
        %v300 = vld [vmem:[%s240 + $0xb0] sm:$0xff]
        %v301 = vld [vmem:[%s240 + $0xb8] sm:$0xff]
        %v302 = vld [vmem:[%s240 + $0xc0] sm:$0xff]
        %v303 = vld [vmem:[%s240 + $0xc8] sm:$0xff]
        %v304 = vld [vmem:[%s240 + $0xd0] sm:$0xff]
        %v305 = vld [vmem:[%s240 + $0xd8] sm:$0xff]
        %v306 = vld [vmem:[%s240 + $0xe0] sm:$0xff]
        %v307 = vld [vmem:[%s240 + $0xe8] sm:$0xff]
        %v308 = vld [vmem:[%s240 + $0xf0] sm:$0xff]
        %v309 = vld [vmem:[%s240 + $0xf8] sm:$0xff]
        %vm343 = vcmask 1040384
        %v344 = vrot.slane 0.0, 7
        %v345 = vsel %vm343, %v344, %v344
        %v346 = vrot.slane %v278, 7
        %v347 = vrot.slane %v279, 7
        %v348 = vsel %vm343, %v346, %v347
        %v349 = vrot.slane %v280, 7
        %v350 = vrot.slane %v281, 7
        %v351 = vsel %vm343, %v349, %v350
        %v352 = vrot.slane %v282, 7
        %v353 = vrot.slane %v283, 7
        %v354 = vsel %vm343, %v352, %v353
        %v355 = vrot.slane %v284, 7
        %v356 = vrot.slane %v285, 7
        %v357 = vsel %vm343, %v355, %v356
        %v358 = vrot.slane %v286, 7
        %v359 = vrot.slane %v287, 7
        %v360 = vsel %vm343, %v358, %v359
        %v361 = vrot.slane %v288, 7
        %v362 = vrot.slane %v289, 7
        %v363 = vsel %vm343, %v361, %v362
        %v364 = vrot.slane %v290, 7
        %v365 = vrot.slane %v291, 7
        %v366 = vsel %vm343, %v364, %v365
        %v367 = vrot.slane %v292, 7
        %v368 = vrot.slane %v293, 7
        %v369 = vsel %vm343, %v367, %v368
        %v370 = vrot.slane %v294, 7
        %v371 = vrot.slane %v295, 7
        %v372 = vsel %vm343, %v370, %v371
        %v373 = vrot.slane %v296, 7
        %v374 = vrot.slane %v297, 7
        %v375 = vsel %vm343, %v373, %v374
        %v376 = vrot.slane %v298, 7
        %v377 = vrot.slane %v299, 7
        %v378 = vsel %vm343, %v376, %v377
        %v379 = vrot.slane %v300, 7
        %v380 = vrot.slane %v301, 7
        %v381 = vsel %vm343, %v379, %v380
        %v382 = vrot.slane %v302, 7
        %v383 = vrot.slane %v303, 7
        %v384 = vsel %vm343, %v382, %v383
        %v385 = vrot.slane %v304, 7
        %v386 = vrot.slane %v305, 7
        %v387 = vsel %vm343, %v385, %v386
        %v388 = vrot.slane %v306, 7
        %v389 = vrot.slane %v307, 7
        %v390 = vsel %vm343, %v388, %v389
        %v391 = vrot.slane %v308, 7
        %v392 = vrot.slane %v309, 7
        %v393 = vsel %vm343, %v391, %v392
        %v444 = vsel %vm343, 0.0, %v344
        %v445 = vsel %vm343, 0.0, %v346
        %v446 = vsel %vm343, 0.0, %v349
        %v447 = vsel %vm343, 0.0, %v352
        %v448 = vsel %vm343, 0.0, %v355
        %v449 = vsel %vm343, 0.0, %v358
        %v450 = vsel %vm343, 0.0, %v361
        %v451 = vsel %vm343, 0.0, %v364
        %v452 = vsel %vm343, 0.0, %v367
        %v453 = vsel %vm343, 0.0, %v370
        %v454 = vsel %vm343, 0.0, %v373
        %v455 = vsel %vm343, 0.0, %v376
        %v456 = vsel %vm343, 0.0, %v379
        %v457 = vsel %vm343, 0.0, %v382
        %v458 = vsel %vm343, 0.0, %v385
        %v459 = vsel %vm343, 0.0, %v388
        %v460 = vsel %vm343, 0.0, %v391
        %v461 = vsel %vm343, %v344, 0.0
        %v462 = vsel %vm343, %v347, 0.0
        %v463 = vsel %vm343, %v350, 0.0
        %v464 = vsel %vm343, %v353, 0.0
        %v465 = vsel %vm343, %v356, 0.0
        %v466 = vsel %vm343, %v359, 0.0
        %v467 = vsel %vm343, %v362, 0.0
        %v468 = vsel %vm343, %v365, 0.0
        %v469 = vsel %vm343, %v368, 0.0
        %v470 = vsel %vm343, %v371, 0.0
        %v471 = vsel %vm343, %v374, 0.0
        %v472 = vsel %vm343, %v377, 0.0
        %v473 = vsel %vm343, %v380, 0.0
        %v474 = vsel %vm343, %v383, 0.0
        %v475 = vsel %vm343, %v386, 0.0
        %v476 = vsel %vm343, %v389, 0.0
        %v477 = vsel %vm343, %v392, 0.0
        %vm510 = vcmask 1046528
        %v511 = vrot.slane %v444, 1
        %v512 = vrot.slane %v345, 1
        %v513 = vsel %vm510, %v511, %v512
        %v514 = vrot.slane %v461, 1
        %v515 = vsel %vm510, %v512, %v514
        %v516 = vrot.slane %v445, 1
        %v517 = vrot.slane %v348, 1
        %v518 = vsel %vm510, %v516, %v517
        %v519 = vrot.slane %v462, 1
        %v520 = vsel %vm510, %v517, %v519
        %v521 = vrot.slane %v446, 1
        %v522 = vrot.slane %v351, 1
        %v523 = vsel %vm510, %v521, %v522
        %v524 = vrot.slane %v463, 1
        %v525 = vsel %vm510, %v522, %v524
        %v526 = vrot.slane %v447, 1
        %v527 = vrot.slane %v354, 1
        %v528 = vsel %vm510, %v526, %v527
        %v529 = vrot.slane %v464, 1
        %v530 = vsel %vm510, %v527, %v529
        %v531 = vrot.slane %v448, 1
        %v532 = vrot.slane %v357, 1
        %v533 = vsel %vm510, %v531, %v532
        %v534 = vrot.slane %v465, 1
        %v535 = vsel %vm510, %v532, %v534
        %v536 = vrot.slane %v449, 1
        %v537 = vrot.slane %v360, 1
        %v538 = vsel %vm510, %v536, %v537
        %v539 = vrot.slane %v466, 1
        %v540 = vsel %vm510, %v537, %v539
        %v541 = vrot.slane %v450, 1
        %v542 = vrot.slane %v363, 1
        %v543 = vsel %vm510, %v541, %v542
        %v544 = vrot.slane %v467, 1
        %v545 = vsel %vm510, %v542, %v544
        %v546 = vrot.slane %v451, 1
        %v547 = vrot.slane %v366, 1
        %v548 = vsel %vm510, %v546, %v547
        %v549 = vrot.slane %v468, 1
        %v550 = vsel %vm510, %v547, %v549
        %v551 = vrot.slane %v452, 1
        %v552 = vrot.slane %v369, 1
        %v553 = vsel %vm510, %v551, %v552
        %v554 = vrot.slane %v469, 1
        %v555 = vsel %vm510, %v552, %v554
        %v556 = vrot.slane %v453, 1
        %v557 = vrot.slane %v372, 1
        %v558 = vsel %vm510, %v556, %v557
        %v559 = vrot.slane %v470, 1
        %v560 = vsel %vm510, %v557, %v559
        %v561 = vrot.slane %v454, 1
        %v562 = vrot.slane %v375, 1
        %v563 = vsel %vm510, %v561, %v562
        %v564 = vrot.slane %v471, 1
        %v565 = vsel %vm510, %v562, %v564
        %v566 = vrot.slane %v455, 1
        %v567 = vrot.slane %v378, 1
        %v568 = vsel %vm510, %v566, %v567
        %v569 = vrot.slane %v472, 1
        %v570 = vsel %vm510, %v567, %v569
        %v571 = vrot.slane %v456, 1
        %v572 = vrot.slane %v381, 1
        %v573 = vsel %vm510, %v571, %v572
        %v574 = vrot.slane %v473, 1
        %v575 = vsel %vm510, %v572, %v574
        %v576 = vrot.slane %v457, 1
        %v577 = vrot.slane %v384, 1
        %v578 = vsel %vm510, %v576, %v577
        %v579 = vrot.slane %v474, 1
        %v580 = vsel %vm510, %v577, %v579
        %v581 = vrot.slane %v458, 1
        %v582 = vrot.slane %v387, 1
        %v583 = vsel %vm510, %v581, %v582
        %v584 = vrot.slane %v475, 1
        %v585 = vsel %vm510, %v582, %v584
        %v586 = vrot.slane %v459, 1
        %v587 = vrot.slane %v390, 1
        %v588 = vsel %vm510, %v586, %v587
        %v589 = vrot.slane %v476, 1
        %v590 = vsel %vm510, %v587, %v589
        %vm623 = vcmask 1045504
        %v624 = vrot.slane %v444, 2
        %v625 = vrot.slane %v345, 2
        %v626 = vsel %vm623, %v624, %v625
        %v627 = vrot.slane %v461, 2
        %v628 = vsel %vm623, %v625, %v627
        %v629 = vrot.slane %v445, 2
        %v630 = vrot.slane %v348, 2
        %v631 = vsel %vm623, %v629, %v630
        %v632 = vrot.slane %v462, 2
        %v633 = vsel %vm623, %v630, %v632
        %v634 = vrot.slane %v446, 2
        %v635 = vrot.slane %v351, 2
        %v636 = vsel %vm623, %v634, %v635
        %v637 = vrot.slane %v463, 2
        %v638 = vsel %vm623, %v635, %v637
        %v639 = vrot.slane %v447, 2
        %v640 = vrot.slane %v354, 2
        %v641 = vsel %vm623, %v639, %v640
        %v642 = vrot.slane %v464, 2
        %v643 = vsel %vm623, %v640, %v642
        %v644 = vrot.slane %v448, 2
        %v645 = vrot.slane %v357, 2
        %v646 = vsel %vm623, %v644, %v645
        %v647 = vrot.slane %v465, 2
        %v648 = vsel %vm623, %v645, %v647
        %v649 = vrot.slane %v449, 2
        %v650 = vrot.slane %v360, 2
        %v651 = vsel %vm623, %v649, %v650
        %v652 = vrot.slane %v466, 2
        %v653 = vsel %vm623, %v650, %v652
        %v654 = vrot.slane %v450, 2
        %v655 = vrot.slane %v363, 2
        %v656 = vsel %vm623, %v654, %v655
        %v657 = vrot.slane %v467, 2
        %v658 = vsel %vm623, %v655, %v657
        %v659 = vrot.slane %v451, 2
        %v660 = vrot.slane %v366, 2
        %v661 = vsel %vm623, %v659, %v660
        %v662 = vrot.slane %v468, 2
        %v663 = vsel %vm623, %v660, %v662
        %v664 = vrot.slane %v452, 2
        %v665 = vrot.slane %v369, 2
        %v666 = vsel %vm623, %v664, %v665
        %v667 = vrot.slane %v469, 2
        %v668 = vsel %vm623, %v665, %v667
        %v669 = vrot.slane %v453, 2
        %v670 = vrot.slane %v372, 2
        %v671 = vsel %vm623, %v669, %v670
        %v672 = vrot.slane %v470, 2
        %v673 = vsel %vm623, %v670, %v672
        %v674 = vrot.slane %v454, 2
        %v675 = vrot.slane %v375, 2
        %v676 = vsel %vm623, %v674, %v675
        %v677 = vrot.slane %v471, 2
        %v678 = vsel %vm623, %v675, %v677
        %v679 = vrot.slane %v455, 2
        %v680 = vrot.slane %v378, 2
        %v681 = vsel %vm623, %v679, %v680
        %v682 = vrot.slane %v472, 2
        %v683 = vsel %vm623, %v680, %v682
        %v684 = vrot.slane %v456, 2
        %v685 = vrot.slane %v381, 2
        %v686 = vsel %vm623, %v684, %v685
        %v687 = vrot.slane %v473, 2
        %v688 = vsel %vm623, %v685, %v687
        %v689 = vrot.slane %v457, 2
        %v690 = vrot.slane %v384, 2
        %v691 = vsel %vm623, %v689, %v690
        %v692 = vrot.slane %v474, 2
        %v693 = vsel %vm623, %v690, %v692
        %v694 = vrot.slane %v458, 2
        %v695 = vrot.slane %v387, 2
        %v696 = vsel %vm623, %v694, %v695
        %v697 = vrot.slane %v475, 2
        %v698 = vsel %vm623, %v695, %v697
        %v699 = vrot.slane %v459, 2
        %v700 = vrot.slane %v390, 2
        %v701 = vsel %vm623, %v699, %v700
        %v702 = vrot.slane %v476, 2
        %v703 = vsel %vm623, %v700, %v702
        %v738 = vrot.slane %v460, 1
        %v739 = vrot.slane %v393, 1
        %v740 = vsel %vm510, %v738, %v739
        %v741 = vrot.slane %v477, 1
        %v742 = vsel %vm510, %v739, %v741
        %v745 = vrot.slane %v460, 2
        %v746 = vrot.slane %v393, 2
        %v747 = vsel %vm623, %v745, %v746
        %v748 = vrot.slane %v477, 2
        %v749 = vsel %vm623, %v746, %v748
        %v752 = vld [vmem:[#allocation5] sm:$0xff]
        %v753 = vld [vmem:[#allocation5 + $0x8] sm:$0xff]
        %v754 = vld [vmem:[#allocation5 + $0x10] sm:$0xff]
        %v755 = vld [vmem:[#allocation5 + $0x18] sm:$0xff]
        %v756 = vld [vmem:[#allocation5 + $0x20] sm:$0xff]
        %v757 = vld [vmem:[#allocation5 + $0x28] sm:$0xff]
        %v758 = vld [vmem:[#allocation5 + $0x30] sm:$0xff]
        %v759 = vld [vmem:[#allocation5 + $0x38] sm:$0xff]
        %v760 = vld [vmem:[#allocation5 + $0x40] sm:$0xff]
        %v761 = vld [vmem:[#allocation5 + $0x48] sm:$0xff]
        %v762 = vld [vmem:[#allocation5 + $0x50] sm:$0xff]
        %v763 = vld [vmem:[#allocation5 + $0x58] sm:$0xff]
        %v764 = vld [vmem:[#allocation5 + $0x60] sm:$0xff]
        %v765 = vld [vmem:[#allocation5 + $0x68] sm:$0xff]
        %v766 = vld [vmem:[#allocation5 + $0x70] sm:$0xff]
        %v767 = vld [vmem:[#allocation5 + $0x78] sm:$0xff]
        %v768 = vld [vmem:[#allocation5 + $0x80] sm:$0xff]
        %v769 = vld [vmem:[#allocation5 + $0x88] sm:$0xff]
        %v770 = vld [vmem:[#allocation5 + $0x90] sm:$0xff]
        %v771 = vld [vmem:[#allocation5 + $0x98] sm:$0xff]
        %v772 = vld [vmem:[#allocation5 + $0xa0] sm:$0xff]
        %v773 = vld [vmem:[#allocation5 + $0xa8] sm:$0xff]
        %v774 = vld [vmem:[#allocation5 + $0xb0] sm:$0xff]
        %v775 = vld [vmem:[#allocation5 + $0xb8] sm:$0xff]
        %v776 = vld [vmem:[#allocation5 + $0xc0] sm:$0xff]
        %v777 = vld [vmem:[#allocation5 + $0xc8] sm:$0xff]
        %v778 = vld [vmem:[#allocation5 + $0xd0] sm:$0xff]
        %v779 = vld [vmem:[#allocation5 + $0xd8] sm:$0xff]
        %v780 = vld [vmem:[#allocation5 + $0xe0] sm:$0xff]
        %v781 = vld [vmem:[#allocation5 + $0xe8] sm:$0xff]
        %v782 = vld [vmem:[#allocation5 + $0xf0] sm:$0xff]
        %v783 = vld [vmem:[#allocation5 + $0xf8] sm:$0xff]
        %v784 = vld [vmem:[#allocation5 + $0x100] sm:$0xff]
        %v785 = vld [vmem:[#allocation5 + $0x108] sm:$0xff]
        %v786 = vld [vmem:[#allocation5 + $0x110] sm:$0xff]
        %v787 = vld [vmem:[#allocation5 + $0x118] sm:$0xff]
        %v788 = vld [vmem:[#allocation5 + $0x120] sm:$0xff]
        %v789 = vld [vmem:[#allocation5 + $0x128] sm:$0xff]
        %v790 = vld [vmem:[#allocation5 + $0x130] sm:$0xff]
        %v791 = vld [vmem:[#allocation5 + $0x138] sm:$0xff]
        %v792 = vld [vmem:[#allocation5 + $0x140] sm:$0xff]
        %v793 = vld [vmem:[#allocation5 + $0x148] sm:$0xff]
        %v794 = vld [vmem:[#allocation5 + $0x150] sm:$0xff]
        %v795 = vld [vmem:[#allocation5 + $0x158] sm:$0xff]
        %v796 = vld [vmem:[#allocation5 + $0x160] sm:$0xff]
        %v797 = vld [vmem:[#allocation5 + $0x168] sm:$0xff]
        %v798 = vld [vmem:[#allocation5 + $0x170] sm:$0xff]
        %v799 = vld [vmem:[#allocation5 + $0x178] sm:$0xff]
        %v800 = vld [vmem:[#allocation5 + $0x180] sm:$0xff]
        %v801 = vld [vmem:[#allocation5 + $0x188] sm:$0xff]
        %v802 = vld [vmem:[#allocation5 + $0x190] sm:$0xff]
        %v803 = vld [vmem:[#allocation5 + $0x198] sm:$0xff]
        %v804 = vld [vmem:[#allocation5 + $0x1a0] sm:$0xff]
        %v805 = vld [vmem:[#allocation5 + $0x1a8] sm:$0xff]
        %v806 = vld [vmem:[#allocation5 + $0x1b0] sm:$0xff]
        %v807 = vld [vmem:[#allocation5 + $0x1b8] sm:$0xff]
        %v808 = vld [vmem:[#allocation5 + $0x1c0] sm:$0xff]
        %v809 = vld [vmem:[#allocation5 + $0x1c8] sm:$0xff]
        %v810 = vld [vmem:[#allocation5 + $0x1d0] sm:$0xff]
        %v811 = vld [vmem:[#allocation5 + $0x1d8] sm:$0xff]
        %v812 = vld [vmem:[#allocation5 + $0x1e0] sm:$0xff]
        %v813 = vld [vmem:[#allocation5 + $0x1e8] sm:$0xff]
        %v814 = vld [vmem:[#allocation5 + $0x1f0] sm:$0xff]
        %v815 = vld [vmem:[#allocation5 + $0x1f8] sm:$0xff]
        %v816 = vld [vmem:[#allocation5 + $0x200] sm:$0xff]
        %v817 = vld [vmem:[#allocation5 + $0x208] sm:$0xff]
        %v818 = vld [vmem:[#allocation5 + $0x210] sm:$0xff]
        %v819 = vld [vmem:[#allocation5 + $0x218] sm:$0xff]
        %v820 = vld [vmem:[#allocation5 + $0x220] sm:$0xff]
        %v821 = vld [vmem:[#allocation5 + $0x228] sm:$0xff]
        %v822 = vld [vmem:[#allocation5 + $0x230] sm:$0xff]
        %v823 = vld [vmem:[#allocation5 + $0x238] sm:$0xff]
        %v824 = vld [vmem:[#allocation5 + $0x240] sm:$0xff]
        %v825 = vld [vmem:[#allocation5 + $0x248] sm:$0xff]
        %v826 = vld [vmem:[#allocation5 + $0x250] sm:$0xff]
        %v827 = vld [vmem:[#allocation5 + $0x258] sm:$0xff]
        %v828 = vld [vmem:[#allocation5 + $0x260] sm:$0xff]
        %v829 = vld [vmem:[#allocation5 + $0x268] sm:$0xff]
        %v830 = vld [vmem:[#allocation5 + $0x270] sm:$0xff]
        %v831 = vld [vmem:[#allocation5 + $0x278] sm:$0xff]
        %v832 = vld [vmem:[#allocation5 + $0x280] sm:$0xff]
        %v833 = vld [vmem:[#allocation5 + $0x288] sm:$0xff]
        %v834 = vld [vmem:[#allocation5 + $0x290] sm:$0xff]
        %v835 = vld [vmem:[#allocation5 + $0x298] sm:$0xff]
        %v836 = vld [vmem:[#allocation5 + $0x2a0] sm:$0xff]
        %v837 = vld [vmem:[#allocation5 + $0x2a8] sm:$0xff]
        %v838 = vld [vmem:[#allocation5 + $0x2b0] sm:$0xff]
        %v839 = vld [vmem:[#allocation5 + $0x2b8] sm:$0xff]
        %v840 = vld [vmem:[#allocation5 + $0x2c0] sm:$0xff]
        %v841 = vld [vmem:[#allocation5 + $0x2c8] sm:$0xff]
        %v842 = vld [vmem:[#allocation5 + $0x2d0] sm:$0xff]
        %v843 = vld [vmem:[#allocation5 + $0x2d8] sm:$0xff]
        %v844 = vld [vmem:[#allocation5 + $0x2e0] sm:$0xff]
        %v845 = vld [vmem:[#allocation5 + $0x2e8] sm:$0xff]
        %v846 = vld [vmem:[#allocation5 + $0x2f0] sm:$0xff]
        %v847 = vld [vmem:[#allocation5 + $0x2f8] sm:$0xff]
        %v848 = vld [vmem:[#allocation5 + $0x300] sm:$0xff]
        %v849 = vld [vmem:[#allocation5 + $0x308] sm:$0xff]
        %v850 = vld [vmem:[#allocation5 + $0x310] sm:$0xff]
        %v851 = vld [vmem:[#allocation5 + $0x318] sm:$0xff]
        %v852 = vld [vmem:[#allocation5 + $0x320] sm:$0xff]
        %v853 = vld [vmem:[#allocation5 + $0x328] sm:$0xff]
        %v854 = vld [vmem:[#allocation5 + $0x330] sm:$0xff]
        %v855 = vld [vmem:[#allocation5 + $0x338] sm:$0xff]
        %v856 = vld [vmem:[#allocation5 + $0x340] sm:$0xff]
        %v857 = vld [vmem:[#allocation5 + $0x348] sm:$0xff]
        %v858 = vld [vmem:[#allocation5 + $0x350] sm:$0xff]
        %v859 = vld [vmem:[#allocation5 + $0x358] sm:$0xff]
        %v860 = vld [vmem:[#allocation5 + $0x360] sm:$0xff]
        %v861 = vld [vmem:[#allocation5 + $0x368] sm:$0xff]
        %v862 = vld [vmem:[#allocation5 + $0x370] sm:$0xff]
        %v863 = vld [vmem:[#allocation5 + $0x378] sm:$0xff]
        %v864 = vld [vmem:[#allocation5 + $0x380] sm:$0xff]
        %v865 = vld [vmem:[#allocation5 + $0x388] sm:$0xff]
        %v866 = vld [vmem:[#allocation5 + $0x390] sm:$0xff]
        %v867 = vld [vmem:[#allocation5 + $0x398] sm:$0xff]
        %v868 = vld [vmem:[#allocation5 + $0x3a0] sm:$0xff]
        %v869 = vld [vmem:[#allocation5 + $0x3a8] sm:$0xff]
        %v870 = vld [vmem:[#allocation5 + $0x3b0] sm:$0xff]
        %v871 = vld [vmem:[#allocation5 + $0x3b8] sm:$0xff]
        %v872 = vld [vmem:[#allocation5 + $0x3c0] sm:$0xff]
        %v873 = vld [vmem:[#allocation5 + $0x3c8] sm:$0xff]
        %v874 = vld [vmem:[#allocation5 + $0x3d0] sm:$0xff]
        %v875 = vld [vmem:[#allocation5 + $0x3d8] sm:$0xff]
        %v876 = vld [vmem:[#allocation5 + $0x3e0] sm:$0xff]
        %v877 = vld [vmem:[#allocation5 + $0x3e8] sm:$0xff]
        %v878 = vld [vmem:[#allocation5 + $0x3f0] sm:$0xff]
        %v879 = vld [vmem:[#allocation5 + $0x3f8] sm:$0xff]
        %v880 = vld [vmem:[#allocation5 + $0x400] sm:$0xff]
        %v881 = vld [vmem:[#allocation5 + $0x408] sm:$0xff]
        %v882 = vld [vmem:[#allocation5 + $0x410] sm:$0xff]
        %v883 = vld [vmem:[#allocation5 + $0x418] sm:$0xff]
        %v884 = vld [vmem:[#allocation5 + $0x420] sm:$0xff]
        %v885 = vld [vmem:[#allocation5 + $0x428] sm:$0xff]
        %v886 = vld [vmem:[#allocation5 + $0x430] sm:$0xff]
        %v887 = vld [vmem:[#allocation5 + $0x438] sm:$0xff]
        %v888 = vld [vmem:[#allocation5 + $0x440] sm:$0xff]
        %v889 = vld [vmem:[#allocation5 + $0x448] sm:$0xff]
        %v890 = vld [vmem:[#allocation5 + $0x450] sm:$0xff]
        %v891 = vld [vmem:[#allocation5 + $0x458] sm:$0xff]
        %v892 = vld [vmem:[#allocation5 + $0x460] sm:$0xff]
        %v893 = vld [vmem:[#allocation5 + $0x468] sm:$0xff]
        %v894 = vld [vmem:[#allocation5 + $0x470] sm:$0xff]
        %v895 = vld [vmem:[#allocation5 + $0x478] sm:$0xff]
        %v896 = vld [vmem:[%s3] sm:$0x1]
        %v898 = vperm.slane %v896, 0
        %900 = vmatpush.msra.mxu0 %v767
        %901 = vmatpush.msra.mxu0 %v766
        %902 = vmatpush.msra.mxu0 %v765
        %903 = vmatpush.msra.mxu0 %v764
        %904 = vmatpush.msra.mxu0 %v763
        %905 = vmatpush.msra.mxu0 %v762
        %906 = vmatpush.msra.mxu0 %v761
        %907 = vmatpush.msra.mxu0 %v760
        %908 = vmatpush.msra.mxu0 %v759
        %909 = vmatpush.msra.mxu0 %v758
        %910 = vmatpush.msra.mxu0 %v757
        %911 = vmatpush.msra.mxu0 %v756
        %912 = vmatpush.msra.mxu0 %v755
        %913 = vmatpush.msra.mxu0 %v754
        %914 = vmatpush.msra.mxu0 %v753
        %915 = vmatpush.msra.mxu0 %v752
        %916 = vmatmul.f32.gmra.mxu0 %v444
        %v917 = vpop.f32.mrf.mxu0
        %v918 = vadd.f32 %v898, %v917
        %919 = vmatmul.f32.gmra.mxu0 %v345
        %v920 = vpop.f32.mrf.mxu0
        %v921 = vadd.f32 %v898, %v920
        %922 = vmatmul.f32.gmra.mxu0 %v445
        %v923 = vpop.f32.mrf.mxu0
        %v924 = vadd.f32 %v898, %v923
        %925 = vmatmul.f32.gmra.mxu0 %v348
        %v926 = vpop.f32.mrf.mxu0
        %v927 = vadd.f32 %v898, %v926
        %928 = vmatmul.f32.gmra.mxu0 %v446
        %v929 = vpop.f32.mrf.mxu0
        %v930 = vadd.f32 %v898, %v929
        %931 = vmatmul.f32.gmra.mxu0 %v351
        %v932 = vpop.f32.mrf.mxu0
        %v933 = vadd.f32 %v898, %v932
        %934 = vmatmul.f32.gmra.mxu0 %v447
        %v935 = vpop.f32.mrf.mxu0
        %v936 = vadd.f32 %v898, %v935
        %937 = vmatmul.f32.gmra.mxu0 %v354
        %v938 = vpop.f32.mrf.mxu0
        %v939 = vadd.f32 %v898, %v938
        %940 = vmatmul.f32.gmra.mxu0 %v448
        %v941 = vpop.f32.mrf.mxu0
        %v942 = vadd.f32 %v898, %v941
        %943 = vmatmul.f32.gmra.mxu0 %v357
        %v944 = vpop.f32.mrf.mxu0
        %v945 = vadd.f32 %v898, %v944
        %946 = vmatmul.f32.gmra.mxu0 %v449
        %v947 = vpop.f32.mrf.mxu0
        %v948 = vadd.f32 %v898, %v947
        %949 = vmatmul.f32.gmra.mxu0 %v360
        %v950 = vpop.f32.mrf.mxu0
        %v951 = vadd.f32 %v898, %v950
        %952 = vmatmul.f32.gmra.mxu0 %v450
        %v953 = vpop.f32.mrf.mxu0
        %v954 = vadd.f32 %v898, %v953
        %955 = vmatmul.f32.gmra.mxu0 %v363
        %v956 = vpop.f32.mrf.mxu0
        %v957 = vadd.f32 %v898, %v956
        %958 = vmatmul.f32.gmra.mxu0 %v451
        %v959 = vpop.f32.mrf.mxu0
        %v960 = vadd.f32 %v898, %v959
        %961 = vmatmul.f32.gmra.mxu0 %v366
        %v962 = vpop.f32.mrf.mxu0
        %v963 = vadd.f32 %v898, %v962
        %964 = vmatmul.f32.gmra.mxu0 %v452
        %v965 = vpop.f32.mrf.mxu0
        %v966 = vadd.f32 %v898, %v965
        %967 = vmatmul.f32.gmra.mxu0 %v369
        %v968 = vpop.f32.mrf.mxu0
        %v969 = vadd.f32 %v898, %v968
        %970 = vmatmul.f32.gmra.mxu0 %v453
        %v971 = vpop.f32.mrf.mxu0
        %v972 = vadd.f32 %v898, %v971
        %973 = vmatmul.f32.gmra.mxu0 %v372
        %v974 = vpop.f32.mrf.mxu0
        %v975 = vadd.f32 %v898, %v974
        %976 = vmatmul.f32.gmra.mxu0 %v454
        %v977 = vpop.f32.mrf.mxu0
        %v978 = vadd.f32 %v898, %v977
        %979 = vmatmul.f32.gmra.mxu0 %v375
        %v980 = vpop.f32.mrf.mxu0
        %v981 = vadd.f32 %v898, %v980
        %982 = vmatmul.f32.gmra.mxu0 %v455
        %v983 = vpop.f32.mrf.mxu0
        %v984 = vadd.f32 %v898, %v983
        %985 = vmatmul.f32.gmra.mxu0 %v378
        %v986 = vpop.f32.mrf.mxu0
        %v987 = vadd.f32 %v898, %v986
        %988 = vmatmul.f32.gmra.mxu0 %v456
        %v989 = vpop.f32.mrf.mxu0
        %v990 = vadd.f32 %v898, %v989
        %991 = vmatmul.f32.gmra.mxu0 %v381
        %v992 = vpop.f32.mrf.mxu0
        %v993 = vadd.f32 %v898, %v992
        %994 = vmatmul.f32.gmra.mxu0 %v457
        %v995 = vpop.f32.mrf.mxu0
        %v996 = vadd.f32 %v898, %v995
        %997 = vmatmul.f32.gmra.mxu0 %v384
        %v998 = vpop.f32.mrf.mxu0
        %v999 = vadd.f32 %v898, %v998
        %1000 = vmatmul.f32.gmra.mxu0 %v458
        %v1001 = vpop.f32.mrf.mxu0
        %v1002 = vadd.f32 %v898, %v1001
        %1003 = vmatmul.f32.gmra.mxu0 %v387
        %v1004 = vpop.f32.mrf.mxu0
        %v1005 = vadd.f32 %v898, %v1004
        %1006 = vmatmul.f32.gmra.mxu0 %v459
        %v1007 = vpop.f32.mrf.mxu0
        %v1008 = vadd.f32 %v898, %v1007
        %1009 = vmatmul.f32.gmra.mxu0 %v390
        %v1010 = vpop.f32.mrf.mxu0
        %v1011 = vadd.f32 %v898, %v1010
        %1012 = vdwg.mxu0
        %1013 = vmatpush.msra.mxu0 %v783
        %1014 = vmatpush.msra.mxu0 %v782
        %1015 = vmatpush.msra.mxu0 %v781
        %1016 = vmatpush.msra.mxu0 %v780
        %1017 = vmatpush.msra.mxu0 %v779
        %1018 = vmatpush.msra.mxu0 %v778
        %1019 = vmatpush.msra.mxu0 %v777
        %1020 = vmatpush.msra.mxu0 %v776
        %1021 = vmatpush.msra.mxu0 %v775
        %1022 = vmatpush.msra.mxu0 %v774
        %1023 = vmatpush.msra.mxu0 %v773
        %1024 = vmatpush.msra.mxu0 %v772
        %1025 = vmatpush.msra.mxu0 %v771
        %1026 = vmatpush.msra.mxu0 %v770
        %1027 = vmatpush.msra.mxu0 %v769
        %1028 = vmatpush.msra.mxu0 %v768
        %1029 = vmatmul.f32.gmra.mxu0 %v513
        %v1030 = vpop.f32.mrf.mxu0
        %v1031 = vadd.f32 %v918, %v1030
        %1032 = vmatmul.f32.gmra.mxu0 %v515
        %v1033 = vpop.f32.mrf.mxu0
        %v1034 = vadd.f32 %v921, %v1033
        %1035 = vmatmul.f32.gmra.mxu0 %v518
        %v1036 = vpop.f32.mrf.mxu0
        %v1037 = vadd.f32 %v924, %v1036
        %1038 = vmatmul.f32.gmra.mxu0 %v520
        %v1039 = vpop.f32.mrf.mxu0
        %v1040 = vadd.f32 %v927, %v1039
        %1041 = vmatmul.f32.gmra.mxu0 %v523
        %v1042 = vpop.f32.mrf.mxu0
        %v1043 = vadd.f32 %v930, %v1042
        %1044 = vmatmul.f32.gmra.mxu0 %v525
        %v1045 = vpop.f32.mrf.mxu0
        %v1046 = vadd.f32 %v933, %v1045
        %1047 = vmatmul.f32.gmra.mxu0 %v528
        %v1048 = vpop.f32.mrf.mxu0
        %v1049 = vadd.f32 %v936, %v1048
        %1050 = vmatmul.f32.gmra.mxu0 %v530
        %v1051 = vpop.f32.mrf.mxu0
        %v1052 = vadd.f32 %v939, %v1051
        %1053 = vmatmul.f32.gmra.mxu0 %v533
        %v1054 = vpop.f32.mrf.mxu0
        %v1055 = vadd.f32 %v942, %v1054
        %1056 = vmatmul.f32.gmra.mxu0 %v535
        %v1057 = vpop.f32.mrf.mxu0
        %v1058 = vadd.f32 %v945, %v1057
        %1059 = vmatmul.f32.gmra.mxu0 %v538
        %v1060 = vpop.f32.mrf.mxu0
        %v1061 = vadd.f32 %v948, %v1060
        %1062 = vmatmul.f32.gmra.mxu0 %v540
        %v1063 = vpop.f32.mrf.mxu0
        %v1064 = vadd.f32 %v951, %v1063
        %1065 = vmatmul.f32.gmra.mxu0 %v543
        %v1066 = vpop.f32.mrf.mxu0
        %v1067 = vadd.f32 %v954, %v1066
        %1068 = vmatmul.f32.gmra.mxu0 %v545
        %v1069 = vpop.f32.mrf.mxu0
        %v1070 = vadd.f32 %v957, %v1069
        %1071 = vmatmul.f32.gmra.mxu0 %v548
        %v1072 = vpop.f32.mrf.mxu0
        %v1073 = vadd.f32 %v960, %v1072
        %1074 = vmatmul.f32.gmra.mxu0 %v550
        %v1075 = vpop.f32.mrf.mxu0
        %v1076 = vadd.f32 %v963, %v1075
        %1077 = vmatmul.f32.gmra.mxu0 %v553
        %v1078 = vpop.f32.mrf.mxu0
        %v1079 = vadd.f32 %v966, %v1078
        %1080 = vmatmul.f32.gmra.mxu0 %v555
        %v1081 = vpop.f32.mrf.mxu0
        %v1082 = vadd.f32 %v969, %v1081
        %1083 = vmatmul.f32.gmra.mxu0 %v558
        %v1084 = vpop.f32.mrf.mxu0
        %v1085 = vadd.f32 %v972, %v1084
        %1086 = vmatmul.f32.gmra.mxu0 %v560
        %v1087 = vpop.f32.mrf.mxu0
        %v1088 = vadd.f32 %v975, %v1087
        %1089 = vmatmul.f32.gmra.mxu0 %v563
        %v1090 = vpop.f32.mrf.mxu0
        %v1091 = vadd.f32 %v978, %v1090
        %1092 = vmatmul.f32.gmra.mxu0 %v565
        %v1093 = vpop.f32.mrf.mxu0
        %v1094 = vadd.f32 %v981, %v1093
        %1095 = vmatmul.f32.gmra.mxu0 %v568
        %v1096 = vpop.f32.mrf.mxu0
        %v1097 = vadd.f32 %v984, %v1096
        %1098 = vmatmul.f32.gmra.mxu0 %v570
        %v1099 = vpop.f32.mrf.mxu0
        %v1100 = vadd.f32 %v987, %v1099
        %1101 = vmatmul.f32.gmra.mxu0 %v573
        %v1102 = vpop.f32.mrf.mxu0
        %v1103 = vadd.f32 %v990, %v1102
        %1104 = vmatmul.f32.gmra.mxu0 %v575
        %v1105 = vpop.f32.mrf.mxu0
        %v1106 = vadd.f32 %v993, %v1105
        %1107 = vmatmul.f32.gmra.mxu0 %v578
        %v1108 = vpop.f32.mrf.mxu0
        %v1109 = vadd.f32 %v996, %v1108
        %1110 = vmatmul.f32.gmra.mxu0 %v580
        %v1111 = vpop.f32.mrf.mxu0
        %v1112 = vadd.f32 %v999, %v1111
        %1113 = vmatmul.f32.gmra.mxu0 %v583
        %v1114 = vpop.f32.mrf.mxu0
        %v1115 = vadd.f32 %v1002, %v1114
        %1116 = vmatmul.f32.gmra.mxu0 %v585
        %v1117 = vpop.f32.mrf.mxu0
        %v1118 = vadd.f32 %v1005, %v1117
        %1119 = vmatmul.f32.gmra.mxu0 %v588
        %v1120 = vpop.f32.mrf.mxu0
        %v1121 = vadd.f32 %v1008, %v1120
        %1122 = vmatmul.f32.gmra.mxu0 %v590
        %v1123 = vpop.f32.mrf.mxu0
        %v1124 = vadd.f32 %v1011, %v1123
        %1125 = vdwg.mxu0
        %1126 = vmatpush.msra.mxu0 %v799
        %1127 = vmatpush.msra.mxu0 %v798
        %1128 = vmatpush.msra.mxu0 %v797
        %1129 = vmatpush.msra.mxu0 %v796
        %1130 = vmatpush.msra.mxu0 %v795
        %1131 = vmatpush.msra.mxu0 %v794
        %1132 = vmatpush.msra.mxu0 %v793
        %1133 = vmatpush.msra.mxu0 %v792
        %1134 = vmatpush.msra.mxu0 %v791
        %1135 = vmatpush.msra.mxu0 %v790
        %1136 = vmatpush.msra.mxu0 %v789
        %1137 = vmatpush.msra.mxu0 %v788
        %1138 = vmatpush.msra.mxu0 %v787
        %1139 = vmatpush.msra.mxu0 %v786
        %1140 = vmatpush.msra.mxu0 %v785
        %1141 = vmatpush.msra.mxu0 %v784
        %1142 = vmatmul.f32.gmra.mxu0 %v626
        %v1143 = vpop.f32.mrf.mxu0
        %v1144 = vadd.f32 %v1031, %v1143
        %1145 = vmatmul.f32.gmra.mxu0 %v628
        %v1146 = vpop.f32.mrf.mxu0
        %v1147 = vadd.f32 %v1034, %v1146
        %1148 = vmatmul.f32.gmra.mxu0 %v631
        %v1149 = vpop.f32.mrf.mxu0
        %v1150 = vadd.f32 %v1037, %v1149
        %1151 = vmatmul.f32.gmra.mxu0 %v633
        %v1152 = vpop.f32.mrf.mxu0
        %v1153 = vadd.f32 %v1040, %v1152
        %1154 = vmatmul.f32.gmra.mxu0 %v636
        %v1155 = vpop.f32.mrf.mxu0
        %v1156 = vadd.f32 %v1043, %v1155
        %1157 = vmatmul.f32.gmra.mxu0 %v638
        %v1158 = vpop.f32.mrf.mxu0
        %v1159 = vadd.f32 %v1046, %v1158
        %1160 = vmatmul.f32.gmra.mxu0 %v641
        %v1161 = vpop.f32.mrf.mxu0
        %v1162 = vadd.f32 %v1049, %v1161
        %1163 = vmatmul.f32.gmra.mxu0 %v643
        %v1164 = vpop.f32.mrf.mxu0
        %v1165 = vadd.f32 %v1052, %v1164
        %1166 = vmatmul.f32.gmra.mxu0 %v646
        %v1167 = vpop.f32.mrf.mxu0
        %v1168 = vadd.f32 %v1055, %v1167
        %1169 = vmatmul.f32.gmra.mxu0 %v648
        %v1170 = vpop.f32.mrf.mxu0
        %v1171 = vadd.f32 %v1058, %v1170
        %1172 = vmatmul.f32.gmra.mxu0 %v651
        %v1173 = vpop.f32.mrf.mxu0
        %v1174 = vadd.f32 %v1061, %v1173
        %1175 = vmatmul.f32.gmra.mxu0 %v653
        %v1176 = vpop.f32.mrf.mxu0
        %v1177 = vadd.f32 %v1064, %v1176
        %1178 = vmatmul.f32.gmra.mxu0 %v656
        %v1179 = vpop.f32.mrf.mxu0
        %v1180 = vadd.f32 %v1067, %v1179
        %1181 = vmatmul.f32.gmra.mxu0 %v658
        %v1182 = vpop.f32.mrf.mxu0
        %v1183 = vadd.f32 %v1070, %v1182
        %1184 = vmatmul.f32.gmra.mxu0 %v661
        %v1185 = vpop.f32.mrf.mxu0
        %v1186 = vadd.f32 %v1073, %v1185
        %1187 = vmatmul.f32.gmra.mxu0 %v663
        %v1188 = vpop.f32.mrf.mxu0
        %v1189 = vadd.f32 %v1076, %v1188
        %1190 = vmatmul.f32.gmra.mxu0 %v666
        %v1191 = vpop.f32.mrf.mxu0
        %v1192 = vadd.f32 %v1079, %v1191
        %1193 = vmatmul.f32.gmra.mxu0 %v668
        %v1194 = vpop.f32.mrf.mxu0
        %v1195 = vadd.f32 %v1082, %v1194
        %1196 = vmatmul.f32.gmra.mxu0 %v671
        %v1197 = vpop.f32.mrf.mxu0
        %v1198 = vadd.f32 %v1085, %v1197
        %1199 = vmatmul.f32.gmra.mxu0 %v673
        %v1200 = vpop.f32.mrf.mxu0
        %v1201 = vadd.f32 %v1088, %v1200
        %1202 = vmatmul.f32.gmra.mxu0 %v676
        %v1203 = vpop.f32.mrf.mxu0
        %v1204 = vadd.f32 %v1091, %v1203
        %1205 = vmatmul.f32.gmra.mxu0 %v678
        %v1206 = vpop.f32.mrf.mxu0
        %v1207 = vadd.f32 %v1094, %v1206
        %1208 = vmatmul.f32.gmra.mxu0 %v681
        %v1209 = vpop.f32.mrf.mxu0
        %v1210 = vadd.f32 %v1097, %v1209
        %1211 = vmatmul.f32.gmra.mxu0 %v683
        %v1212 = vpop.f32.mrf.mxu0
        %v1213 = vadd.f32 %v1100, %v1212
        %1214 = vmatmul.f32.gmra.mxu0 %v686
        %v1215 = vpop.f32.mrf.mxu0
        %v1216 = vadd.f32 %v1103, %v1215
        %1217 = vmatmul.f32.gmra.mxu0 %v688
        %v1218 = vpop.f32.mrf.mxu0
        %v1219 = vadd.f32 %v1106, %v1218
        %1220 = vmatmul.f32.gmra.mxu0 %v691
        %v1221 = vpop.f32.mrf.mxu0
        %v1222 = vadd.f32 %v1109, %v1221
        %1223 = vmatmul.f32.gmra.mxu0 %v693
        %v1224 = vpop.f32.mrf.mxu0
        %v1225 = vadd.f32 %v1112, %v1224
        %1226 = vmatmul.f32.gmra.mxu0 %v696
        %v1227 = vpop.f32.mrf.mxu0
        %v1228 = vadd.f32 %v1115, %v1227
        %1229 = vmatmul.f32.gmra.mxu0 %v698
        %v1230 = vpop.f32.mrf.mxu0
        %v1231 = vadd.f32 %v1118, %v1230
        %1232 = vmatmul.f32.gmra.mxu0 %v701
        %v1233 = vpop.f32.mrf.mxu0
        %v1234 = vadd.f32 %v1121, %v1233
        %1235 = vmatmul.f32.gmra.mxu0 %v703
        %v1236 = vpop.f32.mrf.mxu0
        %v1237 = vadd.f32 %v1124, %v1236
        %1238 = vdwg.mxu0
        %1239 = vmatpush.msra.mxu0 %v815
        %1240 = vmatpush.msra.mxu0 %v814
        %1241 = vmatpush.msra.mxu0 %v813
        %1242 = vmatpush.msra.mxu0 %v812
        %1243 = vmatpush.msra.mxu0 %v811
        %1244 = vmatpush.msra.mxu0 %v810
        %1245 = vmatpush.msra.mxu0 %v809
        %1246 = vmatpush.msra.mxu0 %v808
        %1247 = vmatpush.msra.mxu0 %v807
        %1248 = vmatpush.msra.mxu0 %v806
        %1249 = vmatpush.msra.mxu0 %v805
        %1250 = vmatpush.msra.mxu0 %v804
        %1251 = vmatpush.msra.mxu0 %v803
        %1252 = vmatpush.msra.mxu0 %v802
        %1253 = vmatpush.msra.mxu0 %v801
        %1254 = vmatpush.msra.mxu0 %v800
        %1255 = vmatmul.f32.gmra.mxu0 %v445
        %v1256 = vpop.f32.mrf.mxu0
        %v1257 = vadd.f32 %v1144, %v1256
        %1258 = vmatmul.f32.gmra.mxu0 %v348
        %v1259 = vpop.f32.mrf.mxu0
        %v1260 = vadd.f32 %v1147, %v1259
        %1261 = vmatmul.f32.gmra.mxu0 %v446
        %v1262 = vpop.f32.mrf.mxu0
        %v1263 = vadd.f32 %v1150, %v1262
        %1264 = vmatmul.f32.gmra.mxu0 %v351
        %v1265 = vpop.f32.mrf.mxu0
        %v1266 = vadd.f32 %v1153, %v1265
        %1267 = vmatmul.f32.gmra.mxu0 %v447
        %v1268 = vpop.f32.mrf.mxu0
        %v1269 = vadd.f32 %v1156, %v1268
        %1270 = vmatmul.f32.gmra.mxu0 %v354
        %v1271 = vpop.f32.mrf.mxu0
        %v1272 = vadd.f32 %v1159, %v1271
        %1273 = vmatmul.f32.gmra.mxu0 %v448
        %v1274 = vpop.f32.mrf.mxu0
        %v1275 = vadd.f32 %v1162, %v1274
        %1276 = vmatmul.f32.gmra.mxu0 %v357
        %v1277 = vpop.f32.mrf.mxu0
        %v1278 = vadd.f32 %v1165, %v1277
        %1279 = vmatmul.f32.gmra.mxu0 %v449
        %v1280 = vpop.f32.mrf.mxu0
        %v1281 = vadd.f32 %v1168, %v1280
        %1282 = vmatmul.f32.gmra.mxu0 %v360
        %v1283 = vpop.f32.mrf.mxu0
        %v1284 = vadd.f32 %v1171, %v1283
        %1285 = vmatmul.f32.gmra.mxu0 %v450
        %v1286 = vpop.f32.mrf.mxu0
        %v1287 = vadd.f32 %v1174, %v1286
        %1288 = vmatmul.f32.gmra.mxu0 %v363
        %v1289 = vpop.f32.mrf.mxu0
        %v1290 = vadd.f32 %v1177, %v1289
        %1291 = vmatmul.f32.gmra.mxu0 %v451
        %v1292 = vpop.f32.mrf.mxu0
        %v1293 = vadd.f32 %v1180, %v1292
        %1294 = vmatmul.f32.gmra.mxu0 %v366
        %v1295 = vpop.f32.mrf.mxu0
        %v1296 = vadd.f32 %v1183, %v1295
        %1297 = vmatmul.f32.gmra.mxu0 %v452
        %v1298 = vpop.f32.mrf.mxu0
        %v1299 = vadd.f32 %v1186, %v1298
        %1300 = vmatmul.f32.gmra.mxu0 %v369
        %v1301 = vpop.f32.mrf.mxu0
        %v1302 = vadd.f32 %v1189, %v1301
        %1303 = vmatmul.f32.gmra.mxu0 %v453
        %v1304 = vpop.f32.mrf.mxu0
        %v1305 = vadd.f32 %v1192, %v1304
        %1306 = vmatmul.f32.gmra.mxu0 %v372
        %v1307 = vpop.f32.mrf.mxu0
        %v1308 = vadd.f32 %v1195, %v1307
        %1309 = vmatmul.f32.gmra.mxu0 %v454
        %v1310 = vpop.f32.mrf.mxu0
        %v1311 = vadd.f32 %v1198, %v1310
        %1312 = vmatmul.f32.gmra.mxu0 %v375
        %v1313 = vpop.f32.mrf.mxu0
        %v1314 = vadd.f32 %v1201, %v1313
        %1315 = vmatmul.f32.gmra.mxu0 %v455
        %v1316 = vpop.f32.mrf.mxu0
        %v1317 = vadd.f32 %v1204, %v1316
        %1318 = vmatmul.f32.gmra.mxu0 %v378
        %v1319 = vpop.f32.mrf.mxu0
        %v1320 = vadd.f32 %v1207, %v1319
        %1321 = vmatmul.f32.gmra.mxu0 %v456
        %v1322 = vpop.f32.mrf.mxu0
        %v1323 = vadd.f32 %v1210, %v1322
        %1324 = vmatmul.f32.gmra.mxu0 %v381
        %v1325 = vpop.f32.mrf.mxu0
        %v1326 = vadd.f32 %v1213, %v1325
        %1327 = vmatmul.f32.gmra.mxu0 %v457
        %v1328 = vpop.f32.mrf.mxu0
        %v1329 = vadd.f32 %v1216, %v1328
        %1330 = vmatmul.f32.gmra.mxu0 %v384
        %v1331 = vpop.f32.mrf.mxu0
        %v1332 = vadd.f32 %v1219, %v1331
        %1333 = vmatmul.f32.gmra.mxu0 %v458
        %v1334 = vpop.f32.mrf.mxu0
        %v1335 = vadd.f32 %v1222, %v1334
        %1336 = vmatmul.f32.gmra.mxu0 %v387
        %v1337 = vpop.f32.mrf.mxu0
        %v1338 = vadd.f32 %v1225, %v1337
        %1339 = vmatmul.f32.gmra.mxu0 %v459
        %v1340 = vpop.f32.mrf.mxu0
        %v1341 = vadd.f32 %v1228, %v1340
        %1342 = vmatmul.f32.gmra.mxu0 %v390
        %v1343 = vpop.f32.mrf.mxu0
        %v1344 = vadd.f32 %v1231, %v1343
        %1345 = vmatmul.f32.gmra.mxu0 %v460
        %v1346 = vpop.f32.mrf.mxu0
        %v1347 = vadd.f32 %v1234, %v1346
        %1348 = vmatmul.f32.gmra.mxu0 %v393
        %v1349 = vpop.f32.mrf.mxu0
        %v1350 = vadd.f32 %v1237, %v1349
        %1351 = vdwg.mxu0
        %1352 = vmatpush.msra.mxu0 %v831
        %1353 = vmatpush.msra.mxu0 %v830
        %1354 = vmatpush.msra.mxu0 %v829
        %1355 = vmatpush.msra.mxu0 %v828
        %1356 = vmatpush.msra.mxu0 %v827
        %1357 = vmatpush.msra.mxu0 %v826
        %1358 = vmatpush.msra.mxu0 %v825
        %1359 = vmatpush.msra.mxu0 %v824
        %1360 = vmatpush.msra.mxu0 %v823
        %1361 = vmatpush.msra.mxu0 %v822
        %1362 = vmatpush.msra.mxu0 %v821
        %1363 = vmatpush.msra.mxu0 %v820
        %1364 = vmatpush.msra.mxu0 %v819
        %1365 = vmatpush.msra.mxu0 %v818
        %1366 = vmatpush.msra.mxu0 %v817
        %1367 = vmatpush.msra.mxu0 %v816
        %1368 = vmatmul.f32.gmra.mxu0 %v518
        %v1369 = vpop.f32.mrf.mxu0
        %v1370 = vadd.f32 %v1257, %v1369
        %1371 = vmatmul.f32.gmra.mxu0 %v520
        %v1372 = vpop.f32.mrf.mxu0
        %v1373 = vadd.f32 %v1260, %v1372
        %1374 = vmatmul.f32.gmra.mxu0 %v523
        %v1375 = vpop.f32.mrf.mxu0
        %v1376 = vadd.f32 %v1263, %v1375
        %1377 = vmatmul.f32.gmra.mxu0 %v525
        %v1378 = vpop.f32.mrf.mxu0
        %v1379 = vadd.f32 %v1266, %v1378
        %1380 = vmatmul.f32.gmra.mxu0 %v528
        %v1381 = vpop.f32.mrf.mxu0
        %v1382 = vadd.f32 %v1269, %v1381
        %1383 = vmatmul.f32.gmra.mxu0 %v530
        %v1384 = vpop.f32.mrf.mxu0
        %v1385 = vadd.f32 %v1272, %v1384
        %1386 = vmatmul.f32.gmra.mxu0 %v533
        %v1387 = vpop.f32.mrf.mxu0
        %v1388 = vadd.f32 %v1275, %v1387
        %1389 = vmatmul.f32.gmra.mxu0 %v535
        %v1390 = vpop.f32.mrf.mxu0
        %v1391 = vadd.f32 %v1278, %v1390
        %1392 = vmatmul.f32.gmra.mxu0 %v538
        %v1393 = vpop.f32.mrf.mxu0
        %v1394 = vadd.f32 %v1281, %v1393
        %1395 = vmatmul.f32.gmra.mxu0 %v540
        %v1396 = vpop.f32.mrf.mxu0
        %v1397 = vadd.f32 %v1284, %v1396
        %1398 = vmatmul.f32.gmra.mxu0 %v543
        %v1399 = vpop.f32.mrf.mxu0
        %v1400 = vadd.f32 %v1287, %v1399
        %1401 = vmatmul.f32.gmra.mxu0 %v545
        %v1402 = vpop.f32.mrf.mxu0
        %v1403 = vadd.f32 %v1290, %v1402
        %1404 = vmatmul.f32.gmra.mxu0 %v548
        %v1405 = vpop.f32.mrf.mxu0
        %v1406 = vadd.f32 %v1293, %v1405
        %1407 = vmatmul.f32.gmra.mxu0 %v550
        %v1408 = vpop.f32.mrf.mxu0
        %v1409 = vadd.f32 %v1296, %v1408
        %1410 = vmatmul.f32.gmra.mxu0 %v553
        %v1411 = vpop.f32.mrf.mxu0
        %v1412 = vadd.f32 %v1299, %v1411
        %1413 = vmatmul.f32.gmra.mxu0 %v555
        %v1414 = vpop.f32.mrf.mxu0
        %v1415 = vadd.f32 %v1302, %v1414
        %1416 = vmatmul.f32.gmra.mxu0 %v558
        %v1417 = vpop.f32.mrf.mxu0
        %v1418 = vadd.f32 %v1305, %v1417
        %1419 = vmatmul.f32.gmra.mxu0 %v560
        %v1420 = vpop.f32.mrf.mxu0
        %v1421 = vadd.f32 %v1308, %v1420
        %1422 = vmatmul.f32.gmra.mxu0 %v563
        %v1423 = vpop.f32.mrf.mxu0
        %v1424 = vadd.f32 %v1311, %v1423
        %1425 = vmatmul.f32.gmra.mxu0 %v565
        %v1426 = vpop.f32.mrf.mxu0
        %v1427 = vadd.f32 %v1314, %v1426
        %1428 = vmatmul.f32.gmra.mxu0 %v568
        %v1429 = vpop.f32.mrf.mxu0
        %v1430 = vadd.f32 %v1317, %v1429
        %1431 = vmatmul.f32.gmra.mxu0 %v570
        %v1432 = vpop.f32.mrf.mxu0
        %v1433 = vadd.f32 %v1320, %v1432
        %1434 = vmatmul.f32.gmra.mxu0 %v573
        %v1435 = vpop.f32.mrf.mxu0
        %v1436 = vadd.f32 %v1323, %v1435
        %1437 = vmatmul.f32.gmra.mxu0 %v575
        %v1438 = vpop.f32.mrf.mxu0
        %v1439 = vadd.f32 %v1326, %v1438
        %1440 = vmatmul.f32.gmra.mxu0 %v578
        %v1441 = vpop.f32.mrf.mxu0
        %v1442 = vadd.f32 %v1329, %v1441
        %1443 = vmatmul.f32.gmra.mxu0 %v580
        %v1444 = vpop.f32.mrf.mxu0
        %v1445 = vadd.f32 %v1332, %v1444
        %1446 = vmatmul.f32.gmra.mxu0 %v583
        %v1447 = vpop.f32.mrf.mxu0
        %v1448 = vadd.f32 %v1335, %v1447
        %1449 = vmatmul.f32.gmra.mxu0 %v585
        %v1450 = vpop.f32.mrf.mxu0
        %v1451 = vadd.f32 %v1338, %v1450
        %1452 = vmatmul.f32.gmra.mxu0 %v588
        %v1453 = vpop.f32.mrf.mxu0
        %v1454 = vadd.f32 %v1341, %v1453
        %1455 = vmatmul.f32.gmra.mxu0 %v590
        %v1456 = vpop.f32.mrf.mxu0
        %v1457 = vadd.f32 %v1344, %v1456
        %1458 = vmatmul.f32.gmra.mxu0 %v740
        %v1459 = vpop.f32.mrf.mxu0
        %v1460 = vadd.f32 %v1347, %v1459
        %1461 = vmatmul.f32.gmra.mxu0 %v742
        %v1462 = vpop.f32.mrf.mxu0
        %v1463 = vadd.f32 %v1350, %v1462
        %1464 = vdwg.mxu0
        %1465 = vmatpush.msra.mxu0 %v847
        %1466 = vmatpush.msra.mxu0 %v846
        %1467 = vmatpush.msra.mxu0 %v845
        %1468 = vmatpush.msra.mxu0 %v844
        %1469 = vmatpush.msra.mxu0 %v843
        %1470 = vmatpush.msra.mxu0 %v842
        %1471 = vmatpush.msra.mxu0 %v841
        %1472 = vmatpush.msra.mxu0 %v840
        %1473 = vmatpush.msra.mxu0 %v839
        %1474 = vmatpush.msra.mxu0 %v838
        %1475 = vmatpush.msra.mxu0 %v837
        %1476 = vmatpush.msra.mxu0 %v836
        %1477 = vmatpush.msra.mxu0 %v835
        %1478 = vmatpush.msra.mxu0 %v834
        %1479 = vmatpush.msra.mxu0 %v833
        %1480 = vmatpush.msra.mxu0 %v832
        %1481 = vmatmul.f32.gmra.mxu0 %v631
        %v1482 = vpop.f32.mrf.mxu0
        %v1483 = vadd.f32 %v1370, %v1482
        %1484 = vmatmul.f32.gmra.mxu0 %v633
        %v1485 = vpop.f32.mrf.mxu0
        %v1486 = vadd.f32 %v1373, %v1485
        %1487 = vmatmul.f32.gmra.mxu0 %v636
        %v1488 = vpop.f32.mrf.mxu0
        %v1489 = vadd.f32 %v1376, %v1488
        %1490 = vmatmul.f32.gmra.mxu0 %v638
        %v1491 = vpop.f32.mrf.mxu0
        %v1492 = vadd.f32 %v1379, %v1491
        %1493 = vmatmul.f32.gmra.mxu0 %v641
        %v1494 = vpop.f32.mrf.mxu0
        %v1495 = vadd.f32 %v1382, %v1494
        %1496 = vmatmul.f32.gmra.mxu0 %v643
        %v1497 = vpop.f32.mrf.mxu0
        %v1498 = vadd.f32 %v1385, %v1497
        %1499 = vmatmul.f32.gmra.mxu0 %v646
        %v1500 = vpop.f32.mrf.mxu0
        %v1501 = vadd.f32 %v1388, %v1500
        %1502 = vmatmul.f32.gmra.mxu0 %v648
        %v1503 = vpop.f32.mrf.mxu0
        %v1504 = vadd.f32 %v1391, %v1503
        %1505 = vmatmul.f32.gmra.mxu0 %v651
        %v1506 = vpop.f32.mrf.mxu0
        %v1507 = vadd.f32 %v1394, %v1506
        %1508 = vmatmul.f32.gmra.mxu0 %v653
        %v1509 = vpop.f32.mrf.mxu0
        %v1510 = vadd.f32 %v1397, %v1509
        %1511 = vmatmul.f32.gmra.mxu0 %v656
        %v1512 = vpop.f32.mrf.mxu0
        %v1513 = vadd.f32 %v1400, %v1512
        %1514 = vmatmul.f32.gmra.mxu0 %v658
        %v1515 = vpop.f32.mrf.mxu0
        %v1516 = vadd.f32 %v1403, %v1515
        %1517 = vmatmul.f32.gmra.mxu0 %v661
        %v1518 = vpop.f32.mrf.mxu0
        %v1519 = vadd.f32 %v1406, %v1518
        %1520 = vmatmul.f32.gmra.mxu0 %v663
        %v1521 = vpop.f32.mrf.mxu0
        %v1522 = vadd.f32 %v1409, %v1521
        %1523 = vmatmul.f32.gmra.mxu0 %v666
        %v1524 = vpop.f32.mrf.mxu0
        %v1525 = vadd.f32 %v1412, %v1524
        %1526 = vmatmul.f32.gmra.mxu0 %v668
        %v1527 = vpop.f32.mrf.mxu0
        %v1528 = vadd.f32 %v1415, %v1527
        %1529 = vmatmul.f32.gmra.mxu0 %v671
        %v1530 = vpop.f32.mrf.mxu0
        %v1531 = vadd.f32 %v1418, %v1530
        %1532 = vmatmul.f32.gmra.mxu0 %v673
        %v1533 = vpop.f32.mrf.mxu0
        %v1534 = vadd.f32 %v1421, %v1533
        %1535 = vmatmul.f32.gmra.mxu0 %v676
        %v1536 = vpop.f32.mrf.mxu0
        %v1537 = vadd.f32 %v1424, %v1536
        %1538 = vmatmul.f32.gmra.mxu0 %v678
        %v1539 = vpop.f32.mrf.mxu0
        %v1540 = vadd.f32 %v1427, %v1539
        %1541 = vmatmul.f32.gmra.mxu0 %v681
        %v1542 = vpop.f32.mrf.mxu0
        %v1543 = vadd.f32 %v1430, %v1542
        %1544 = vmatmul.f32.gmra.mxu0 %v683
        %v1545 = vpop.f32.mrf.mxu0
        %v1546 = vadd.f32 %v1433, %v1545
        %1547 = vmatmul.f32.gmra.mxu0 %v686
        %v1548 = vpop.f32.mrf.mxu0
        %v1549 = vadd.f32 %v1436, %v1548
        %1550 = vmatmul.f32.gmra.mxu0 %v688
        %v1551 = vpop.f32.mrf.mxu0
        %v1552 = vadd.f32 %v1439, %v1551
        %1553 = vmatmul.f32.gmra.mxu0 %v691
        %v1554 = vpop.f32.mrf.mxu0
        %v1555 = vadd.f32 %v1442, %v1554
        %1556 = vmatmul.f32.gmra.mxu0 %v693
        %v1557 = vpop.f32.mrf.mxu0
        %v1558 = vadd.f32 %v1445, %v1557
        %1559 = vmatmul.f32.gmra.mxu0 %v696
        %v1560 = vpop.f32.mrf.mxu0
        %v1561 = vadd.f32 %v1448, %v1560
        %1562 = vmatmul.f32.gmra.mxu0 %v698
        %v1563 = vpop.f32.mrf.mxu0
        %v1564 = vadd.f32 %v1451, %v1563
        %1565 = vmatmul.f32.gmra.mxu0 %v701
        %v1566 = vpop.f32.mrf.mxu0
        %v1567 = vadd.f32 %v1454, %v1566
        %1568 = vmatmul.f32.gmra.mxu0 %v703
        %v1569 = vpop.f32.mrf.mxu0
        %v1570 = vadd.f32 %v1457, %v1569
        %1571 = vmatmul.f32.gmra.mxu0 %v747
        %v1572 = vpop.f32.mrf.mxu0
        %v1573 = vadd.f32 %v1460, %v1572
        %1574 = vmatmul.f32.gmra.mxu0 %v749
        %v1575 = vpop.f32.mrf.mxu0
        %v1576 = vadd.f32 %v1463, %v1575
        %1577 = vdwg.mxu0
        %1578 = vmatpush.msra.mxu0 %v863
        %1579 = vmatpush.msra.mxu0 %v862
        %1580 = vmatpush.msra.mxu0 %v861
        %1581 = vmatpush.msra.mxu0 %v860
        %1582 = vmatpush.msra.mxu0 %v859
        %1583 = vmatpush.msra.mxu0 %v858
        %1584 = vmatpush.msra.mxu0 %v857
        %1585 = vmatpush.msra.mxu0 %v856
        %1586 = vmatpush.msra.mxu0 %v855
        %1587 = vmatpush.msra.mxu0 %v854
        %1588 = vmatpush.msra.mxu0 %v853
        %1589 = vmatpush.msra.mxu0 %v852
        %1590 = vmatpush.msra.mxu0 %v851
        %1591 = vmatpush.msra.mxu0 %v850
        %1592 = vmatpush.msra.mxu0 %v849
        %1593 = vmatpush.msra.mxu0 %v848
        %1594 = vmatmul.f32.gmra.mxu0 %v446
        %v1595 = vpop.f32.mrf.mxu0
        %v1596 = vadd.f32 %v1483, %v1595
        %1597 = vmatmul.f32.gmra.mxu0 %v351
        %v1598 = vpop.f32.mrf.mxu0
        %v1599 = vadd.f32 %v1486, %v1598
        %1600 = vmatmul.f32.gmra.mxu0 %v447
        %v1601 = vpop.f32.mrf.mxu0
        %v1602 = vadd.f32 %v1489, %v1601
        %1603 = vmatmul.f32.gmra.mxu0 %v354
        %v1604 = vpop.f32.mrf.mxu0
        %v1605 = vadd.f32 %v1492, %v1604
        %1606 = vmatmul.f32.gmra.mxu0 %v448
        %v1607 = vpop.f32.mrf.mxu0
        %v1608 = vadd.f32 %v1495, %v1607
        %1609 = vmatmul.f32.gmra.mxu0 %v357
        %v1610 = vpop.f32.mrf.mxu0
        %v1611 = vadd.f32 %v1498, %v1610
        %1612 = vmatmul.f32.gmra.mxu0 %v449
        %v1613 = vpop.f32.mrf.mxu0
        %v1614 = vadd.f32 %v1501, %v1613
        %1615 = vmatmul.f32.gmra.mxu0 %v360
        %v1616 = vpop.f32.mrf.mxu0
        %v1617 = vadd.f32 %v1504, %v1616
        %1618 = vmatmul.f32.gmra.mxu0 %v450
        %v1619 = vpop.f32.mrf.mxu0
        %v1620 = vadd.f32 %v1507, %v1619
        %1621 = vmatmul.f32.gmra.mxu0 %v363
        %v1622 = vpop.f32.mrf.mxu0
        %v1623 = vadd.f32 %v1510, %v1622
        %1624 = vmatmul.f32.gmra.mxu0 %v451
        %v1625 = vpop.f32.mrf.mxu0
        %v1626 = vadd.f32 %v1513, %v1625
        %1627 = vmatmul.f32.gmra.mxu0 %v366
        %v1628 = vpop.f32.mrf.mxu0
        %v1629 = vadd.f32 %v1516, %v1628
        %1630 = vmatmul.f32.gmra.mxu0 %v452
        %v1631 = vpop.f32.mrf.mxu0
        %v1632 = vadd.f32 %v1519, %v1631
        %1633 = vmatmul.f32.gmra.mxu0 %v369
        %v1634 = vpop.f32.mrf.mxu0
        %v1635 = vadd.f32 %v1522, %v1634
        %1636 = vmatmul.f32.gmra.mxu0 %v453
        %v1637 = vpop.f32.mrf.mxu0
        %v1638 = vadd.f32 %v1525, %v1637
        %1639 = vmatmul.f32.gmra.mxu0 %v372
        %v1640 = vpop.f32.mrf.mxu0
        %v1641 = vadd.f32 %v1528, %v1640
        %1642 = vmatmul.f32.gmra.mxu0 %v454
        %v1643 = vpop.f32.mrf.mxu0
        %v1644 = vadd.f32 %v1531, %v1643
        %1645 = vmatmul.f32.gmra.mxu0 %v375
        %v1646 = vpop.f32.mrf.mxu0
        %v1647 = vadd.f32 %v1534, %v1646
        %1648 = vmatmul.f32.gmra.mxu0 %v455
        %v1649 = vpop.f32.mrf.mxu0
        %v1650 = vadd.f32 %v1537, %v1649
        %1651 = vmatmul.f32.gmra.mxu0 %v378
        %v1652 = vpop.f32.mrf.mxu0
        %v1653 = vadd.f32 %v1540, %v1652
        %1654 = vmatmul.f32.gmra.mxu0 %v456
        %v1655 = vpop.f32.mrf.mxu0
        %v1656 = vadd.f32 %v1543, %v1655
        %1657 = vmatmul.f32.gmra.mxu0 %v381
        %v1658 = vpop.f32.mrf.mxu0
        %v1659 = vadd.f32 %v1546, %v1658
        %1660 = vmatmul.f32.gmra.mxu0 %v457
        %v1661 = vpop.f32.mrf.mxu0
        %v1662 = vadd.f32 %v1549, %v1661
        %1663 = vmatmul.f32.gmra.mxu0 %v384
        %v1664 = vpop.f32.mrf.mxu0
        %v1665 = vadd.f32 %v1552, %v1664
        %1666 = vmatmul.f32.gmra.mxu0 %v458
        %v1667 = vpop.f32.mrf.mxu0
        %v1668 = vadd.f32 %v1555, %v1667
        %1669 = vmatmul.f32.gmra.mxu0 %v387
        %v1670 = vpop.f32.mrf.mxu0
        %v1671 = vadd.f32 %v1558, %v1670
        %1672 = vmatmul.f32.gmra.mxu0 %v459
        %v1673 = vpop.f32.mrf.mxu0
        %v1674 = vadd.f32 %v1561, %v1673
        %1675 = vmatmul.f32.gmra.mxu0 %v390
        %v1676 = vpop.f32.mrf.mxu0
        %v1677 = vadd.f32 %v1564, %v1676
        %1678 = vmatmul.f32.gmra.mxu0 %v460
        %v1679 = vpop.f32.mrf.mxu0
        %v1680 = vadd.f32 %v1567, %v1679
        %1681 = vmatmul.f32.gmra.mxu0 %v393
        %v1682 = vpop.f32.mrf.mxu0
        %v1683 = vadd.f32 %v1570, %v1682
        %1684 = vmatmul.f32.gmra.mxu0 %v444
        %v1685 = vpop.f32.mrf.mxu0
        %v1686 = vadd.f32 %v1573, %v1685
        %1687 = vmatmul.f32.gmra.mxu0 %v345
        %v1688 = vpop.f32.mrf.mxu0
        %v1689 = vadd.f32 %v1576, %v1688
        %1690 = vdwg.mxu0
        %1691 = vmatpush.msra.mxu0 %v879
        %1692 = vmatpush.msra.mxu0 %v878
        %1693 = vmatpush.msra.mxu0 %v877
        %1694 = vmatpush.msra.mxu0 %v876
        %1695 = vmatpush.msra.mxu0 %v875
        %1696 = vmatpush.msra.mxu0 %v874
        %1697 = vmatpush.msra.mxu0 %v873
        %1698 = vmatpush.msra.mxu0 %v872
        %1699 = vmatpush.msra.mxu0 %v871
        %1700 = vmatpush.msra.mxu0 %v870
        %1701 = vmatpush.msra.mxu0 %v869
        %1702 = vmatpush.msra.mxu0 %v868
        %1703 = vmatpush.msra.mxu0 %v867
        %1704 = vmatpush.msra.mxu0 %v866
        %1705 = vmatpush.msra.mxu0 %v865
        %1706 = vmatpush.msra.mxu0 %v864
        %1707 = vmatmul.f32.gmra.mxu0 %v523
        %v1708 = vpop.f32.mrf.mxu0
        %v1709 = vadd.f32 %v1596, %v1708
        %1710 = vmatmul.f32.gmra.mxu0 %v525
        %v1711 = vpop.f32.mrf.mxu0
        %v1712 = vadd.f32 %v1599, %v1711
        %1713 = vmatmul.f32.gmra.mxu0 %v528
        %v1714 = vpop.f32.mrf.mxu0
        %v1715 = vadd.f32 %v1602, %v1714
        %1716 = vmatmul.f32.gmra.mxu0 %v530
        %v1717 = vpop.f32.mrf.mxu0
        %v1718 = vadd.f32 %v1605, %v1717
        %1719 = vmatmul.f32.gmra.mxu0 %v533
        %v1720 = vpop.f32.mrf.mxu0
        %v1721 = vadd.f32 %v1608, %v1720
        %1722 = vmatmul.f32.gmra.mxu0 %v535
        %v1723 = vpop.f32.mrf.mxu0
        %v1724 = vadd.f32 %v1611, %v1723
        %1725 = vmatmul.f32.gmra.mxu0 %v538
        %v1726 = vpop.f32.mrf.mxu0
        %v1727 = vadd.f32 %v1614, %v1726
        %1728 = vmatmul.f32.gmra.mxu0 %v540
        %v1729 = vpop.f32.mrf.mxu0
        %v1730 = vadd.f32 %v1617, %v1729
        %1731 = vmatmul.f32.gmra.mxu0 %v543
        %v1732 = vpop.f32.mrf.mxu0
        %v1733 = vadd.f32 %v1620, %v1732
        %1734 = vmatmul.f32.gmra.mxu0 %v545
        %v1735 = vpop.f32.mrf.mxu0
        %v1736 = vadd.f32 %v1623, %v1735
        %1737 = vmatmul.f32.gmra.mxu0 %v548
        %v1738 = vpop.f32.mrf.mxu0
        %v1739 = vadd.f32 %v1626, %v1738
        %1740 = vmatmul.f32.gmra.mxu0 %v550
        %v1741 = vpop.f32.mrf.mxu0
        %v1742 = vadd.f32 %v1629, %v1741
        %1743 = vmatmul.f32.gmra.mxu0 %v553
        %v1744 = vpop.f32.mrf.mxu0
        %v1745 = vadd.f32 %v1632, %v1744
        %1746 = vmatmul.f32.gmra.mxu0 %v555
        %v1747 = vpop.f32.mrf.mxu0
        %v1748 = vadd.f32 %v1635, %v1747
        %1749 = vmatmul.f32.gmra.mxu0 %v558
        %v1750 = vpop.f32.mrf.mxu0
        %v1751 = vadd.f32 %v1638, %v1750
        %1752 = vmatmul.f32.gmra.mxu0 %v560
        %v1753 = vpop.f32.mrf.mxu0
        %v1754 = vadd.f32 %v1641, %v1753
        %1755 = vmatmul.f32.gmra.mxu0 %v563
        %v1756 = vpop.f32.mrf.mxu0
        %v1757 = vadd.f32 %v1644, %v1756
        %1758 = vmatmul.f32.gmra.mxu0 %v565
        %v1759 = vpop.f32.mrf.mxu0
        %v1760 = vadd.f32 %v1647, %v1759
        %1761 = vmatmul.f32.gmra.mxu0 %v568
        %v1762 = vpop.f32.mrf.mxu0
        %v1763 = vadd.f32 %v1650, %v1762
        %1764 = vmatmul.f32.gmra.mxu0 %v570
        %v1765 = vpop.f32.mrf.mxu0
        %v1766 = vadd.f32 %v1653, %v1765
        %1767 = vmatmul.f32.gmra.mxu0 %v573
        %v1768 = vpop.f32.mrf.mxu0
        %v1769 = vadd.f32 %v1656, %v1768
        %1770 = vmatmul.f32.gmra.mxu0 %v575
        %v1771 = vpop.f32.mrf.mxu0
        %v1772 = vadd.f32 %v1659, %v1771
        %1773 = vmatmul.f32.gmra.mxu0 %v578
        %v1774 = vpop.f32.mrf.mxu0
        %v1775 = vadd.f32 %v1662, %v1774
        %1776 = vmatmul.f32.gmra.mxu0 %v580
        %v1777 = vpop.f32.mrf.mxu0
        %v1778 = vadd.f32 %v1665, %v1777
        %1779 = vmatmul.f32.gmra.mxu0 %v583
        %v1780 = vpop.f32.mrf.mxu0
        %v1781 = vadd.f32 %v1668, %v1780
        %1782 = vmatmul.f32.gmra.mxu0 %v585
        %v1783 = vpop.f32.mrf.mxu0
        %v1784 = vadd.f32 %v1671, %v1783
        %1785 = vmatmul.f32.gmra.mxu0 %v588
        %v1786 = vpop.f32.mrf.mxu0
        %v1787 = vadd.f32 %v1674, %v1786
        %1788 = vmatmul.f32.gmra.mxu0 %v590
        %v1789 = vpop.f32.mrf.mxu0
        %v1790 = vadd.f32 %v1677, %v1789
        %1791 = vmatmul.f32.gmra.mxu0 %v740
        %v1792 = vpop.f32.mrf.mxu0
        %v1793 = vadd.f32 %v1680, %v1792
        %1794 = vmatmul.f32.gmra.mxu0 %v742
        %v1795 = vpop.f32.mrf.mxu0
        %v1796 = vadd.f32 %v1683, %v1795
        %1797 = vmatmul.f32.gmra.mxu0 %v513
        %v1798 = vpop.f32.mrf.mxu0
        %v1799 = vadd.f32 %v1686, %v1798
        %1800 = vmatmul.f32.gmra.mxu0 %v515
        %v1801 = vpop.f32.mrf.mxu0
        %v1802 = vadd.f32 %v1689, %v1801
        %1803 = vdwg.mxu0
        %1804 = vmatpush.msra.mxu0 %v895
        %1805 = vmatpush.msra.mxu0 %v894
        %1806 = vmatpush.msra.mxu0 %v893
        %1807 = vmatpush.msra.mxu0 %v892
        %1808 = vmatpush.msra.mxu0 %v891
        %1809 = vmatpush.msra.mxu0 %v890
        %1810 = vmatpush.msra.mxu0 %v889
        %1811 = vmatpush.msra.mxu0 %v888
        %1812 = vmatpush.msra.mxu0 %v887
        %1813 = vmatpush.msra.mxu0 %v886
        %1814 = vmatpush.msra.mxu0 %v885
        %1815 = vmatpush.msra.mxu0 %v884
        %1816 = vmatpush.msra.mxu0 %v883
        %1817 = vmatpush.msra.mxu0 %v882
        %1818 = vmatpush.msra.mxu0 %v881
        %1819 = vmatpush.msra.mxu0 %v880
        %1820 = vmatmul.f32.gmra.mxu0 %v636
        %v1821 = vpop.f32.mrf.mxu0
        %v1822 = vadd.f32 %v1709, %v1821
        %1823 = vmatmul.f32.gmra.mxu0 %v638
        %v1824 = vpop.f32.mrf.mxu0
        %v1825 = vadd.f32 %v1712, %v1824
        %1826 = vmatmul.f32.gmra.mxu0 %v641
        %v1827 = vpop.f32.mrf.mxu0
        %v1828 = vadd.f32 %v1715, %v1827
        %1829 = vmatmul.f32.gmra.mxu0 %v643
        %v1830 = vpop.f32.mrf.mxu0
        %v1831 = vadd.f32 %v1718, %v1830
        %1832 = vmatmul.f32.gmra.mxu0 %v646
        %v1833 = vpop.f32.mrf.mxu0
        %v1834 = vadd.f32 %v1721, %v1833
        %1835 = vmatmul.f32.gmra.mxu0 %v648
        %v1836 = vpop.f32.mrf.mxu0
        %v1837 = vadd.f32 %v1724, %v1836
        %1838 = vmatmul.f32.gmra.mxu0 %v651
        %v1839 = vpop.f32.mrf.mxu0
        %v1840 = vadd.f32 %v1727, %v1839
        %1841 = vmatmul.f32.gmra.mxu0 %v653
        %v1842 = vpop.f32.mrf.mxu0
        %v1843 = vadd.f32 %v1730, %v1842
        %1844 = vmatmul.f32.gmra.mxu0 %v656
        %v1845 = vpop.f32.mrf.mxu0
        %v1846 = vadd.f32 %v1733, %v1845
        %1847 = vmatmul.f32.gmra.mxu0 %v658
        %v1848 = vpop.f32.mrf.mxu0
        %v1849 = vadd.f32 %v1736, %v1848
        %1850 = vmatmul.f32.gmra.mxu0 %v661
        %v1851 = vpop.f32.mrf.mxu0
        %v1852 = vadd.f32 %v1739, %v1851
        %1853 = vmatmul.f32.gmra.mxu0 %v663
        %v1854 = vpop.f32.mrf.mxu0
        %v1855 = vadd.f32 %v1742, %v1854
        %1856 = vmatmul.f32.gmra.mxu0 %v666
        %v1857 = vpop.f32.mrf.mxu0
        %v1858 = vadd.f32 %v1745, %v1857
        %1859 = vmatmul.f32.gmra.mxu0 %v668
        %v1860 = vpop.f32.mrf.mxu0
        %v1861 = vadd.f32 %v1748, %v1860
        %1862 = vmatmul.f32.gmra.mxu0 %v671
        %v1863 = vpop.f32.mrf.mxu0
        %v1864 = vadd.f32 %v1751, %v1863
        %1865 = vmatmul.f32.gmra.mxu0 %v673
        %v1866 = vpop.f32.mrf.mxu0
        %v1867 = vadd.f32 %v1754, %v1866
        %1868 = vmatmul.f32.gmra.mxu0 %v676
        %v1869 = vpop.f32.mrf.mxu0
        %v1870 = vadd.f32 %v1757, %v1869
        %1871 = vmatmul.f32.gmra.mxu0 %v678
        %v1872 = vpop.f32.mrf.mxu0
        %v1873 = vadd.f32 %v1760, %v1872
        %1874 = vmatmul.f32.gmra.mxu0 %v681
        %v1875 = vpop.f32.mrf.mxu0
        %v1876 = vadd.f32 %v1763, %v1875
        %1877 = vmatmul.f32.gmra.mxu0 %v683
        %v1878 = vpop.f32.mrf.mxu0
        %v1879 = vadd.f32 %v1766, %v1878
        %1880 = vmatmul.f32.gmra.mxu0 %v686
        %v1881 = vpop.f32.mrf.mxu0
        %v1882 = vadd.f32 %v1769, %v1881
        %1883 = vmatmul.f32.gmra.mxu0 %v688
        %v1884 = vpop.f32.mrf.mxu0
        %v1885 = vadd.f32 %v1772, %v1884
        %1886 = vmatmul.f32.gmra.mxu0 %v691
        %v1887 = vpop.f32.mrf.mxu0
        %v1888 = vadd.f32 %v1775, %v1887
        %1889 = vmatmul.f32.gmra.mxu0 %v693
        %v1890 = vpop.f32.mrf.mxu0
        %v1891 = vadd.f32 %v1778, %v1890
        %1892 = vmatmul.f32.gmra.mxu0 %v696
        %v1893 = vpop.f32.mrf.mxu0
        %v1894 = vadd.f32 %v1781, %v1893
        %1895 = vmatmul.f32.gmra.mxu0 %v698
        %v1896 = vpop.f32.mrf.mxu0
        %v1897 = vadd.f32 %v1784, %v1896
        %1898 = vmatmul.f32.gmra.mxu0 %v701
        %v1899 = vpop.f32.mrf.mxu0
        %v1900 = vadd.f32 %v1787, %v1899
        %1901 = vmatmul.f32.gmra.mxu0 %v703
        %v1902 = vpop.f32.mrf.mxu0
        %v1903 = vadd.f32 %v1790, %v1902
        %1904 = vmatmul.f32.gmra.mxu0 %v747
        %v1905 = vpop.f32.mrf.mxu0
        %v1906 = vadd.f32 %v1793, %v1905
        %1907 = vmatmul.f32.gmra.mxu0 %v749
        %v1908 = vpop.f32.mrf.mxu0
        %v1909 = vadd.f32 %v1796, %v1908
        %1910 = vmatmul.f32.gmra.mxu0 %v626
        %v1911 = vpop.f32.mrf.mxu0
        %v1912 = vadd.f32 %v1799, %v1911
        %1913 = vmatmul.f32.gmra.mxu0 %v628
        %v1914 = vpop.f32.mrf.mxu0
        %v1915 = vadd.f32 %v1802, %v1914
        %1916 = vdwg.mxu0
        %v1917 = vmax.f32 %v1822, 0.0
        %v1918 = vmax.f32 %v1825, 0.0
        %v1919 = vmax.f32 %v1828, 0.0
        %v1920 = vmax.f32 %v1831, 0.0
        %v1921 = vmax.f32 %v1834, 0.0
        %v1922 = vmax.f32 %v1837, 0.0
        %v1923 = vmax.f32 %v1840, 0.0
        %v1924 = vmax.f32 %v1843, 0.0
        %v1925 = vmax.f32 %v1846, 0.0
        %v1926 = vmax.f32 %v1849, 0.0
        %v1927 = vmax.f32 %v1852, 0.0
        %v1928 = vmax.f32 %v1855, 0.0
        %v1929 = vmax.f32 %v1858, 0.0
        %v1930 = vmax.f32 %v1861, 0.0
        %v1931 = vmax.f32 %v1864, 0.0
        %v1932 = vmax.f32 %v1867, 0.0
        %v1933 = vmax.f32 %v1870, 0.0
        %v1934 = vmax.f32 %v1873, 0.0
        %v1935 = vmax.f32 %v1876, 0.0
        %v1936 = vmax.f32 %v1879, 0.0
        %v1937 = vmax.f32 %v1882, 0.0
        %v1938 = vmax.f32 %v1885, 0.0
        %v1939 = vmax.f32 %v1888, 0.0
        %v1940 = vmax.f32 %v1891, 0.0
        %v1941 = vmax.f32 %v1894, 0.0
        %v1942 = vmax.f32 %v1897, 0.0
        %v1943 = vmax.f32 %v1900, 0.0
        %v1944 = vmax.f32 %v1903, 0.0
        %v1945 = vmax.f32 %v1906, 0.0
        %v1946 = vmax.f32 %v1909, 0.0
        %v1947 = vmax.f32 %v1912, 0.0
        %v1948 = vmax.f32 %v1915, 0.0
        %v1981 = vrot.slane %v1917, 7
        %v1982 = vrot.slane %v1918, 7
        %v1983 = vsel %vm343, %v1981, %v1982
        %v1984 = vrot.slane %v1919, 7
        %v1985 = vrot.slane %v1920, 7
        %v1986 = vsel %vm343, %v1984, %v1985
        %v1987 = vrot.slane %v1921, 7
        %v1988 = vrot.slane %v1922, 7
        %v1989 = vsel %vm343, %v1987, %v1988
        %v1990 = vrot.slane %v1923, 7
        %v1991 = vrot.slane %v1924, 7
        %v1992 = vsel %vm343, %v1990, %v1991
        %v1993 = vrot.slane %v1925, 7
        %v1994 = vrot.slane %v1926, 7
        %v1995 = vsel %vm343, %v1993, %v1994
        %v1996 = vrot.slane %v1927, 7
        %v1997 = vrot.slane %v1928, 7
        %v1998 = vsel %vm343, %v1996, %v1997
        %v1999 = vrot.slane %v1929, 7
        %v2000 = vrot.slane %v1930, 7
        %v2001 = vsel %vm343, %v1999, %v2000
        %v2002 = vrot.slane %v1931, 7
        %v2003 = vrot.slane %v1932, 7
        %v2004 = vsel %vm343, %v2002, %v2003
        %v2005 = vrot.slane %v1933, 7
        %v2006 = vrot.slane %v1934, 7
        %v2007 = vsel %vm343, %v2005, %v2006
        %v2008 = vrot.slane %v1935, 7
        %v2009 = vrot.slane %v1936, 7
        %v2010 = vsel %vm343, %v2008, %v2009
        %v2011 = vrot.slane %v1937, 7
        %v2012 = vrot.slane %v1938, 7
        %v2013 = vsel %vm343, %v2011, %v2012
        %v2014 = vrot.slane %v1939, 7
        %v2015 = vrot.slane %v1940, 7
        %v2016 = vsel %vm343, %v2014, %v2015
        %v2017 = vrot.slane %v1941, 7
        %v2018 = vrot.slane %v1942, 7
        %v2019 = vsel %vm343, %v2017, %v2018
        %v2020 = vrot.slane %v1943, 7
        %v2021 = vrot.slane %v1944, 7
        %v2022 = vsel %vm343, %v2020, %v2021
        %v2023 = vrot.slane %v1945, 7
        %v2024 = vrot.slane %v1946, 7
        %v2025 = vsel %vm343, %v2023, %v2024
        %v2026 = vrot.slane %v1947, 7
        %v2027 = vrot.slane %v1948, 7
        %v2028 = vsel %vm343, %v2026, %v2027
        %v2077 = vsel %vm343, 0.0, %v1981
        %v2078 = vsel %vm343, 0.0, %v1984
        %v2079 = vsel %vm343, 0.0, %v1987
        %v2080 = vsel %vm343, 0.0, %v1990
        %v2081 = vsel %vm343, 0.0, %v1993
        %v2082 = vsel %vm343, 0.0, %v1996
        %v2083 = vsel %vm343, 0.0, %v1999
        %v2084 = vsel %vm343, 0.0, %v2002
        %v2085 = vsel %vm343, 0.0, %v2005
        %v2086 = vsel %vm343, 0.0, %v2008
        %v2087 = vsel %vm343, 0.0, %v2011
        %v2088 = vsel %vm343, 0.0, %v2014
        %v2089 = vsel %vm343, 0.0, %v2017
        %v2090 = vsel %vm343, 0.0, %v2020
        %v2091 = vsel %vm343, 0.0, %v2023
        %v2092 = vsel %vm343, 0.0, %v2026
        %v2093 = vsel %vm343, %v1982, 0.0
        %v2094 = vsel %vm343, %v1985, 0.0
        %v2095 = vsel %vm343, %v1988, 0.0
        %v2096 = vsel %vm343, %v1991, 0.0
        %v2097 = vsel %vm343, %v1994, 0.0
        %v2098 = vsel %vm343, %v1997, 0.0
        %v2099 = vsel %vm343, %v2000, 0.0
        %v2100 = vsel %vm343, %v2003, 0.0
        %v2101 = vsel %vm343, %v2006, 0.0
        %v2102 = vsel %vm343, %v2009, 0.0
        %v2103 = vsel %vm343, %v2012, 0.0
        %v2104 = vsel %vm343, %v2015, 0.0
        %v2105 = vsel %vm343, %v2018, 0.0
        %v2106 = vsel %vm343, %v2021, 0.0
        %v2107 = vsel %vm343, %v2024, 0.0
        %v2108 = vsel %vm343, %v2027, 0.0
        %v2139 = vrot.slane %v2077, 1
        %v2140 = vrot.slane %v1983, 1
        %v2141 = vsel %vm510, %v2139, %v2140
        %v2142 = vrot.slane %v2093, 1
        %v2143 = vsel %vm510, %v2140, %v2142
        %v2144 = vrot.slane %v2078, 1
        %v2145 = vrot.slane %v1986, 1
        %v2146 = vsel %vm510, %v2144, %v2145
        %v2147 = vrot.slane %v2094, 1
        %v2148 = vsel %vm510, %v2145, %v2147
        %v2149 = vrot.slane %v2079, 1
        %v2150 = vrot.slane %v1989, 1
        %v2151 = vsel %vm510, %v2149, %v2150
        %v2152 = vrot.slane %v2095, 1
        %v2153 = vsel %vm510, %v2150, %v2152
        %v2154 = vrot.slane %v2080, 1
        %v2155 = vrot.slane %v1992, 1
        %v2156 = vsel %vm510, %v2154, %v2155
        %v2157 = vrot.slane %v2096, 1
        %v2158 = vsel %vm510, %v2155, %v2157
        %v2159 = vrot.slane %v2081, 1
        %v2160 = vrot.slane %v1995, 1
        %v2161 = vsel %vm510, %v2159, %v2160
        %v2162 = vrot.slane %v2097, 1
        %v2163 = vsel %vm510, %v2160, %v2162
        %v2164 = vrot.slane %v2082, 1
        %v2165 = vrot.slane %v1998, 1
        %v2166 = vsel %vm510, %v2164, %v2165
        %v2167 = vrot.slane %v2098, 1
        %v2168 = vsel %vm510, %v2165, %v2167
        %v2169 = vrot.slane %v2083, 1
        %v2170 = vrot.slane %v2001, 1
        %v2171 = vsel %vm510, %v2169, %v2170
        %v2172 = vrot.slane %v2099, 1
        %v2173 = vsel %vm510, %v2170, %v2172
        %v2174 = vrot.slane %v2084, 1
        %v2175 = vrot.slane %v2004, 1
        %v2176 = vsel %vm510, %v2174, %v2175
        %v2177 = vrot.slane %v2100, 1
        %v2178 = vsel %vm510, %v2175, %v2177
        %v2179 = vrot.slane %v2085, 1
        %v2180 = vrot.slane %v2007, 1
        %v2181 = vsel %vm510, %v2179, %v2180
        %v2182 = vrot.slane %v2101, 1
        %v2183 = vsel %vm510, %v2180, %v2182
        %v2184 = vrot.slane %v2086, 1
        %v2185 = vrot.slane %v2010, 1
        %v2186 = vsel %vm510, %v2184, %v2185
        %v2187 = vrot.slane %v2102, 1
        %v2188 = vsel %vm510, %v2185, %v2187
        %v2189 = vrot.slane %v2087, 1
        %v2190 = vrot.slane %v2013, 1
        %v2191 = vsel %vm510, %v2189, %v2190
        %v2192 = vrot.slane %v2103, 1
        %v2193 = vsel %vm510, %v2190, %v2192
        %v2194 = vrot.slane %v2088, 1
        %v2195 = vrot.slane %v2016, 1
        %v2196 = vsel %vm510, %v2194, %v2195
        %v2197 = vrot.slane %v2104, 1
        %v2198 = vsel %vm510, %v2195, %v2197
        %v2199 = vrot.slane %v2089, 1
        %v2200 = vrot.slane %v2019, 1
        %v2201 = vsel %vm510, %v2199, %v2200
        %v2202 = vrot.slane %v2105, 1
        %v2203 = vsel %vm510, %v2200, %v2202
        %v2204 = vrot.slane %v2090, 1
        %v2205 = vrot.slane %v2022, 1
        %v2206 = vsel %vm510, %v2204, %v2205
        %v2207 = vrot.slane %v2106, 1
        %v2208 = vsel %vm510, %v2205, %v2207
        %v2209 = vrot.slane %v2091, 1
        %v2210 = vrot.slane %v2025, 1
        %v2211 = vsel %vm510, %v2209, %v2210
        %v2212 = vrot.slane %v2107, 1
        %v2213 = vsel %vm510, %v2210, %v2212
        %v2244 = vrot.slane %v2077, 2
        %v2245 = vrot.slane %v1983, 2
        %v2246 = vsel %vm623, %v2244, %v2245
        %v2247 = vrot.slane %v2093, 2
        %v2248 = vsel %vm623, %v2245, %v2247
        %v2249 = vrot.slane %v2078, 2
        %v2250 = vrot.slane %v1986, 2
        %v2251 = vsel %vm623, %v2249, %v2250
        %v2252 = vrot.slane %v2094, 2
        %v2253 = vsel %vm623, %v2250, %v2252
        %v2254 = vrot.slane %v2079, 2
        %v2255 = vrot.slane %v1989, 2
        %v2256 = vsel %vm623, %v2254, %v2255
        %v2257 = vrot.slane %v2095, 2
        %v2258 = vsel %vm623, %v2255, %v2257
        %v2259 = vrot.slane %v2080, 2
        %v2260 = vrot.slane %v1992, 2
        %v2261 = vsel %vm623, %v2259, %v2260
        %v2262 = vrot.slane %v2096, 2
        %v2263 = vsel %vm623, %v2260, %v2262
        %v2264 = vrot.slane %v2081, 2
        %v2265 = vrot.slane %v1995, 2
        %v2266 = vsel %vm623, %v2264, %v2265
        %v2267 = vrot.slane %v2097, 2
        %v2268 = vsel %vm623, %v2265, %v2267
        %v2269 = vrot.slane %v2082, 2
        %v2270 = vrot.slane %v1998, 2
        %v2271 = vsel %vm623, %v2269, %v2270
        %v2272 = vrot.slane %v2098, 2
        %v2273 = vsel %vm623, %v2270, %v2272
        %v2274 = vrot.slane %v2083, 2
        %v2275 = vrot.slane %v2001, 2
        %v2276 = vsel %vm623, %v2274, %v2275
        %v2277 = vrot.slane %v2099, 2
        %v2278 = vsel %vm623, %v2275, %v2277
        %v2279 = vrot.slane %v2084, 2
        %v2280 = vrot.slane %v2004, 2
        %v2281 = vsel %vm623, %v2279, %v2280
        %v2282 = vrot.slane %v2100, 2
        %v2283 = vsel %vm623, %v2280, %v2282
        %v2284 = vrot.slane %v2085, 2
        %v2285 = vrot.slane %v2007, 2
        %v2286 = vsel %vm623, %v2284, %v2285
        %v2287 = vrot.slane %v2101, 2
        %v2288 = vsel %vm623, %v2285, %v2287
        %v2289 = vrot.slane %v2086, 2
        %v2290 = vrot.slane %v2010, 2
        %v2291 = vsel %vm623, %v2289, %v2290
        %v2292 = vrot.slane %v2102, 2
        %v2293 = vsel %vm623, %v2290, %v2292
        %v2294 = vrot.slane %v2087, 2
        %v2295 = vrot.slane %v2013, 2
        %v2296 = vsel %vm623, %v2294, %v2295
        %v2297 = vrot.slane %v2103, 2
        %v2298 = vsel %vm623, %v2295, %v2297
        %v2299 = vrot.slane %v2088, 2
        %v2300 = vrot.slane %v2016, 2
        %v2301 = vsel %vm623, %v2299, %v2300
        %v2302 = vrot.slane %v2104, 2
        %v2303 = vsel %vm623, %v2300, %v2302
        %v2304 = vrot.slane %v2089, 2
        %v2305 = vrot.slane %v2019, 2
        %v2306 = vsel %vm623, %v2304, %v2305
        %v2307 = vrot.slane %v2105, 2
        %v2308 = vsel %vm623, %v2305, %v2307
        %v2309 = vrot.slane %v2090, 2
        %v2310 = vrot.slane %v2022, 2
        %v2311 = vsel %vm623, %v2309, %v2310
        %v2312 = vrot.slane %v2106, 2
        %v2313 = vsel %vm623, %v2310, %v2312
        %v2314 = vrot.slane %v2091, 2
        %v2315 = vrot.slane %v2025, 2
        %v2316 = vsel %vm623, %v2314, %v2315
        %v2317 = vrot.slane %v2107, 2
        %v2318 = vsel %vm623, %v2315, %v2317
        %v2351 = vrot.slane %v2092, 1
        %v2352 = vrot.slane %v2028, 1
        %v2353 = vsel %vm510, %v2351, %v2352
        %v2354 = vrot.slane %v2108, 1
        %v2355 = vsel %vm510, %v2352, %v2354
        %v2358 = vrot.slane %v2092, 2
        %v2359 = vrot.slane %v2028, 2
        %v2360 = vsel %vm623, %v2358, %v2359
        %v2361 = vrot.slane %v2108, 2
        %v2362 = vsel %vm623, %v2359, %v2361
        %v2365 = vld [vmem:[#allocation7] sm:$0xff]
        %v2366 = vld [vmem:[#allocation7 + $0x8] sm:$0xff]
        %v2367 = vld [vmem:[#allocation7 + $0x10] sm:$0xff]
        %v2368 = vld [vmem:[#allocation7 + $0x18] sm:$0xff]
        %v2369 = vld [vmem:[#allocation7 + $0x20] sm:$0xff]
        %v2370 = vld [vmem:[#allocation7 + $0x28] sm:$0xff]
        %v2371 = vld [vmem:[#allocation7 + $0x30] sm:$0xff]
        %v2372 = vld [vmem:[#allocation7 + $0x38] sm:$0xff]
        %v2373 = vld [vmem:[#allocation7 + $0x40] sm:$0xff]
        %v2374 = vld [vmem:[#allocation7 + $0x48] sm:$0xff]
        %v2375 = vld [vmem:[#allocation7 + $0x50] sm:$0xff]
        %v2376 = vld [vmem:[#allocation7 + $0x58] sm:$0xff]
        %v2377 = vld [vmem:[#allocation7 + $0x60] sm:$0xff]
        %v2378 = vld [vmem:[#allocation7 + $0x68] sm:$0xff]
        %v2379 = vld [vmem:[#allocation7 + $0x70] sm:$0xff]
        %v2380 = vld [vmem:[#allocation7 + $0x78] sm:$0xff]
        %v2381 = vld [vmem:[#allocation7 + $0x80] sm:$0xff]
        %v2382 = vld [vmem:[#allocation7 + $0x88] sm:$0xff]
        %v2383 = vld [vmem:[#allocation7 + $0x90] sm:$0xff]
        %v2384 = vld [vmem:[#allocation7 + $0x98] sm:$0xff]
        %v2385 = vld [vmem:[#allocation7 + $0xa0] sm:$0xff]
        %v2386 = vld [vmem:[#allocation7 + $0xa8] sm:$0xff]
        %v2387 = vld [vmem:[#allocation7 + $0xb0] sm:$0xff]
        %v2388 = vld [vmem:[#allocation7 + $0xb8] sm:$0xff]
        %v2389 = vld [vmem:[#allocation7 + $0xc0] sm:$0xff]
        %v2390 = vld [vmem:[#allocation7 + $0xc8] sm:$0xff]
        %v2391 = vld [vmem:[#allocation7 + $0xd0] sm:$0xff]
        %v2392 = vld [vmem:[#allocation7 + $0xd8] sm:$0xff]
        %v2393 = vld [vmem:[#allocation7 + $0xe0] sm:$0xff]
        %v2394 = vld [vmem:[#allocation7 + $0xe8] sm:$0xff]
        %v2395 = vld [vmem:[#allocation7 + $0xf0] sm:$0xff]
        %v2396 = vld [vmem:[#allocation7 + $0xf8] sm:$0xff]
        %v2397 = vld [vmem:[#allocation7 + $0x100] sm:$0xff]
        %v2398 = vld [vmem:[#allocation7 + $0x108] sm:$0xff]
        %v2399 = vld [vmem:[#allocation7 + $0x110] sm:$0xff]
        %v2400 = vld [vmem:[#allocation7 + $0x118] sm:$0xff]
        %v2401 = vld [vmem:[#allocation7 + $0x120] sm:$0xff]
        %v2402 = vld [vmem:[#allocation7 + $0x128] sm:$0xff]
        %v2403 = vld [vmem:[#allocation7 + $0x130] sm:$0xff]
        %v2404 = vld [vmem:[#allocation7 + $0x138] sm:$0xff]
        %v2405 = vld [vmem:[#allocation7 + $0x140] sm:$0xff]
        %v2406 = vld [vmem:[#allocation7 + $0x148] sm:$0xff]
        %v2407 = vld [vmem:[#allocation7 + $0x150] sm:$0xff]
        %v2408 = vld [vmem:[#allocation7 + $0x158] sm:$0xff]
        %v2409 = vld [vmem:[#allocation7 + $0x160] sm:$0xff]
        %v2410 = vld [vmem:[#allocation7 + $0x168] sm:$0xff]
        %v2411 = vld [vmem:[#allocation7 + $0x170] sm:$0xff]
        %v2412 = vld [vmem:[#allocation7 + $0x178] sm:$0xff]
        %v2413 = vld [vmem:[#allocation7 + $0x180] sm:$0xff]
        %v2414 = vld [vmem:[#allocation7 + $0x188] sm:$0xff]
        %v2415 = vld [vmem:[#allocation7 + $0x190] sm:$0xff]
        %v2416 = vld [vmem:[#allocation7 + $0x198] sm:$0xff]
        %v2417 = vld [vmem:[#allocation7 + $0x1a0] sm:$0xff]
        %v2418 = vld [vmem:[#allocation7 + $0x1a8] sm:$0xff]
        %v2419 = vld [vmem:[#allocation7 + $0x1b0] sm:$0xff]
        %v2420 = vld [vmem:[#allocation7 + $0x1b8] sm:$0xff]
        %v2421 = vld [vmem:[#allocation7 + $0x1c0] sm:$0xff]
        %v2422 = vld [vmem:[#allocation7 + $0x1c8] sm:$0xff]
        %v2423 = vld [vmem:[#allocation7 + $0x1d0] sm:$0xff]
        %v2424 = vld [vmem:[#allocation7 + $0x1d8] sm:$0xff]
        %v2425 = vld [vmem:[#allocation7 + $0x1e0] sm:$0xff]
        %v2426 = vld [vmem:[#allocation7 + $0x1e8] sm:$0xff]
        %v2427 = vld [vmem:[#allocation7 + $0x1f0] sm:$0xff]
        %v2428 = vld [vmem:[#allocation7 + $0x1f8] sm:$0xff]
        %v2429 = vld [vmem:[#allocation7 + $0x200] sm:$0xff]
        %v2430 = vld [vmem:[#allocation7 + $0x208] sm:$0xff]
        %v2431 = vld [vmem:[#allocation7 + $0x210] sm:$0xff]
        %v2432 = vld [vmem:[#allocation7 + $0x218] sm:$0xff]
        %v2433 = vld [vmem:[#allocation7 + $0x220] sm:$0xff]
        %v2434 = vld [vmem:[#allocation7 + $0x228] sm:$0xff]
        %v2435 = vld [vmem:[#allocation7 + $0x230] sm:$0xff]
        %v2436 = vld [vmem:[#allocation7 + $0x238] sm:$0xff]
        %v2437 = vld [vmem:[#allocation7 + $0x240] sm:$0xff]
        %v2438 = vld [vmem:[#allocation7 + $0x248] sm:$0xff]
        %v2439 = vld [vmem:[#allocation7 + $0x250] sm:$0xff]
        %v2440 = vld [vmem:[#allocation7 + $0x258] sm:$0xff]
        %v2441 = vld [vmem:[#allocation7 + $0x260] sm:$0xff]
        %v2442 = vld [vmem:[#allocation7 + $0x268] sm:$0xff]
        %v2443 = vld [vmem:[#allocation7 + $0x270] sm:$0xff]
        %v2444 = vld [vmem:[#allocation7 + $0x278] sm:$0xff]
        %v2445 = vld [vmem:[#allocation7 + $0x280] sm:$0xff]
        %v2446 = vld [vmem:[#allocation7 + $0x288] sm:$0xff]
        %v2447 = vld [vmem:[#allocation7 + $0x290] sm:$0xff]
        %v2448 = vld [vmem:[#allocation7 + $0x298] sm:$0xff]
        %v2449 = vld [vmem:[#allocation7 + $0x2a0] sm:$0xff]
        %v2450 = vld [vmem:[#allocation7 + $0x2a8] sm:$0xff]
        %v2451 = vld [vmem:[#allocation7 + $0x2b0] sm:$0xff]
        %v2452 = vld [vmem:[#allocation7 + $0x2b8] sm:$0xff]
        %v2453 = vld [vmem:[#allocation7 + $0x2c0] sm:$0xff]
        %v2454 = vld [vmem:[#allocation7 + $0x2c8] sm:$0xff]
        %v2455 = vld [vmem:[#allocation7 + $0x2d0] sm:$0xff]
        %v2456 = vld [vmem:[#allocation7 + $0x2d8] sm:$0xff]
        %v2457 = vld [vmem:[#allocation7 + $0x2e0] sm:$0xff]
        %v2458 = vld [vmem:[#allocation7 + $0x2e8] sm:$0xff]
        %v2459 = vld [vmem:[#allocation7 + $0x2f0] sm:$0xff]
        %v2460 = vld [vmem:[#allocation7 + $0x2f8] sm:$0xff]
        %v2461 = vld [vmem:[#allocation7 + $0x300] sm:$0xff]
        %v2462 = vld [vmem:[#allocation7 + $0x308] sm:$0xff]
        %v2463 = vld [vmem:[#allocation7 + $0x310] sm:$0xff]
        %v2464 = vld [vmem:[#allocation7 + $0x318] sm:$0xff]
        %v2465 = vld [vmem:[#allocation7 + $0x320] sm:$0xff]
        %v2466 = vld [vmem:[#allocation7 + $0x328] sm:$0xff]
        %v2467 = vld [vmem:[#allocation7 + $0x330] sm:$0xff]
        %v2468 = vld [vmem:[#allocation7 + $0x338] sm:$0xff]
        %v2469 = vld [vmem:[#allocation7 + $0x340] sm:$0xff]
        %v2470 = vld [vmem:[#allocation7 + $0x348] sm:$0xff]
        %v2471 = vld [vmem:[#allocation7 + $0x350] sm:$0xff]
        %v2472 = vld [vmem:[#allocation7 + $0x358] sm:$0xff]
        %v2473 = vld [vmem:[#allocation7 + $0x360] sm:$0xff]
        %v2474 = vld [vmem:[#allocation7 + $0x368] sm:$0xff]
        %v2475 = vld [vmem:[#allocation7 + $0x370] sm:$0xff]
        %v2476 = vld [vmem:[#allocation7 + $0x378] sm:$0xff]
        %v2477 = vld [vmem:[#allocation7 + $0x380] sm:$0xff]
        %v2478 = vld [vmem:[#allocation7 + $0x388] sm:$0xff]
        %v2479 = vld [vmem:[#allocation7 + $0x390] sm:$0xff]
        %v2480 = vld [vmem:[#allocation7 + $0x398] sm:$0xff]
        %v2481 = vld [vmem:[#allocation7 + $0x3a0] sm:$0xff]
        %v2482 = vld [vmem:[#allocation7 + $0x3a8] sm:$0xff]
        %v2483 = vld [vmem:[#allocation7 + $0x3b0] sm:$0xff]
        %v2484 = vld [vmem:[#allocation7 + $0x3b8] sm:$0xff]
        %v2485 = vld [vmem:[#allocation7 + $0x3c0] sm:$0xff]
        %v2486 = vld [vmem:[#allocation7 + $0x3c8] sm:$0xff]
        %v2487 = vld [vmem:[#allocation7 + $0x3d0] sm:$0xff]
        %v2488 = vld [vmem:[#allocation7 + $0x3d8] sm:$0xff]
        %v2489 = vld [vmem:[#allocation7 + $0x3e0] sm:$0xff]
        %v2490 = vld [vmem:[#allocation7 + $0x3e8] sm:$0xff]
        %v2491 = vld [vmem:[#allocation7 + $0x3f0] sm:$0xff]
        %v2492 = vld [vmem:[#allocation7 + $0x3f8] sm:$0xff]
        %v2493 = vld [vmem:[#allocation7 + $0x400] sm:$0xff]
        %v2494 = vld [vmem:[#allocation7 + $0x408] sm:$0xff]
        %v2495 = vld [vmem:[#allocation7 + $0x410] sm:$0xff]
        %v2496 = vld [vmem:[#allocation7 + $0x418] sm:$0xff]
        %v2497 = vld [vmem:[#allocation7 + $0x420] sm:$0xff]
        %v2498 = vld [vmem:[#allocation7 + $0x428] sm:$0xff]
        %v2499 = vld [vmem:[#allocation7 + $0x430] sm:$0xff]
        %v2500 = vld [vmem:[#allocation7 + $0x438] sm:$0xff]
        %v2501 = vld [vmem:[#allocation7 + $0x440] sm:$0xff]
        %v2502 = vld [vmem:[#allocation7 + $0x448] sm:$0xff]
        %v2503 = vld [vmem:[#allocation7 + $0x450] sm:$0xff]
        %v2504 = vld [vmem:[#allocation7 + $0x458] sm:$0xff]
        %v2505 = vld [vmem:[#allocation7 + $0x460] sm:$0xff]
        %v2506 = vld [vmem:[#allocation7 + $0x468] sm:$0xff]
        %v2507 = vld [vmem:[#allocation7 + $0x470] sm:$0xff]
        %v2508 = vld [vmem:[#allocation7 + $0x478] sm:$0xff]
        %v2509 = vld [vmem:[%s4] sm:$0x1]
        %v2511 = vperm.slane %v2509, 0
        %2513 = vmatpush.msra.mxu0 %v2380
        %2514 = vmatpush.msra.mxu0 %v2379
        %2515 = vmatpush.msra.mxu0 %v2378
        %2516 = vmatpush.msra.mxu0 %v2377
        %2517 = vmatpush.msra.mxu0 %v2376
        %2518 = vmatpush.msra.mxu0 %v2375
        %2519 = vmatpush.msra.mxu0 %v2374
        %2520 = vmatpush.msra.mxu0 %v2373
        %2521 = vmatpush.msra.mxu0 %v2372
        %2522 = vmatpush.msra.mxu0 %v2371
        %2523 = vmatpush.msra.mxu0 %v2370
        %2524 = vmatpush.msra.mxu0 %v2369
        %2525 = vmatpush.msra.mxu0 %v2368
        %2526 = vmatpush.msra.mxu0 %v2367
        %2527 = vmatpush.msra.mxu0 %v2366
        %2528 = vmatpush.msra.mxu0 %v2365
        %2529 = vmatmul.f32.gmra.mxu0 %v444
        %v2530 = vpop.f32.mrf.mxu0
        %v2531 = vadd.f32 %v2511, %v2530
        %2532 = vmatmul.f32.gmra.mxu0 %v345
        %v2533 = vpop.f32.mrf.mxu0
        %v2534 = vadd.f32 %v2511, %v2533
        %2535 = vmatmul.f32.gmra.mxu0 %v2077
        %v2536 = vpop.f32.mrf.mxu0
        %v2537 = vadd.f32 %v2511, %v2536
        %2538 = vmatmul.f32.gmra.mxu0 %v1983
        %v2539 = vpop.f32.mrf.mxu0
        %v2540 = vadd.f32 %v2511, %v2539
        %2541 = vmatmul.f32.gmra.mxu0 %v2078
        %v2542 = vpop.f32.mrf.mxu0
        %v2543 = vadd.f32 %v2511, %v2542
        %2544 = vmatmul.f32.gmra.mxu0 %v1986
        %v2545 = vpop.f32.mrf.mxu0
        %v2546 = vadd.f32 %v2511, %v2545
        %2547 = vmatmul.f32.gmra.mxu0 %v2079
        %v2548 = vpop.f32.mrf.mxu0
        %v2549 = vadd.f32 %v2511, %v2548
        %2550 = vmatmul.f32.gmra.mxu0 %v1989
        %v2551 = vpop.f32.mrf.mxu0
        %v2552 = vadd.f32 %v2511, %v2551
        %2553 = vmatmul.f32.gmra.mxu0 %v2080
        %v2554 = vpop.f32.mrf.mxu0
        %v2555 = vadd.f32 %v2511, %v2554
        %2556 = vmatmul.f32.gmra.mxu0 %v1992
        %v2557 = vpop.f32.mrf.mxu0
        %v2558 = vadd.f32 %v2511, %v2557
        %2559 = vmatmul.f32.gmra.mxu0 %v2081
        %v2560 = vpop.f32.mrf.mxu0
        %v2561 = vadd.f32 %v2511, %v2560
        %2562 = vmatmul.f32.gmra.mxu0 %v1995
        %v2563 = vpop.f32.mrf.mxu0
        %v2564 = vadd.f32 %v2511, %v2563
        %2565 = vmatmul.f32.gmra.mxu0 %v2082
        %v2566 = vpop.f32.mrf.mxu0
        %v2567 = vadd.f32 %v2511, %v2566
        %2568 = vmatmul.f32.gmra.mxu0 %v1998
        %v2569 = vpop.f32.mrf.mxu0
        %v2570 = vadd.f32 %v2511, %v2569
        %2571 = vmatmul.f32.gmra.mxu0 %v2083
        %v2572 = vpop.f32.mrf.mxu0
        %v2573 = vadd.f32 %v2511, %v2572
        %2574 = vmatmul.f32.gmra.mxu0 %v2001
        %v2575 = vpop.f32.mrf.mxu0
        %v2576 = vadd.f32 %v2511, %v2575
        %2577 = vmatmul.f32.gmra.mxu0 %v2084
        %v2578 = vpop.f32.mrf.mxu0
        %v2579 = vadd.f32 %v2511, %v2578
        %2580 = vmatmul.f32.gmra.mxu0 %v2004
        %v2581 = vpop.f32.mrf.mxu0
        %v2582 = vadd.f32 %v2511, %v2581
        %2583 = vmatmul.f32.gmra.mxu0 %v2085
        %v2584 = vpop.f32.mrf.mxu0
        %v2585 = vadd.f32 %v2511, %v2584
        %2586 = vmatmul.f32.gmra.mxu0 %v2007
        %v2587 = vpop.f32.mrf.mxu0
        %v2588 = vadd.f32 %v2511, %v2587
        %2589 = vmatmul.f32.gmra.mxu0 %v2086
        %v2590 = vpop.f32.mrf.mxu0
        %v2591 = vadd.f32 %v2511, %v2590
        %2592 = vmatmul.f32.gmra.mxu0 %v2010
        %v2593 = vpop.f32.mrf.mxu0
        %v2594 = vadd.f32 %v2511, %v2593
        %2595 = vmatmul.f32.gmra.mxu0 %v2087
        %v2596 = vpop.f32.mrf.mxu0
        %v2597 = vadd.f32 %v2511, %v2596
        %2598 = vmatmul.f32.gmra.mxu0 %v2013
        %v2599 = vpop.f32.mrf.mxu0
        %v2600 = vadd.f32 %v2511, %v2599
        %2601 = vmatmul.f32.gmra.mxu0 %v2088
        %v2602 = vpop.f32.mrf.mxu0
        %v2603 = vadd.f32 %v2511, %v2602
        %2604 = vmatmul.f32.gmra.mxu0 %v2016
        %v2605 = vpop.f32.mrf.mxu0
        %v2606 = vadd.f32 %v2511, %v2605
        %2607 = vmatmul.f32.gmra.mxu0 %v2089
        %v2608 = vpop.f32.mrf.mxu0
        %v2609 = vadd.f32 %v2511, %v2608
        %2610 = vmatmul.f32.gmra.mxu0 %v2019
        %v2611 = vpop.f32.mrf.mxu0
        %v2612 = vadd.f32 %v2511, %v2611
        %2613 = vmatmul.f32.gmra.mxu0 %v2090
        %v2614 = vpop.f32.mrf.mxu0
        %v2615 = vadd.f32 %v2511, %v2614
        %2616 = vmatmul.f32.gmra.mxu0 %v2022
        %v2617 = vpop.f32.mrf.mxu0
        %v2618 = vadd.f32 %v2511, %v2617
        %2619 = vmatmul.f32.gmra.mxu0 %v2091
        %v2620 = vpop.f32.mrf.mxu0
        %v2621 = vadd.f32 %v2511, %v2620
        %2622 = vmatmul.f32.gmra.mxu0 %v2025
        %v2623 = vpop.f32.mrf.mxu0
        %v2624 = vadd.f32 %v2511, %v2623
        %2625 = vdwg.mxu0
        %2626 = vmatpush.msra.mxu0 %v2396
        %2627 = vmatpush.msra.mxu0 %v2395
        %2628 = vmatpush.msra.mxu0 %v2394
        %2629 = vmatpush.msra.mxu0 %v2393
        %2630 = vmatpush.msra.mxu0 %v2392
        %2631 = vmatpush.msra.mxu0 %v2391
        %2632 = vmatpush.msra.mxu0 %v2390
        %2633 = vmatpush.msra.mxu0 %v2389
        %2634 = vmatpush.msra.mxu0 %v2388
        %2635 = vmatpush.msra.mxu0 %v2387
        %2636 = vmatpush.msra.mxu0 %v2386
        %2637 = vmatpush.msra.mxu0 %v2385
        %2638 = vmatpush.msra.mxu0 %v2384
        %2639 = vmatpush.msra.mxu0 %v2383
        %2640 = vmatpush.msra.mxu0 %v2382
        %2641 = vmatpush.msra.mxu0 %v2381
        %2642 = vmatmul.f32.gmra.mxu0 %v513
        %v2643 = vpop.f32.mrf.mxu0
        %v2644 = vadd.f32 %v2531, %v2643
        %2645 = vmatmul.f32.gmra.mxu0 %v515
        %v2646 = vpop.f32.mrf.mxu0
        %v2647 = vadd.f32 %v2534, %v2646
        %2648 = vmatmul.f32.gmra.mxu0 %v2141
        %v2649 = vpop.f32.mrf.mxu0
        %v2650 = vadd.f32 %v2537, %v2649
        %2651 = vmatmul.f32.gmra.mxu0 %v2143
        %v2652 = vpop.f32.mrf.mxu0
        %v2653 = vadd.f32 %v2540, %v2652
        %2654 = vmatmul.f32.gmra.mxu0 %v2146
        %v2655 = vpop.f32.mrf.mxu0
        %v2656 = vadd.f32 %v2543, %v2655
        %2657 = vmatmul.f32.gmra.mxu0 %v2148
        %v2658 = vpop.f32.mrf.mxu0
        %v2659 = vadd.f32 %v2546, %v2658
        %2660 = vmatmul.f32.gmra.mxu0 %v2151
        %v2661 = vpop.f32.mrf.mxu0
        %v2662 = vadd.f32 %v2549, %v2661
        %2663 = vmatmul.f32.gmra.mxu0 %v2153
        %v2664 = vpop.f32.mrf.mxu0
        %v2665 = vadd.f32 %v2552, %v2664
        %2666 = vmatmul.f32.gmra.mxu0 %v2156
        %v2667 = vpop.f32.mrf.mxu0
        %v2668 = vadd.f32 %v2555, %v2667
        %2669 = vmatmul.f32.gmra.mxu0 %v2158
        %v2670 = vpop.f32.mrf.mxu0
        %v2671 = vadd.f32 %v2558, %v2670
        %2672 = vmatmul.f32.gmra.mxu0 %v2161
        %v2673 = vpop.f32.mrf.mxu0
        %v2674 = vadd.f32 %v2561, %v2673
        %2675 = vmatmul.f32.gmra.mxu0 %v2163
        %v2676 = vpop.f32.mrf.mxu0
        %v2677 = vadd.f32 %v2564, %v2676
        %2678 = vmatmul.f32.gmra.mxu0 %v2166
        %v2679 = vpop.f32.mrf.mxu0
        %v2680 = vadd.f32 %v2567, %v2679
        %2681 = vmatmul.f32.gmra.mxu0 %v2168
        %v2682 = vpop.f32.mrf.mxu0
        %v2683 = vadd.f32 %v2570, %v2682
        %2684 = vmatmul.f32.gmra.mxu0 %v2171
        %v2685 = vpop.f32.mrf.mxu0
        %v2686 = vadd.f32 %v2573, %v2685
        %2687 = vmatmul.f32.gmra.mxu0 %v2173
        %v2688 = vpop.f32.mrf.mxu0
        %v2689 = vadd.f32 %v2576, %v2688
        %2690 = vmatmul.f32.gmra.mxu0 %v2176
        %v2691 = vpop.f32.mrf.mxu0
        %v2692 = vadd.f32 %v2579, %v2691
        %2693 = vmatmul.f32.gmra.mxu0 %v2178
        %v2694 = vpop.f32.mrf.mxu0
        %v2695 = vadd.f32 %v2582, %v2694
        %2696 = vmatmul.f32.gmra.mxu0 %v2181
        %v2697 = vpop.f32.mrf.mxu0
        %v2698 = vadd.f32 %v2585, %v2697
        %2699 = vmatmul.f32.gmra.mxu0 %v2183
        %v2700 = vpop.f32.mrf.mxu0
        %v2701 = vadd.f32 %v2588, %v2700
        %2702 = vmatmul.f32.gmra.mxu0 %v2186
        %v2703 = vpop.f32.mrf.mxu0
        %v2704 = vadd.f32 %v2591, %v2703
        %2705 = vmatmul.f32.gmra.mxu0 %v2188
        %v2706 = vpop.f32.mrf.mxu0
        %v2707 = vadd.f32 %v2594, %v2706
        %2708 = vmatmul.f32.gmra.mxu0 %v2191
        %v2709 = vpop.f32.mrf.mxu0
        %v2710 = vadd.f32 %v2597, %v2709
        %2711 = vmatmul.f32.gmra.mxu0 %v2193
        %v2712 = vpop.f32.mrf.mxu0
        %v2713 = vadd.f32 %v2600, %v2712
        %2714 = vmatmul.f32.gmra.mxu0 %v2196
        %v2715 = vpop.f32.mrf.mxu0
        %v2716 = vadd.f32 %v2603, %v2715
        %2717 = vmatmul.f32.gmra.mxu0 %v2198
        %v2718 = vpop.f32.mrf.mxu0
        %v2719 = vadd.f32 %v2606, %v2718
        %2720 = vmatmul.f32.gmra.mxu0 %v2201
        %v2721 = vpop.f32.mrf.mxu0
        %v2722 = vadd.f32 %v2609, %v2721
        %2723 = vmatmul.f32.gmra.mxu0 %v2203
        %v2724 = vpop.f32.mrf.mxu0
        %v2725 = vadd.f32 %v2612, %v2724
        %2726 = vmatmul.f32.gmra.mxu0 %v2206
        %v2727 = vpop.f32.mrf.mxu0
        %v2728 = vadd.f32 %v2615, %v2727
        %2729 = vmatmul.f32.gmra.mxu0 %v2208
        %v2730 = vpop.f32.mrf.mxu0
        %v2731 = vadd.f32 %v2618, %v2730
        %2732 = vmatmul.f32.gmra.mxu0 %v2211
        %v2733 = vpop.f32.mrf.mxu0
        %v2734 = vadd.f32 %v2621, %v2733
        %2735 = vmatmul.f32.gmra.mxu0 %v2213
        %v2736 = vpop.f32.mrf.mxu0
        %v2737 = vadd.f32 %v2624, %v2736
        %2738 = vdwg.mxu0
        %2739 = vmatpush.msra.mxu0 %v2412
        %2740 = vmatpush.msra.mxu0 %v2411
        %2741 = vmatpush.msra.mxu0 %v2410
        %2742 = vmatpush.msra.mxu0 %v2409
        %2743 = vmatpush.msra.mxu0 %v2408
        %2744 = vmatpush.msra.mxu0 %v2407
        %2745 = vmatpush.msra.mxu0 %v2406
        %2746 = vmatpush.msra.mxu0 %v2405
        %2747 = vmatpush.msra.mxu0 %v2404
        %2748 = vmatpush.msra.mxu0 %v2403
        %2749 = vmatpush.msra.mxu0 %v2402
        %2750 = vmatpush.msra.mxu0 %v2401
        %2751 = vmatpush.msra.mxu0 %v2400
        %2752 = vmatpush.msra.mxu0 %v2399
        %2753 = vmatpush.msra.mxu0 %v2398
        %2754 = vmatpush.msra.mxu0 %v2397
        %2755 = vmatmul.f32.gmra.mxu0 %v626
        %v2756 = vpop.f32.mrf.mxu0
        %v2757 = vadd.f32 %v2644, %v2756
        %2758 = vmatmul.f32.gmra.mxu0 %v628
        %v2759 = vpop.f32.mrf.mxu0
        %v2760 = vadd.f32 %v2647, %v2759
        %2761 = vmatmul.f32.gmra.mxu0 %v2246
        %v2762 = vpop.f32.mrf.mxu0
        %v2763 = vadd.f32 %v2650, %v2762
        %2764 = vmatmul.f32.gmra.mxu0 %v2248
        %v2765 = vpop.f32.mrf.mxu0
        %v2766 = vadd.f32 %v2653, %v2765
        %2767 = vmatmul.f32.gmra.mxu0 %v2251
        %v2768 = vpop.f32.mrf.mxu0
        %v2769 = vadd.f32 %v2656, %v2768
        %2770 = vmatmul.f32.gmra.mxu0 %v2253
        %v2771 = vpop.f32.mrf.mxu0
        %v2772 = vadd.f32 %v2659, %v2771
        %2773 = vmatmul.f32.gmra.mxu0 %v2256
        %v2774 = vpop.f32.mrf.mxu0
        %v2775 = vadd.f32 %v2662, %v2774
        %2776 = vmatmul.f32.gmra.mxu0 %v2258
        %v2777 = vpop.f32.mrf.mxu0
        %v2778 = vadd.f32 %v2665, %v2777
        %2779 = vmatmul.f32.gmra.mxu0 %v2261
        %v2780 = vpop.f32.mrf.mxu0
        %v2781 = vadd.f32 %v2668, %v2780
        %2782 = vmatmul.f32.gmra.mxu0 %v2263
        %v2783 = vpop.f32.mrf.mxu0
        %v2784 = vadd.f32 %v2671, %v2783
        %2785 = vmatmul.f32.gmra.mxu0 %v2266
        %v2786 = vpop.f32.mrf.mxu0
        %v2787 = vadd.f32 %v2674, %v2786
        %2788 = vmatmul.f32.gmra.mxu0 %v2268
        %v2789 = vpop.f32.mrf.mxu0
        %v2790 = vadd.f32 %v2677, %v2789
        %2791 = vmatmul.f32.gmra.mxu0 %v2271
        %v2792 = vpop.f32.mrf.mxu0
        %v2793 = vadd.f32 %v2680, %v2792
        %2794 = vmatmul.f32.gmra.mxu0 %v2273
        %v2795 = vpop.f32.mrf.mxu0
        %v2796 = vadd.f32 %v2683, %v2795
        %2797 = vmatmul.f32.gmra.mxu0 %v2276
        %v2798 = vpop.f32.mrf.mxu0
        %v2799 = vadd.f32 %v2686, %v2798
        %2800 = vmatmul.f32.gmra.mxu0 %v2278
        %v2801 = vpop.f32.mrf.mxu0
        %v2802 = vadd.f32 %v2689, %v2801
        %2803 = vmatmul.f32.gmra.mxu0 %v2281
        %v2804 = vpop.f32.mrf.mxu0
        %v2805 = vadd.f32 %v2692, %v2804
        %2806 = vmatmul.f32.gmra.mxu0 %v2283
        %v2807 = vpop.f32.mrf.mxu0
        %v2808 = vadd.f32 %v2695, %v2807
        %2809 = vmatmul.f32.gmra.mxu0 %v2286
        %v2810 = vpop.f32.mrf.mxu0
        %v2811 = vadd.f32 %v2698, %v2810
        %2812 = vmatmul.f32.gmra.mxu0 %v2288
        %v2813 = vpop.f32.mrf.mxu0
        %v2814 = vadd.f32 %v2701, %v2813
        %2815 = vmatmul.f32.gmra.mxu0 %v2291
        %v2816 = vpop.f32.mrf.mxu0
        %v2817 = vadd.f32 %v2704, %v2816
        %2818 = vmatmul.f32.gmra.mxu0 %v2293
        %v2819 = vpop.f32.mrf.mxu0
        %v2820 = vadd.f32 %v2707, %v2819
        %2821 = vmatmul.f32.gmra.mxu0 %v2296
        %v2822 = vpop.f32.mrf.mxu0
        %v2823 = vadd.f32 %v2710, %v2822
        %2824 = vmatmul.f32.gmra.mxu0 %v2298
        %v2825 = vpop.f32.mrf.mxu0
        %v2826 = vadd.f32 %v2713, %v2825
        %2827 = vmatmul.f32.gmra.mxu0 %v2301
        %v2828 = vpop.f32.mrf.mxu0
        %v2829 = vadd.f32 %v2716, %v2828
        %2830 = vmatmul.f32.gmra.mxu0 %v2303
        %v2831 = vpop.f32.mrf.mxu0
        %v2832 = vadd.f32 %v2719, %v2831
        %2833 = vmatmul.f32.gmra.mxu0 %v2306
        %v2834 = vpop.f32.mrf.mxu0
        %v2835 = vadd.f32 %v2722, %v2834
        %2836 = vmatmul.f32.gmra.mxu0 %v2308
        %v2837 = vpop.f32.mrf.mxu0
        %v2838 = vadd.f32 %v2725, %v2837
        %2839 = vmatmul.f32.gmra.mxu0 %v2311
        %v2840 = vpop.f32.mrf.mxu0
        %v2841 = vadd.f32 %v2728, %v2840
        %2842 = vmatmul.f32.gmra.mxu0 %v2313
        %v2843 = vpop.f32.mrf.mxu0
        %v2844 = vadd.f32 %v2731, %v2843
        %2845 = vmatmul.f32.gmra.mxu0 %v2316
        %v2846 = vpop.f32.mrf.mxu0
        %v2847 = vadd.f32 %v2734, %v2846
        %2848 = vmatmul.f32.gmra.mxu0 %v2318
        %v2849 = vpop.f32.mrf.mxu0
        %v2850 = vadd.f32 %v2737, %v2849
        %2851 = vdwg.mxu0
        %2852 = vmatpush.msra.mxu0 %v2428
        %2853 = vmatpush.msra.mxu0 %v2427
        %2854 = vmatpush.msra.mxu0 %v2426
        %2855 = vmatpush.msra.mxu0 %v2425
        %2856 = vmatpush.msra.mxu0 %v2424
        %2857 = vmatpush.msra.mxu0 %v2423
        %2858 = vmatpush.msra.mxu0 %v2422
        %2859 = vmatpush.msra.mxu0 %v2421
        %2860 = vmatpush.msra.mxu0 %v2420
        %2861 = vmatpush.msra.mxu0 %v2419
        %2862 = vmatpush.msra.mxu0 %v2418
        %2863 = vmatpush.msra.mxu0 %v2417
        %2864 = vmatpush.msra.mxu0 %v2416
        %2865 = vmatpush.msra.mxu0 %v2415
        %2866 = vmatpush.msra.mxu0 %v2414
        %2867 = vmatpush.msra.mxu0 %v2413
        %2868 = vmatmul.f32.gmra.mxu0 %v2077
        %v2869 = vpop.f32.mrf.mxu0
        %v2870 = vadd.f32 %v2757, %v2869
        %2871 = vmatmul.f32.gmra.mxu0 %v1983
        %v2872 = vpop.f32.mrf.mxu0
        %v2873 = vadd.f32 %v2760, %v2872
        %2874 = vmatmul.f32.gmra.mxu0 %v2078
        %v2875 = vpop.f32.mrf.mxu0
        %v2876 = vadd.f32 %v2763, %v2875
        %2877 = vmatmul.f32.gmra.mxu0 %v1986
        %v2878 = vpop.f32.mrf.mxu0
        %v2879 = vadd.f32 %v2766, %v2878
        %2880 = vmatmul.f32.gmra.mxu0 %v2079
        %v2881 = vpop.f32.mrf.mxu0
        %v2882 = vadd.f32 %v2769, %v2881
        %2883 = vmatmul.f32.gmra.mxu0 %v1989
        %v2884 = vpop.f32.mrf.mxu0
        %v2885 = vadd.f32 %v2772, %v2884
        %2886 = vmatmul.f32.gmra.mxu0 %v2080
        %v2887 = vpop.f32.mrf.mxu0
        %v2888 = vadd.f32 %v2775, %v2887
        %2889 = vmatmul.f32.gmra.mxu0 %v1992
        %v2890 = vpop.f32.mrf.mxu0
        %v2891 = vadd.f32 %v2778, %v2890
        %2892 = vmatmul.f32.gmra.mxu0 %v2081
        %v2893 = vpop.f32.mrf.mxu0
        %v2894 = vadd.f32 %v2781, %v2893
        %2895 = vmatmul.f32.gmra.mxu0 %v1995
        %v2896 = vpop.f32.mrf.mxu0
        %v2897 = vadd.f32 %v2784, %v2896
        %2898 = vmatmul.f32.gmra.mxu0 %v2082
        %v2899 = vpop.f32.mrf.mxu0
        %v2900 = vadd.f32 %v2787, %v2899
        %2901 = vmatmul.f32.gmra.mxu0 %v1998
        %v2902 = vpop.f32.mrf.mxu0
        %v2903 = vadd.f32 %v2790, %v2902
        %2904 = vmatmul.f32.gmra.mxu0 %v2083
        %v2905 = vpop.f32.mrf.mxu0
        %v2906 = vadd.f32 %v2793, %v2905
        %2907 = vmatmul.f32.gmra.mxu0 %v2001
        %v2908 = vpop.f32.mrf.mxu0
        %v2909 = vadd.f32 %v2796, %v2908
        %2910 = vmatmul.f32.gmra.mxu0 %v2084
        %v2911 = vpop.f32.mrf.mxu0
        %v2912 = vadd.f32 %v2799, %v2911
        %2913 = vmatmul.f32.gmra.mxu0 %v2004
        %v2914 = vpop.f32.mrf.mxu0
        %v2915 = vadd.f32 %v2802, %v2914
        %2916 = vmatmul.f32.gmra.mxu0 %v2085
        %v2917 = vpop.f32.mrf.mxu0
        %v2918 = vadd.f32 %v2805, %v2917
        %2919 = vmatmul.f32.gmra.mxu0 %v2007
        %v2920 = vpop.f32.mrf.mxu0
        %v2921 = vadd.f32 %v2808, %v2920
        %2922 = vmatmul.f32.gmra.mxu0 %v2086
        %v2923 = vpop.f32.mrf.mxu0
        %v2924 = vadd.f32 %v2811, %v2923
        %2925 = vmatmul.f32.gmra.mxu0 %v2010
        %v2926 = vpop.f32.mrf.mxu0
        %v2927 = vadd.f32 %v2814, %v2926
        %2928 = vmatmul.f32.gmra.mxu0 %v2087
        %v2929 = vpop.f32.mrf.mxu0
        %v2930 = vadd.f32 %v2817, %v2929
        %2931 = vmatmul.f32.gmra.mxu0 %v2013
        %v2932 = vpop.f32.mrf.mxu0
        %v2933 = vadd.f32 %v2820, %v2932
        %2934 = vmatmul.f32.gmra.mxu0 %v2088
        %v2935 = vpop.f32.mrf.mxu0
        %v2936 = vadd.f32 %v2823, %v2935
        %2937 = vmatmul.f32.gmra.mxu0 %v2016
        %v2938 = vpop.f32.mrf.mxu0
        %v2939 = vadd.f32 %v2826, %v2938
        %2940 = vmatmul.f32.gmra.mxu0 %v2089
        %v2941 = vpop.f32.mrf.mxu0
        %v2942 = vadd.f32 %v2829, %v2941
        %2943 = vmatmul.f32.gmra.mxu0 %v2019
        %v2944 = vpop.f32.mrf.mxu0
        %v2945 = vadd.f32 %v2832, %v2944
        %2946 = vmatmul.f32.gmra.mxu0 %v2090
        %v2947 = vpop.f32.mrf.mxu0
        %v2948 = vadd.f32 %v2835, %v2947
        %2949 = vmatmul.f32.gmra.mxu0 %v2022
        %v2950 = vpop.f32.mrf.mxu0
        %v2951 = vadd.f32 %v2838, %v2950
        %2952 = vmatmul.f32.gmra.mxu0 %v2091
        %v2953 = vpop.f32.mrf.mxu0
        %v2954 = vadd.f32 %v2841, %v2953
        %2955 = vmatmul.f32.gmra.mxu0 %v2025
        %v2956 = vpop.f32.mrf.mxu0
        %v2957 = vadd.f32 %v2844, %v2956
        %2958 = vmatmul.f32.gmra.mxu0 %v2092
        %v2959 = vpop.f32.mrf.mxu0
        %v2960 = vadd.f32 %v2847, %v2959
        %2961 = vmatmul.f32.gmra.mxu0 %v2028
        %v2962 = vpop.f32.mrf.mxu0
        %v2963 = vadd.f32 %v2850, %v2962
        %2964 = vdwg.mxu0
        %2965 = vmatpush.msra.mxu0 %v2444
        %2966 = vmatpush.msra.mxu0 %v2443
        %2967 = vmatpush.msra.mxu0 %v2442
        %2968 = vmatpush.msra.mxu0 %v2441
        %2969 = vmatpush.msra.mxu0 %v2440
        %2970 = vmatpush.msra.mxu0 %v2439
        %2971 = vmatpush.msra.mxu0 %v2438
        %2972 = vmatpush.msra.mxu0 %v2437
        %2973 = vmatpush.msra.mxu0 %v2436
        %2974 = vmatpush.msra.mxu0 %v2435
        %2975 = vmatpush.msra.mxu0 %v2434
        %2976 = vmatpush.msra.mxu0 %v2433
        %2977 = vmatpush.msra.mxu0 %v2432
        %2978 = vmatpush.msra.mxu0 %v2431
        %2979 = vmatpush.msra.mxu0 %v2430
        %2980 = vmatpush.msra.mxu0 %v2429
        %2981 = vmatmul.f32.gmra.mxu0 %v2141
        %v2982 = vpop.f32.mrf.mxu0
        %v2983 = vadd.f32 %v2870, %v2982
        %2984 = vmatmul.f32.gmra.mxu0 %v2143
        %v2985 = vpop.f32.mrf.mxu0
        %v2986 = vadd.f32 %v2873, %v2985
        %2987 = vmatmul.f32.gmra.mxu0 %v2146
        %v2988 = vpop.f32.mrf.mxu0
        %v2989 = vadd.f32 %v2876, %v2988
        %2990 = vmatmul.f32.gmra.mxu0 %v2148
        %v2991 = vpop.f32.mrf.mxu0
        %v2992 = vadd.f32 %v2879, %v2991
        %2993 = vmatmul.f32.gmra.mxu0 %v2151
        %v2994 = vpop.f32.mrf.mxu0
        %v2995 = vadd.f32 %v2882, %v2994
        %2996 = vmatmul.f32.gmra.mxu0 %v2153
        %v2997 = vpop.f32.mrf.mxu0
        %v2998 = vadd.f32 %v2885, %v2997
        %2999 = vmatmul.f32.gmra.mxu0 %v2156
        %v3000 = vpop.f32.mrf.mxu0
        %v3001 = vadd.f32 %v2888, %v3000
        %3002 = vmatmul.f32.gmra.mxu0 %v2158
        %v3003 = vpop.f32.mrf.mxu0
        %v3004 = vadd.f32 %v2891, %v3003
        %3005 = vmatmul.f32.gmra.mxu0 %v2161
        %v3006 = vpop.f32.mrf.mxu0
        %v3007 = vadd.f32 %v2894, %v3006
        %3008 = vmatmul.f32.gmra.mxu0 %v2163
        %v3009 = vpop.f32.mrf.mxu0
        %v3010 = vadd.f32 %v2897, %v3009
        %3011 = vmatmul.f32.gmra.mxu0 %v2166
        %v3012 = vpop.f32.mrf.mxu0
        %v3013 = vadd.f32 %v2900, %v3012
        %3014 = vmatmul.f32.gmra.mxu0 %v2168
        %v3015 = vpop.f32.mrf.mxu0
        %v3016 = vadd.f32 %v2903, %v3015
        %3017 = vmatmul.f32.gmra.mxu0 %v2171
        %v3018 = vpop.f32.mrf.mxu0
        %v3019 = vadd.f32 %v2906, %v3018
        %3020 = vmatmul.f32.gmra.mxu0 %v2173
        %v3021 = vpop.f32.mrf.mxu0
        %v3022 = vadd.f32 %v2909, %v3021
        %3023 = vmatmul.f32.gmra.mxu0 %v2176
        %v3024 = vpop.f32.mrf.mxu0
        %v3025 = vadd.f32 %v2912, %v3024
        %3026 = vmatmul.f32.gmra.mxu0 %v2178
        %v3027 = vpop.f32.mrf.mxu0
        %v3028 = vadd.f32 %v2915, %v3027
        %3029 = vmatmul.f32.gmra.mxu0 %v2181
        %v3030 = vpop.f32.mrf.mxu0
        %v3031 = vadd.f32 %v2918, %v3030
        %3032 = vmatmul.f32.gmra.mxu0 %v2183
        %v3033 = vpop.f32.mrf.mxu0
        %v3034 = vadd.f32 %v2921, %v3033
        %3035 = vmatmul.f32.gmra.mxu0 %v2186
        %v3036 = vpop.f32.mrf.mxu0
        %v3037 = vadd.f32 %v2924, %v3036
        %3038 = vmatmul.f32.gmra.mxu0 %v2188
        %v3039 = vpop.f32.mrf.mxu0
        %v3040 = vadd.f32 %v2927, %v3039
        %3041 = vmatmul.f32.gmra.mxu0 %v2191
        %v3042 = vpop.f32.mrf.mxu0
        %v3043 = vadd.f32 %v2930, %v3042
        %3044 = vmatmul.f32.gmra.mxu0 %v2193
        %v3045 = vpop.f32.mrf.mxu0
        %v3046 = vadd.f32 %v2933, %v3045
        %3047 = vmatmul.f32.gmra.mxu0 %v2196
        %v3048 = vpop.f32.mrf.mxu0
        %v3049 = vadd.f32 %v2936, %v3048
        %3050 = vmatmul.f32.gmra.mxu0 %v2198
        %v3051 = vpop.f32.mrf.mxu0
        %v3052 = vadd.f32 %v2939, %v3051
        %3053 = vmatmul.f32.gmra.mxu0 %v2201
        %v3054 = vpop.f32.mrf.mxu0
        %v3055 = vadd.f32 %v2942, %v3054
        %3056 = vmatmul.f32.gmra.mxu0 %v2203
        %v3057 = vpop.f32.mrf.mxu0
        %v3058 = vadd.f32 %v2945, %v3057
        %3059 = vmatmul.f32.gmra.mxu0 %v2206
        %v3060 = vpop.f32.mrf.mxu0
        %v3061 = vadd.f32 %v2948, %v3060
        %3062 = vmatmul.f32.gmra.mxu0 %v2208
        %v3063 = vpop.f32.mrf.mxu0
        %v3064 = vadd.f32 %v2951, %v3063
        %3065 = vmatmul.f32.gmra.mxu0 %v2211
        %v3066 = vpop.f32.mrf.mxu0
        %v3067 = vadd.f32 %v2954, %v3066
        %3068 = vmatmul.f32.gmra.mxu0 %v2213
        %v3069 = vpop.f32.mrf.mxu0
        %v3070 = vadd.f32 %v2957, %v3069
        %3071 = vmatmul.f32.gmra.mxu0 %v2353
        %v3072 = vpop.f32.mrf.mxu0
        %v3073 = vadd.f32 %v2960, %v3072
        %3074 = vmatmul.f32.gmra.mxu0 %v2355
        %v3075 = vpop.f32.mrf.mxu0
        %v3076 = vadd.f32 %v2963, %v3075
        %3077 = vdwg.mxu0
        %3078 = vmatpush.msra.mxu0 %v2460
        %3079 = vmatpush.msra.mxu0 %v2459
        %3080 = vmatpush.msra.mxu0 %v2458
        %3081 = vmatpush.msra.mxu0 %v2457
        %3082 = vmatpush.msra.mxu0 %v2456
        %3083 = vmatpush.msra.mxu0 %v2455
        %3084 = vmatpush.msra.mxu0 %v2454
        %3085 = vmatpush.msra.mxu0 %v2453
        %3086 = vmatpush.msra.mxu0 %v2452
        %3087 = vmatpush.msra.mxu0 %v2451
        %3088 = vmatpush.msra.mxu0 %v2450
        %3089 = vmatpush.msra.mxu0 %v2449
        %3090 = vmatpush.msra.mxu0 %v2448
        %3091 = vmatpush.msra.mxu0 %v2447
        %3092 = vmatpush.msra.mxu0 %v2446
        %3093 = vmatpush.msra.mxu0 %v2445
        %3094 = vmatmul.f32.gmra.mxu0 %v2246
        %v3095 = vpop.f32.mrf.mxu0
        %v3096 = vadd.f32 %v2983, %v3095
        %3097 = vmatmul.f32.gmra.mxu0 %v2248
        %v3098 = vpop.f32.mrf.mxu0
        %v3099 = vadd.f32 %v2986, %v3098
        %3100 = vmatmul.f32.gmra.mxu0 %v2251
        %v3101 = vpop.f32.mrf.mxu0
        %v3102 = vadd.f32 %v2989, %v3101
        %3103 = vmatmul.f32.gmra.mxu0 %v2253
        %v3104 = vpop.f32.mrf.mxu0
        %v3105 = vadd.f32 %v2992, %v3104
        %3106 = vmatmul.f32.gmra.mxu0 %v2256
        %v3107 = vpop.f32.mrf.mxu0
        %v3108 = vadd.f32 %v2995, %v3107
        %3109 = vmatmul.f32.gmra.mxu0 %v2258
        %v3110 = vpop.f32.mrf.mxu0
        %v3111 = vadd.f32 %v2998, %v3110
        %3112 = vmatmul.f32.gmra.mxu0 %v2261
        %v3113 = vpop.f32.mrf.mxu0
        %v3114 = vadd.f32 %v3001, %v3113
        %3115 = vmatmul.f32.gmra.mxu0 %v2263
        %v3116 = vpop.f32.mrf.mxu0
        %v3117 = vadd.f32 %v3004, %v3116
        %3118 = vmatmul.f32.gmra.mxu0 %v2266
        %v3119 = vpop.f32.mrf.mxu0
        %v3120 = vadd.f32 %v3007, %v3119
        %3121 = vmatmul.f32.gmra.mxu0 %v2268
        %v3122 = vpop.f32.mrf.mxu0
        %v3123 = vadd.f32 %v3010, %v3122
        %3124 = vmatmul.f32.gmra.mxu0 %v2271
        %v3125 = vpop.f32.mrf.mxu0
        %v3126 = vadd.f32 %v3013, %v3125
        %3127 = vmatmul.f32.gmra.mxu0 %v2273
        %v3128 = vpop.f32.mrf.mxu0
        %v3129 = vadd.f32 %v3016, %v3128
        %3130 = vmatmul.f32.gmra.mxu0 %v2276
        %v3131 = vpop.f32.mrf.mxu0
        %v3132 = vadd.f32 %v3019, %v3131
        %3133 = vmatmul.f32.gmra.mxu0 %v2278
        %v3134 = vpop.f32.mrf.mxu0
        %v3135 = vadd.f32 %v3022, %v3134
        %3136 = vmatmul.f32.gmra.mxu0 %v2281
        %v3137 = vpop.f32.mrf.mxu0
        %v3138 = vadd.f32 %v3025, %v3137
        %3139 = vmatmul.f32.gmra.mxu0 %v2283
        %v3140 = vpop.f32.mrf.mxu0
        %v3141 = vadd.f32 %v3028, %v3140
        %3142 = vmatmul.f32.gmra.mxu0 %v2286
        %v3143 = vpop.f32.mrf.mxu0
        %v3144 = vadd.f32 %v3031, %v3143
        %3145 = vmatmul.f32.gmra.mxu0 %v2288
        %v3146 = vpop.f32.mrf.mxu0
        %v3147 = vadd.f32 %v3034, %v3146
        %3148 = vmatmul.f32.gmra.mxu0 %v2291
        %v3149 = vpop.f32.mrf.mxu0
        %v3150 = vadd.f32 %v3037, %v3149
        %3151 = vmatmul.f32.gmra.mxu0 %v2293
        %v3152 = vpop.f32.mrf.mxu0
        %v3153 = vadd.f32 %v3040, %v3152
        %3154 = vmatmul.f32.gmra.mxu0 %v2296
        %v3155 = vpop.f32.mrf.mxu0
        %v3156 = vadd.f32 %v3043, %v3155
        %3157 = vmatmul.f32.gmra.mxu0 %v2298
        %v3158 = vpop.f32.mrf.mxu0
        %v3159 = vadd.f32 %v3046, %v3158
        %3160 = vmatmul.f32.gmra.mxu0 %v2301
        %v3161 = vpop.f32.mrf.mxu0
        %v3162 = vadd.f32 %v3049, %v3161
        %3163 = vmatmul.f32.gmra.mxu0 %v2303
        %v3164 = vpop.f32.mrf.mxu0
        %v3165 = vadd.f32 %v3052, %v3164
        %3166 = vmatmul.f32.gmra.mxu0 %v2306
        %v3167 = vpop.f32.mrf.mxu0
        %v3168 = vadd.f32 %v3055, %v3167
        %3169 = vmatmul.f32.gmra.mxu0 %v2308
        %v3170 = vpop.f32.mrf.mxu0
        %v3171 = vadd.f32 %v3058, %v3170
        %3172 = vmatmul.f32.gmra.mxu0 %v2311
        %v3173 = vpop.f32.mrf.mxu0
        %v3174 = vadd.f32 %v3061, %v3173
        %3175 = vmatmul.f32.gmra.mxu0 %v2313
        %v3176 = vpop.f32.mrf.mxu0
        %v3177 = vadd.f32 %v3064, %v3176
        %3178 = vmatmul.f32.gmra.mxu0 %v2316
        %v3179 = vpop.f32.mrf.mxu0
        %v3180 = vadd.f32 %v3067, %v3179
        %3181 = vmatmul.f32.gmra.mxu0 %v2318
        %v3182 = vpop.f32.mrf.mxu0
        %v3183 = vadd.f32 %v3070, %v3182
        %3184 = vmatmul.f32.gmra.mxu0 %v2360
        %v3185 = vpop.f32.mrf.mxu0
        %v3186 = vadd.f32 %v3073, %v3185
        %3187 = vmatmul.f32.gmra.mxu0 %v2362
        %v3188 = vpop.f32.mrf.mxu0
        %v3189 = vadd.f32 %v3076, %v3188
        %3190 = vdwg.mxu0
        %3191 = vmatpush.msra.mxu0 %v2476
        %3192 = vmatpush.msra.mxu0 %v2475
        %3193 = vmatpush.msra.mxu0 %v2474
        %3194 = vmatpush.msra.mxu0 %v2473
        %3195 = vmatpush.msra.mxu0 %v2472
        %3196 = vmatpush.msra.mxu0 %v2471
        %3197 = vmatpush.msra.mxu0 %v2470
        %3198 = vmatpush.msra.mxu0 %v2469
        %3199 = vmatpush.msra.mxu0 %v2468
        %3200 = vmatpush.msra.mxu0 %v2467
        %3201 = vmatpush.msra.mxu0 %v2466
        %3202 = vmatpush.msra.mxu0 %v2465
        %3203 = vmatpush.msra.mxu0 %v2464
        %3204 = vmatpush.msra.mxu0 %v2463
        %3205 = vmatpush.msra.mxu0 %v2462
        %3206 = vmatpush.msra.mxu0 %v2461
        %3207 = vmatmul.f32.gmra.mxu0 %v2078
        %v3208 = vpop.f32.mrf.mxu0
        %v3209 = vadd.f32 %v3096, %v3208
        %3210 = vmatmul.f32.gmra.mxu0 %v1986
        %v3211 = vpop.f32.mrf.mxu0
        %v3212 = vadd.f32 %v3099, %v3211
        %3213 = vmatmul.f32.gmra.mxu0 %v2079
        %v3214 = vpop.f32.mrf.mxu0
        %v3215 = vadd.f32 %v3102, %v3214
        %3216 = vmatmul.f32.gmra.mxu0 %v1989
        %v3217 = vpop.f32.mrf.mxu0
        %v3218 = vadd.f32 %v3105, %v3217
        %3219 = vmatmul.f32.gmra.mxu0 %v2080
        %v3220 = vpop.f32.mrf.mxu0
        %v3221 = vadd.f32 %v3108, %v3220
        %3222 = vmatmul.f32.gmra.mxu0 %v1992
        %v3223 = vpop.f32.mrf.mxu0
        %v3224 = vadd.f32 %v3111, %v3223
        %3225 = vmatmul.f32.gmra.mxu0 %v2081
        %v3226 = vpop.f32.mrf.mxu0
        %v3227 = vadd.f32 %v3114, %v3226
        %3228 = vmatmul.f32.gmra.mxu0 %v1995
        %v3229 = vpop.f32.mrf.mxu0
        %v3230 = vadd.f32 %v3117, %v3229
        %3231 = vmatmul.f32.gmra.mxu0 %v2082
        %v3232 = vpop.f32.mrf.mxu0
        %v3233 = vadd.f32 %v3120, %v3232
        %3234 = vmatmul.f32.gmra.mxu0 %v1998
        %v3235 = vpop.f32.mrf.mxu0
        %v3236 = vadd.f32 %v3123, %v3235
        %3237 = vmatmul.f32.gmra.mxu0 %v2083
        %v3238 = vpop.f32.mrf.mxu0
        %v3239 = vadd.f32 %v3126, %v3238
        %3240 = vmatmul.f32.gmra.mxu0 %v2001
        %v3241 = vpop.f32.mrf.mxu0
        %v3242 = vadd.f32 %v3129, %v3241
        %3243 = vmatmul.f32.gmra.mxu0 %v2084
        %v3244 = vpop.f32.mrf.mxu0
        %v3245 = vadd.f32 %v3132, %v3244
        %3246 = vmatmul.f32.gmra.mxu0 %v2004
        %v3247 = vpop.f32.mrf.mxu0
        %v3248 = vadd.f32 %v3135, %v3247
        %3249 = vmatmul.f32.gmra.mxu0 %v2085
        %v3250 = vpop.f32.mrf.mxu0
        %v3251 = vadd.f32 %v3138, %v3250
        %3252 = vmatmul.f32.gmra.mxu0 %v2007
        %v3253 = vpop.f32.mrf.mxu0
        %v3254 = vadd.f32 %v3141, %v3253
        %3255 = vmatmul.f32.gmra.mxu0 %v2086
        %v3256 = vpop.f32.mrf.mxu0
        %v3257 = vadd.f32 %v3144, %v3256
        %3258 = vmatmul.f32.gmra.mxu0 %v2010
        %v3259 = vpop.f32.mrf.mxu0
        %v3260 = vadd.f32 %v3147, %v3259
        %3261 = vmatmul.f32.gmra.mxu0 %v2087
        %v3262 = vpop.f32.mrf.mxu0
        %v3263 = vadd.f32 %v3150, %v3262
        %3264 = vmatmul.f32.gmra.mxu0 %v2013
        %v3265 = vpop.f32.mrf.mxu0
        %v3266 = vadd.f32 %v3153, %v3265
        %3267 = vmatmul.f32.gmra.mxu0 %v2088
        %v3268 = vpop.f32.mrf.mxu0
        %v3269 = vadd.f32 %v3156, %v3268
        %3270 = vmatmul.f32.gmra.mxu0 %v2016
        %v3271 = vpop.f32.mrf.mxu0
        %v3272 = vadd.f32 %v3159, %v3271
        %3273 = vmatmul.f32.gmra.mxu0 %v2089
        %v3274 = vpop.f32.mrf.mxu0
        %v3275 = vadd.f32 %v3162, %v3274
        %3276 = vmatmul.f32.gmra.mxu0 %v2019
        %v3277 = vpop.f32.mrf.mxu0
        %v3278 = vadd.f32 %v3165, %v3277
        %3279 = vmatmul.f32.gmra.mxu0 %v2090
        %v3280 = vpop.f32.mrf.mxu0
        %v3281 = vadd.f32 %v3168, %v3280
        %3282 = vmatmul.f32.gmra.mxu0 %v2022
        %v3283 = vpop.f32.mrf.mxu0
        %v3284 = vadd.f32 %v3171, %v3283
        %3285 = vmatmul.f32.gmra.mxu0 %v2091
        %v3286 = vpop.f32.mrf.mxu0
        %v3287 = vadd.f32 %v3174, %v3286
        %3288 = vmatmul.f32.gmra.mxu0 %v2025
        %v3289 = vpop.f32.mrf.mxu0
        %v3290 = vadd.f32 %v3177, %v3289
        %3291 = vmatmul.f32.gmra.mxu0 %v2092
        %v3292 = vpop.f32.mrf.mxu0
        %v3293 = vadd.f32 %v3180, %v3292
        %3294 = vmatmul.f32.gmra.mxu0 %v2028
        %v3295 = vpop.f32.mrf.mxu0
        %v3296 = vadd.f32 %v3183, %v3295
        %3297 = vmatmul.f32.gmra.mxu0 %v444
        %v3298 = vpop.f32.mrf.mxu0
        %v3299 = vadd.f32 %v3186, %v3298
        %3300 = vmatmul.f32.gmra.mxu0 %v345
        %v3301 = vpop.f32.mrf.mxu0
        %v3302 = vadd.f32 %v3189, %v3301
        %3303 = vdwg.mxu0
        %3304 = vmatpush.msra.mxu0 %v2492
        %3305 = vmatpush.msra.mxu0 %v2491
        %3306 = vmatpush.msra.mxu0 %v2490
        %3307 = vmatpush.msra.mxu0 %v2489
        %3308 = vmatpush.msra.mxu0 %v2488
        %3309 = vmatpush.msra.mxu0 %v2487
        %3310 = vmatpush.msra.mxu0 %v2486
        %3311 = vmatpush.msra.mxu0 %v2485
        %3312 = vmatpush.msra.mxu0 %v2484
        %3313 = vmatpush.msra.mxu0 %v2483
        %3314 = vmatpush.msra.mxu0 %v2482
        %3315 = vmatpush.msra.mxu0 %v2481
        %3316 = vmatpush.msra.mxu0 %v2480
        %3317 = vmatpush.msra.mxu0 %v2479
        %3318 = vmatpush.msra.mxu0 %v2478
        %3319 = vmatpush.msra.mxu0 %v2477
        %3320 = vmatmul.f32.gmra.mxu0 %v2146
        %v3321 = vpop.f32.mrf.mxu0
        %v3322 = vadd.f32 %v3209, %v3321
        %3323 = vmatmul.f32.gmra.mxu0 %v2148
        %v3324 = vpop.f32.mrf.mxu0
        %v3325 = vadd.f32 %v3212, %v3324
        %3326 = vmatmul.f32.gmra.mxu0 %v2151
        %v3327 = vpop.f32.mrf.mxu0
        %v3328 = vadd.f32 %v3215, %v3327
        %3329 = vmatmul.f32.gmra.mxu0 %v2153
        %v3330 = vpop.f32.mrf.mxu0
        %v3331 = vadd.f32 %v3218, %v3330
        %3332 = vmatmul.f32.gmra.mxu0 %v2156
        %v3333 = vpop.f32.mrf.mxu0
        %v3334 = vadd.f32 %v3221, %v3333
        %3335 = vmatmul.f32.gmra.mxu0 %v2158
        %v3336 = vpop.f32.mrf.mxu0
        %v3337 = vadd.f32 %v3224, %v3336
        %3338 = vmatmul.f32.gmra.mxu0 %v2161
        %v3339 = vpop.f32.mrf.mxu0
        %v3340 = vadd.f32 %v3227, %v3339
        %3341 = vmatmul.f32.gmra.mxu0 %v2163
        %v3342 = vpop.f32.mrf.mxu0
        %v3343 = vadd.f32 %v3230, %v3342
        %3344 = vmatmul.f32.gmra.mxu0 %v2166
        %v3345 = vpop.f32.mrf.mxu0
        %v3346 = vadd.f32 %v3233, %v3345
        %3347 = vmatmul.f32.gmra.mxu0 %v2168
        %v3348 = vpop.f32.mrf.mxu0
        %v3349 = vadd.f32 %v3236, %v3348
        %3350 = vmatmul.f32.gmra.mxu0 %v2171
        %v3351 = vpop.f32.mrf.mxu0
        %v3352 = vadd.f32 %v3239, %v3351
        %3353 = vmatmul.f32.gmra.mxu0 %v2173
        %v3354 = vpop.f32.mrf.mxu0
        %v3355 = vadd.f32 %v3242, %v3354
        %3356 = vmatmul.f32.gmra.mxu0 %v2176
        %v3357 = vpop.f32.mrf.mxu0
        %v3358 = vadd.f32 %v3245, %v3357
        %3359 = vmatmul.f32.gmra.mxu0 %v2178
        %v3360 = vpop.f32.mrf.mxu0
        %v3361 = vadd.f32 %v3248, %v3360
        %3362 = vmatmul.f32.gmra.mxu0 %v2181
        %v3363 = vpop.f32.mrf.mxu0
        %v3364 = vadd.f32 %v3251, %v3363
        %3365 = vmatmul.f32.gmra.mxu0 %v2183
        %v3366 = vpop.f32.mrf.mxu0
        %v3367 = vadd.f32 %v3254, %v3366
        %3368 = vmatmul.f32.gmra.mxu0 %v2186
        %v3369 = vpop.f32.mrf.mxu0
        %v3370 = vadd.f32 %v3257, %v3369
        %3371 = vmatmul.f32.gmra.mxu0 %v2188
        %v3372 = vpop.f32.mrf.mxu0
        %v3373 = vadd.f32 %v3260, %v3372
        %3374 = vmatmul.f32.gmra.mxu0 %v2191
        %v3375 = vpop.f32.mrf.mxu0
        %v3376 = vadd.f32 %v3263, %v3375
        %3377 = vmatmul.f32.gmra.mxu0 %v2193
        %v3378 = vpop.f32.mrf.mxu0
        %v3379 = vadd.f32 %v3266, %v3378
        %3380 = vmatmul.f32.gmra.mxu0 %v2196
        %v3381 = vpop.f32.mrf.mxu0
        %v3382 = vadd.f32 %v3269, %v3381
        %3383 = vmatmul.f32.gmra.mxu0 %v2198
        %v3384 = vpop.f32.mrf.mxu0
        %v3385 = vadd.f32 %v3272, %v3384
        %3386 = vmatmul.f32.gmra.mxu0 %v2201
        %v3387 = vpop.f32.mrf.mxu0
        %v3388 = vadd.f32 %v3275, %v3387
        %3389 = vmatmul.f32.gmra.mxu0 %v2203
        %v3390 = vpop.f32.mrf.mxu0
        %v3391 = vadd.f32 %v3278, %v3390
        %3392 = vmatmul.f32.gmra.mxu0 %v2206
        %v3393 = vpop.f32.mrf.mxu0
        %v3394 = vadd.f32 %v3281, %v3393
        %3395 = vmatmul.f32.gmra.mxu0 %v2208
        %v3396 = vpop.f32.mrf.mxu0
        %v3397 = vadd.f32 %v3284, %v3396
        %3398 = vmatmul.f32.gmra.mxu0 %v2211
        %v3399 = vpop.f32.mrf.mxu0
        %v3400 = vadd.f32 %v3287, %v3399
        %3401 = vmatmul.f32.gmra.mxu0 %v2213
        %v3402 = vpop.f32.mrf.mxu0
        %v3403 = vadd.f32 %v3290, %v3402
        %3404 = vmatmul.f32.gmra.mxu0 %v2353
        %v3405 = vpop.f32.mrf.mxu0
        %v3406 = vadd.f32 %v3293, %v3405
        %3407 = vmatmul.f32.gmra.mxu0 %v2355
        %v3408 = vpop.f32.mrf.mxu0
        %v3409 = vadd.f32 %v3296, %v3408
        %3410 = vmatmul.f32.gmra.mxu0 %v513
        %v3411 = vpop.f32.mrf.mxu0
        %v3412 = vadd.f32 %v3299, %v3411
        %3413 = vmatmul.f32.gmra.mxu0 %v515
        %v3414 = vpop.f32.mrf.mxu0
        %v3415 = vadd.f32 %v3302, %v3414
        %3416 = vdwg.mxu0
        %3417 = vmatpush.msra.mxu0 %v2508
        %3418 = vmatpush.msra.mxu0 %v2507
        %3419 = vmatpush.msra.mxu0 %v2506
        %3420 = vmatpush.msra.mxu0 %v2505
        %3421 = vmatpush.msra.mxu0 %v2504
        %3422 = vmatpush.msra.mxu0 %v2503
        %3423 = vmatpush.msra.mxu0 %v2502
        %3424 = vmatpush.msra.mxu0 %v2501
        %3425 = vmatpush.msra.mxu0 %v2500
        %3426 = vmatpush.msra.mxu0 %v2499
        %3427 = vmatpush.msra.mxu0 %v2498
        %3428 = vmatpush.msra.mxu0 %v2497
        %3429 = vmatpush.msra.mxu0 %v2496
        %3430 = vmatpush.msra.mxu0 %v2495
        %3431 = vmatpush.msra.mxu0 %v2494
        %3432 = vmatpush.msra.mxu0 %v2493
        %3433 = vmatmul.f32.gmra.mxu0 %v2251
        %v3434 = vpop.f32.mrf.mxu0
        %v3435 = vadd.f32 %v3322, %v3434
        %3436 = vmatmul.f32.gmra.mxu0 %v2253
        %v3437 = vpop.f32.mrf.mxu0
        %v3438 = vadd.f32 %v3325, %v3437
        %3439 = vmatmul.f32.gmra.mxu0 %v2256
        %v3440 = vpop.f32.mrf.mxu0
        %v3441 = vadd.f32 %v3328, %v3440
        %3442 = vmatmul.f32.gmra.mxu0 %v2258
        %v3443 = vpop.f32.mrf.mxu0
        %v3444 = vadd.f32 %v3331, %v3443
        %3445 = vmatmul.f32.gmra.mxu0 %v2261
        %v3446 = vpop.f32.mrf.mxu0
        %v3447 = vadd.f32 %v3334, %v3446
        %3448 = vmatmul.f32.gmra.mxu0 %v2263
        %v3449 = vpop.f32.mrf.mxu0
        %v3450 = vadd.f32 %v3337, %v3449
        %3451 = vmatmul.f32.gmra.mxu0 %v2266
        %v3452 = vpop.f32.mrf.mxu0
        %v3453 = vadd.f32 %v3340, %v3452
        %3454 = vmatmul.f32.gmra.mxu0 %v2268
        %v3455 = vpop.f32.mrf.mxu0
        %v3456 = vadd.f32 %v3343, %v3455
        %3457 = vmatmul.f32.gmra.mxu0 %v2271
        %v3458 = vpop.f32.mrf.mxu0
        %v3459 = vadd.f32 %v3346, %v3458
        %3460 = vmatmul.f32.gmra.mxu0 %v2273
        %v3461 = vpop.f32.mrf.mxu0
        %v3462 = vadd.f32 %v3349, %v3461
        %3463 = vmatmul.f32.gmra.mxu0 %v2276
        %v3464 = vpop.f32.mrf.mxu0
        %v3465 = vadd.f32 %v3352, %v3464
        %3466 = vmatmul.f32.gmra.mxu0 %v2278
        %v3467 = vpop.f32.mrf.mxu0
        %v3468 = vadd.f32 %v3355, %v3467
        %3469 = vmatmul.f32.gmra.mxu0 %v2281
        %v3470 = vpop.f32.mrf.mxu0
        %v3471 = vadd.f32 %v3358, %v3470
        %3472 = vmatmul.f32.gmra.mxu0 %v2283
        %v3473 = vpop.f32.mrf.mxu0
        %v3474 = vadd.f32 %v3361, %v3473
        %3475 = vmatmul.f32.gmra.mxu0 %v2286
        %v3476 = vpop.f32.mrf.mxu0
        %v3477 = vadd.f32 %v3364, %v3476
        %3478 = vmatmul.f32.gmra.mxu0 %v2288
        %v3479 = vpop.f32.mrf.mxu0
        %v3480 = vadd.f32 %v3367, %v3479
        %3481 = vmatmul.f32.gmra.mxu0 %v2291
        %v3482 = vpop.f32.mrf.mxu0
        %v3483 = vadd.f32 %v3370, %v3482
        %3484 = vmatmul.f32.gmra.mxu0 %v2293
        %v3485 = vpop.f32.mrf.mxu0
        %v3486 = vadd.f32 %v3373, %v3485
        %3487 = vmatmul.f32.gmra.mxu0 %v2296
        %v3488 = vpop.f32.mrf.mxu0
        %v3489 = vadd.f32 %v3376, %v3488
        %3490 = vmatmul.f32.gmra.mxu0 %v2298
        %v3491 = vpop.f32.mrf.mxu0
        %v3492 = vadd.f32 %v3379, %v3491
        %3493 = vmatmul.f32.gmra.mxu0 %v2301
        %v3494 = vpop.f32.mrf.mxu0
        %v3495 = vadd.f32 %v3382, %v3494
        %3496 = vmatmul.f32.gmra.mxu0 %v2303
        %v3497 = vpop.f32.mrf.mxu0
        %v3498 = vadd.f32 %v3385, %v3497
        %3499 = vmatmul.f32.gmra.mxu0 %v2306
        %v3500 = vpop.f32.mrf.mxu0
        %v3501 = vadd.f32 %v3388, %v3500
        %3502 = vmatmul.f32.gmra.mxu0 %v2308
        %v3503 = vpop.f32.mrf.mxu0
        %v3504 = vadd.f32 %v3391, %v3503
        %3505 = vmatmul.f32.gmra.mxu0 %v2311
        %v3506 = vpop.f32.mrf.mxu0
        %v3507 = vadd.f32 %v3394, %v3506
        %3508 = vmatmul.f32.gmra.mxu0 %v2313
        %v3509 = vpop.f32.mrf.mxu0
        %v3510 = vadd.f32 %v3397, %v3509
        %3511 = vmatmul.f32.gmra.mxu0 %v2316
        %v3512 = vpop.f32.mrf.mxu0
        %v3513 = vadd.f32 %v3400, %v3512
        %3514 = vmatmul.f32.gmra.mxu0 %v2318
        %v3515 = vpop.f32.mrf.mxu0
        %v3516 = vadd.f32 %v3403, %v3515
        %3517 = vmatmul.f32.gmra.mxu0 %v2360
        %v3518 = vpop.f32.mrf.mxu0
        %v3519 = vadd.f32 %v3406, %v3518
        %3520 = vmatmul.f32.gmra.mxu0 %v2362
        %v3521 = vpop.f32.mrf.mxu0
        %v3522 = vadd.f32 %v3409, %v3521
        %3523 = vmatmul.f32.gmra.mxu0 %v626
        %v3524 = vpop.f32.mrf.mxu0
        %v3525 = vadd.f32 %v3412, %v3524
        %3526 = vmatmul.f32.gmra.mxu0 %v628
        %v3527 = vpop.f32.mrf.mxu0
        %v3528 = vadd.f32 %v3415, %v3527
        %3529 = vdwg.mxu0
        %v3530 = vadd.f32 %v3435, %v278
        %v3531 = vadd.f32 %v3438, %v279
        %v3532 = vadd.f32 %v3441, %v280
        %v3533 = vadd.f32 %v3444, %v281
        %v3534 = vadd.f32 %v3447, %v282
        %v3535 = vadd.f32 %v3450, %v283
        %v3536 = vadd.f32 %v3453, %v284
        %v3537 = vadd.f32 %v3456, %v285
        %v3538 = vadd.f32 %v3459, %v286
        %v3539 = vadd.f32 %v3462, %v287
        %v3540 = vadd.f32 %v3465, %v288
        %v3541 = vadd.f32 %v3468, %v289
        %v3542 = vadd.f32 %v3471, %v290
        %v3543 = vadd.f32 %v3474, %v291
        %v3544 = vadd.f32 %v3477, %v292
        %v3545 = vadd.f32 %v3480, %v293
        %v3546 = vadd.f32 %v3483, %v294
        %v3547 = vadd.f32 %v3486, %v295
        %v3548 = vadd.f32 %v3489, %v296
        %v3549 = vadd.f32 %v3492, %v297
        %v3550 = vadd.f32 %v3495, %v298
        %v3551 = vadd.f32 %v3498, %v299
        %v3552 = vadd.f32 %v3501, %v300
        %v3553 = vadd.f32 %v3504, %v301
        %v3554 = vadd.f32 %v3507, %v302
        %v3555 = vadd.f32 %v3510, %v303
        %v3556 = vadd.f32 %v3513, %v304
        %v3557 = vadd.f32 %v3516, %v305
        %v3558 = vadd.f32 %v3519, %v306
        %v3559 = vadd.f32 %v3522, %v307
        %v3560 = vadd.f32 %v3525, %v308
        %v3561 = vadd.f32 %v3528, %v309
        %v3562 = vmax.f32 %v3530, 0.0
        %v3563 = vmax.f32 %v3531, 0.0
        %v3564 = vmax.f32 %v3532, 0.0
        %v3565 = vmax.f32 %v3533, 0.0
        %v3566 = vmax.f32 %v3534, 0.0
        %v3567 = vmax.f32 %v3535, 0.0
        %v3568 = vmax.f32 %v3536, 0.0
        %v3569 = vmax.f32 %v3537, 0.0
        %v3570 = vmax.f32 %v3538, 0.0
        %v3571 = vmax.f32 %v3539, 0.0
        %v3572 = vmax.f32 %v3540, 0.0
        %v3573 = vmax.f32 %v3541, 0.0
        %v3574 = vmax.f32 %v3542, 0.0
        %v3575 = vmax.f32 %v3543, 0.0
        %v3576 = vmax.f32 %v3544, 0.0
        %v3577 = vmax.f32 %v3545, 0.0
        %v3578 = vmax.f32 %v3546, 0.0
        %v3579 = vmax.f32 %v3547, 0.0
        %v3580 = vmax.f32 %v3548, 0.0
        %v3581 = vmax.f32 %v3549, 0.0
        %v3582 = vmax.f32 %v3550, 0.0
        %v3583 = vmax.f32 %v3551, 0.0
        %v3584 = vmax.f32 %v3552, 0.0
        %v3585 = vmax.f32 %v3553, 0.0
        %v3586 = vmax.f32 %v3554, 0.0
        %v3587 = vmax.f32 %v3555, 0.0
        %v3588 = vmax.f32 %v3556, 0.0
        %v3589 = vmax.f32 %v3557, 0.0
        %v3590 = vmax.f32 %v3558, 0.0
        %v3591 = vmax.f32 %v3559, 0.0
        %v3592 = vmax.f32 %v3560, 0.0
        %v3593 = vmax.f32 %v3561, 0.0
        %3594 = vst [vmem:[%s277] sm:$0xff] %v3562
        %3595 = vst [vmem:[%s277 + $0x8] sm:$0xff] %v3563
        %3596 = vst [vmem:[%s277 + $0x10] sm:$0xff] %v3564
        %3597 = vst [vmem:[%s277 + $0x18] sm:$0xff] %v3565
        %3598 = vst [vmem:[%s277 + $0x20] sm:$0xff] %v3566
        %3599 = vst [vmem:[%s277 + $0x28] sm:$0xff] %v3567
        %3600 = vst [vmem:[%s277 + $0x30] sm:$0xff] %v3568
        %3601 = vst [vmem:[%s277 + $0x38] sm:$0xff] %v3569
        %3602 = vst [vmem:[%s277 + $0x40] sm:$0xff] %v3570
        %3603 = vst [vmem:[%s277 + $0x48] sm:$0xff] %v3571
        %3604 = vst [vmem:[%s277 + $0x50] sm:$0xff] %v3572
        %3605 = vst [vmem:[%s277 + $0x58] sm:$0xff] %v3573
        %3606 = vst [vmem:[%s277 + $0x60] sm:$0xff] %v3574
        %3607 = vst [vmem:[%s277 + $0x68] sm:$0xff] %v3575
        %3608 = vst [vmem:[%s277 + $0x70] sm:$0xff] %v3576
        %3609 = vst [vmem:[%s277 + $0x78] sm:$0xff] %v3577
        %3610 = vst [vmem:[%s277 + $0x80] sm:$0xff] %v3578
        %3611 = vst [vmem:[%s277 + $0x88] sm:$0xff] %v3579
        %3612 = vst [vmem:[%s277 + $0x90] sm:$0xff] %v3580
        %3613 = vst [vmem:[%s277 + $0x98] sm:$0xff] %v3581
        %3614 = vst [vmem:[%s277 + $0xa0] sm:$0xff] %v3582
        %3615 = vst [vmem:[%s277 + $0xa8] sm:$0xff] %v3583
        %3616 = vst [vmem:[%s277 + $0xb0] sm:$0xff] %v3584
        %3617 = vst [vmem:[%s277 + $0xb8] sm:$0xff] %v3585
        %3618 = vst [vmem:[%s277 + $0xc0] sm:$0xff] %v3586
        %3619 = vst [vmem:[%s277 + $0xc8] sm:$0xff] %v3587
        %3620 = vst [vmem:[%s277 + $0xd0] sm:$0xff] %v3588
        %3621 = vst [vmem:[%s277 + $0xd8] sm:$0xff] %v3589
        %3622 = vst [vmem:[%s277 + $0xe0] sm:$0xff] %v3590
        %3623 = vst [vmem:[%s277 + $0xe8] sm:$0xff] %v3591
        %3624 = vst [vmem:[%s277 + $0xf0] sm:$0xff] %v3592
        %3625 = vst [vmem:[%s277 + $0xf8] sm:$0xff] %v3593
        %s3626 = sand.u32 %s141, 1
        %s3627 = scalar_lea.sflag [#allocation4], %s3626
        %s3628 = sand.u32 %s141, 1
        %s3629 = smul.addr %s3628, 256
        %s3630 = scalar_lea.vmem [#allocation8], %s3629
        // Predicated region
        $region53: #{tpu_custom_call.1} parent=39 // pred_check
          %p3631 = pneg %p151
        $region54: #{tpu_custom_call.1} parent=39 // pred_check_branch
          %3633 = sbr.rel (%p3631) target = $region56
        $region55: #{tpu_custom_call.1} parent=39 // pred_region
          %3635 = vsyncadd %s3627, 0
          %s3636 = smul.addr %s23, 32
          %s3637 = smul.addr %s3636, 8
          %s3638 = scalar_lea.hbm %s5, %s3637
          %s3639 = sshll.u32 %s3630, 4
          %s3640 = int_to_ptr.vmem [resolvable:$true] %s3639
          %s3641 = sshll.u32 %s3638, 4
          %s3642 = int_to_ptr.hbm [resolvable:$true] %s3641
          %3647 = dma.vmem_to_hbm [thread:$0]  %s3640, 4096, %s3642, %s3627, 128, 128, 8
        $region56: #{tpu_custom_call.1} parent=39 // pred_fallthru
          _
      $region40: #{tpu_custom_call.1} parent=5 // pred_fallthru
        _
      %p3648 = scmp.le.s32.totalorder 2, %s18
      // Predicated region
      $region57: #{tpu_custom_call.1} parent=5 // pred_check
        %p3649 = pneg %p3648
      $region58: #{tpu_custom_call.1} parent=5 // pred_check_branch
        %3651 = sbr.rel (%p3649) target = $region60
      $region59: #{tpu_custom_call.1} parent=5 // pred_region
        %s3652 = ssub.s32 %s18, 2
        // Predicated region
        $region61: #{tpu_custom_call.1} parent=59 // pred_check
          %p3653 = pneg %p157
        $region62: #{tpu_custom_call.1} parent=59 // pred_check_branch
          %3655 = sbr.rel (%p3653) target = $region64
        $region63: #{tpu_custom_call.1} parent=59 // pred_region
          %s3656 = sand.u32 %s142, 1
          %s3657 = scalar_lea.sflag [#allocation4], %s3656
          %s3658 = sand.u32 %s142, 1
          %s3659 = smul.addr %s3658, 256
          %s3660 = scalar_lea.vmem [#allocation8], %s3659
          %3662 = dma.done %s3657, 4096
        $region64: #{tpu_custom_call.1} parent=59 // pred_fallthru
          _
      $region60: #{tpu_custom_call.1} parent=5 // pred_fallthru
        _
    $region6: #{tpu_custom_call.1} parent=1 // loop_footer
      %s22 = sadd.s32 1, %s18
    $region7: #{tpu_custom_call.1} parent=1 // loop_footer_branch
      %17 = sbr.rel target = $region3
    $region8: #{tpu_custom_call.1} parent=1 // loop_exit
      _
    %3663 = vsyncpa [#allocation3], 1
    %s3664 = scalar_lea.sflag [#allocation3], 1
    %3665 = vsyncpa %s3664, 1
    %3666 = vsyncpa [#allocation6], 1
    %3667 = vsyncpa [#allocation4], 1
    %s3668 = scalar_lea.sflag [#allocation4], 1
    %3669 = vsyncpa %s3668, 1

</llo_original>
